<compile_context>
chip_gen: v7x
topology: tpu7x:2x2x1
jax: 0.10.0
libtpu: 0.0.40
codegen_flags: <defaults>
</compile_context>

<pallas_src>
import functools

import jax
import jax.numpy as jnp
from jax import lax
from jax.experimental import pallas as pl
from jax.experimental.pallas import tpu as pltpu


_VMEM_LIMIT = 48 * 1024 * 1024   # > v5e/v6e scoped defaults, < v7x physical 64 MiB
_ROW_TILE = 256                  # GAT / tail target-row tile (512 on 128-MiB parts)
_PROJ_ROW_TILE = 512             # projection matmul M tile


def _pick_tile(dim, pref):
    if dim <= pref:
        return dim
    if dim % pref == 0:
        return pref
    return dim  # fall back to the full dim (keeps the block legal)


# ---------------------------------------------------------------------------
# Head-major projection matmul (bf16 operands, f32 accumulation)
# ---------------------------------------------------------------------------

def _proj_kernel(x_ref, w_ref, o_ref, acc_ref):
    @pl.when(pl.program_id(2) == 0)
    def _():
        acc_ref[...] = jnp.zeros_like(acc_ref)

    acc_ref[...] += jnp.dot(x_ref[...], w_ref[...],
                            preferred_element_type=jnp.float32)

    @pl.when(pl.program_id(2) == pl.num_programs(2) - 1)
    def _():
        o_ref[0] = acc_ref[...].astype(o_ref.dtype)


def project_heads(x, w, *, heads, head_dim, vmem_limit=_VMEM_LIMIT):
    """(N, K) @ (K, heads*head_dim) -> head-major (heads, N, head_dim) in bf16.

    Emitting head-major output directly from the out BlockSpec avoids the
    (N, H*C) -> (H, N, C) HBM transpose the GAT kernels would otherwise need.
    GATConv's internal Linear has no bias.
    """
    M, K = x.shape
    tm = M if M <= _PROJ_ROW_TILE else _PROJ_ROW_TILE
    tk = _pick_tile(K, 2048)
    grid = (pl.cdiv(M, tm), heads, K // tk)
    return pl.pallas_call(
        _proj_kernel,
        out_shape=jax.ShapeDtypeStruct((heads, M, head_dim), jnp.bfloat16),
        grid=grid,
        in_specs=[
            pl.BlockSpec((tm, tk), lambda i, j, k: (i, k)),
            pl.BlockSpec((tk, head_dim), lambda i, j, k: (k, j)),
        ],
        out_specs=pl.BlockSpec((1, tm, head_dim), lambda i, j, k: (j, i, 0)),
        scratch_shapes=[pltpu.VMEM((tm, head_dim), jnp.float32)],
        compiler_params=pltpu.CompilerParams(
            dimension_semantics=("parallel", "parallel", "arbitrary"),
            vmem_limit_bytes=vmem_limit),
    )(x.astype(jnp.bfloat16), w.astype(jnp.bfloat16))


# ---------------------------------------------------------------------------
# GAT attention (PyG GATConv semantics on dense edge-multiplicity counts)
# ---------------------------------------------------------------------------

def _gat_head_body(hs, hd, asrc, adst, adj):
    """One head, one target-row tile.

    hs   : (N, C)   bf16, transformed features of all source nodes
    hd   : (TM, C)  bf16, transformed features of this tile's target nodes
    asrc : (1, C)   f32 attention vector (source part)
    adst : (1, C)   f32 attention vector (target part)
    adj  : (TM, N)  bf16 [target, source] edge-multiplicity counts (+ self loops)
    """
    # Target score on the VPU (mul + lane reduce) — keeps the MXU free.
    a_dst = jnp.sum(hd.astype(jnp.float32) * adst, axis=-1, keepdims=True)   # (TM,1)
    # Source score as a thin NT matmul: directly lane-major (1, N), one per tile.
    a_src = lax.dot_general(asrc.astype(jnp.bfloat16), hs,
                            (((1,), (1,)), ((), ())),
                            preferred_element_type=jnp.float32)              # (1, N)
    logits = a_dst + a_src                                                   # (TM, N)
    logits = jnp.where(logits > 0, logits, 0.2 * logits)                     # LeakyReLU(0.2)

    # No explicit mask: the unmasked row max is a valid stabilizer (cancels in
    # the normalization) and adj==0 zeroes non-edges.
    m = jnp.max(logits, axis=1, keepdims=True)
    w = adj.astype(jnp.float32) * jnp.exp(logits - m)
    rowsum = jnp.sum(w, axis=1, keepdims=True)
    acc = jnp.dot(w.astype(jnp.bfloat16), hs,
                  preferred_element_type=jnp.float32)                        # (TM, C)
    # Deferred, exact normalization (TM reciprocals per tile — exactness is free).
    return acc * pl.reciprocal(rowsum, approx=False)


def _gat_concat_kernel(hsrc_ref, hdst_ref, asrc_ref, adst_ref, adj_ref,
                       bias_ref, o_ref):
    """concat=True layer: per-head bias + ReLU, lane-dense 128-wide output."""
    hh = pl.program_id(1)
    out = _gat_head_body(hsrc_ref[hh], hdst_ref[0], asrc_ref[0], adst_ref[0],
                         adj_ref[...])
    o_ref[...] = jnp.maximum(out + bias_ref[0], 0.0).astype(o_ref.dtype)


def _gat_mean_kernel(hsrc_ref, hdst_ref, asrc_ref, adst_ref, adj_ref,
                     bias_ref, o_ref, acc_ref, *, heads):
    """concat=False layer: accumulate heads across the inner grid axis, then
    mean + bias + ReLU once (hoisted conv3 epilogue)."""
    hh = pl.program_id(1)

    @pl.when(hh == 0)
    def _():
        acc_ref[...] = jnp.zeros_like(acc_ref)

    acc_ref[...] += _gat_head_body(hsrc_ref[hh], hdst_ref[0], asrc_ref[0],
                                   adst_ref[0], adj_ref[...])

    @pl.when(hh == heads - 1)
    def _():
        o_ref[...] = jnp.maximum(acc_ref[...] * (1.0 / heads) + bias_ref[...],
                                 0.0)


def gat_concat(h, att_src, att_dst, bias, adj, *, vmem_limit=_VMEM_LIMIT):
    """h: (heads, N, C) bf16 -> (N, heads*C) bf16 (bias + ReLU applied)."""
    heads, N, C = h.shape
    TM = N if N <= _ROW_TILE else _ROW_TILE
    R = pl.cdiv(N, TM)
    asrc = att_src.reshape(heads, 1, C)
    adst = att_dst.reshape(heads, 1, C)
    bias3 = bias.reshape(heads, 1, C)
    return pl.pallas_call(
        _gat_concat_kernel,
        out_shape=jax.ShapeDtypeStruct((N, heads * C), jnp.bfloat16),
        grid=(R, heads),
        in_specs=[
            pl.BlockSpec((heads, N, C), lambda i, hh: (0, 0, 0)),  # resident sources
            pl.BlockSpec((1, TM, C), lambda i, hh: (hh, i, 0)),    # target rows
            pl.BlockSpec((1, 1, C), lambda i, hh: (hh, 0, 0)),
            pl.BlockSpec((1, 1, C), lambda i, hh: (hh, 0, 0)),
            pl.BlockSpec((TM, N), lambda i, hh: (i, 0)),           # adj: const over hh
            pl.BlockSpec((1, 1, C), lambda i, hh: (hh, 0, 0)),
        ],
        out_specs=pl.BlockSpec((TM, C), lambda i, hh: (i, hh)),
        compiler_params=pltpu.CompilerParams(
            dimension_semantics=("parallel", "arbitrary"),
            vmem_limit_bytes=vmem_limit),
    )(h, h, asrc, adst, adj, bias3)


def gat_mean(h, att_src, att_dst, bias, adj, *, vmem_limit=_VMEM_LIMIT):
    """h: (heads, N, C) bf16 -> (N, C) f32 = ReLU(mean_heads(attn) + bias)."""
    heads, N, C = h.shape
    TM = N if N <= _ROW_TILE else _ROW_TILE
    R = pl.cdiv(N, TM)
    asrc = att_src.reshape(heads, 1, C)
    adst = att_dst.reshape(heads, 1, C)
    bias2 = bias.reshape(1, C)
    return pl.pallas_call(
        functools.partial(_gat_mean_kernel, heads=heads),
        out_shape=jax.ShapeDtypeStruct((N, C), jnp.float32),
        grid=(R, heads),
        in_specs=[
            pl.BlockSpec((heads, N, C), lambda i, hh: (0, 0, 0)),
            pl.BlockSpec((1, TM, C), lambda i, hh: (hh, i, 0)),
            pl.BlockSpec((1, 1, C), lambda i, hh: (hh, 0, 0)),
            pl.BlockSpec((1, 1, C), lambda i, hh: (hh, 0, 0)),
            pl.BlockSpec((TM, N), lambda i, hh: (i, 0)),
            pl.BlockSpec((1, C), lambda i, hh: (0, 0)),
        ],
        out_specs=pl.BlockSpec((TM, C), lambda i, hh: (i, 0)),
        scratch_shapes=[pltpu.VMEM((TM, C), jnp.float32)],
        compiler_params=pltpu.CompilerParams(
            dimension_semantics=("parallel", "arbitrary"),
            vmem_limit_bytes=vmem_limit),
    )(h, h, asrc, adst, adj, bias2)


# ---------------------------------------------------------------------------
# Temporal embedding mean — streamed over edges with a resident accumulator
# ---------------------------------------------------------------------------

def _temporal_kernel(t_ref, w1_ref, b1_ref, w2_ref, b2_ref, o_ref, *,
                     n_edges, tile_e):
    i = pl.program_id(0)

    @pl.when(i == 0)
    def _():
        o_ref[...] = jnp.zeros_like(o_ref)

    t = t_ref[...]                                                  # (TE, 1)
    hdn = jnp.maximum(t * w1_ref[...] + b1_ref[...], 0.0)           # (TE, 64)
    e = jnp.dot(hdn, w2_ref[...],
                preferred_element_type=jnp.float32) + b2_ref[...]   # (TE, O)
    rid = i * tile_e + lax.broadcasted_iota(jnp.int32, e.shape, 0)
    e = jnp.where(rid < n_edges, e, 0.0)                            # mask padding
    o_ref[...] += jnp.sum(e, axis=0, keepdims=True)

    @pl.when(i == pl.num_programs(0) - 1)
    def _():
        o_ref[...] = o_ref[...] * (1.0 / n_edges)


def temporal_embedding_mean(t, w1, b1, w2, b2, *, vmem_limit=_VMEM_LIMIT):
    # TODO(synk): the (TE, 1) edge-time block is 1-lane wide; lane-packing it
    # would matter only for very large edge counts.
    E = t.shape[0]
    Hd = w1.shape[1]
    O = w2.shape[1]
    TE = E if E <= 1024 else 1024
    return pl.pallas_call(
        functools.partial(_temporal_kernel, n_edges=E, tile_e=TE),
        out_shape=jax.ShapeDtypeStruct((1, O), jnp.float32),
        grid=(pl.cdiv(E, TE),),
        in_specs=[
            pl.BlockSpec((TE, 1), lambda i: (i, 0)),
            pl.BlockSpec((1, Hd), lambda i: (0, 0)),
            pl.BlockSpec((1, Hd), lambda i: (0, 0)),
            pl.BlockSpec((Hd, O), lambda i: (0, 0)),
            pl.BlockSpec((1, O), lambda i: (0, 0)),
        ],
        out_specs=pl.BlockSpec((1, O), lambda i: (0, 0)),
        compiler_params=pltpu.CompilerParams(
            dimension_semantics=("arbitrary",), vmem_limit_bytes=vmem_limit),
    )(t, w1, b1.reshape(1, Hd), w2, b2.reshape(1, O))


# ---------------------------------------------------------------------------
# Fused tail: scatter_add aggregation + fc1/fc2 + LayerNorm + residual
# ---------------------------------------------------------------------------

def _tail_kernel(scat_ref, h3_ref, x_ref, time_ref, resw_ref, resb_ref,
                 w1a_ref, w1b_ref, b1_ref, w2_ref, b2_ref, g_ref, beta_ref,
                 o_ref):
    h3b = h3_ref[...].astype(jnp.bfloat16)                           # (N, C)
    # scatter_add over edges == scat @ h3   (row-stripe of scat for this tile)
    x_agg = jnp.dot(scat_ref[...], h3b,
                    preferred_element_type=jnp.float32)              # (TM, C)

    # residual_transform on the raw input rows (fused, no separate launch)
    x_res = jnp.dot(x_ref[...], resw_ref[...],
                    preferred_element_type=jnp.float32) + resb_ref[...]

    # fc1 on cat([x_agg, time_mean]) folded into a split matmul
    t_contrib = jnp.dot(time_ref[...], w1b_ref[...],
                        preferred_element_type=jnp.float32)          # (1, C)
    z = jnp.dot(x_agg, w1a_ref[...], preferred_element_type=jnp.float32)
    z = jnp.maximum(z + t_contrib + b1_ref[...], 0.0)
    # TODO(synk): nn.Dropout(0.5) modeled in eval mode (identity), no RNG mask.
    z = jnp.dot(z, w2_ref[...], preferred_element_type=jnp.float32) + b2_ref[...]

    mu = jnp.mean(z, axis=-1, keepdims=True)
    var = jnp.mean((z - mu) ** 2, axis=-1, keepdims=True)
    z = (z - mu) * lax.rsqrt(var + 1e-5) * g_ref[...] + beta_ref[...]
    o_ref[...] = z + x_res


def fused_tail(scat, h3, x, time_mean, p, *, vmem_limit=_VMEM_LIMIT):
    N, in_c = x.shape
    out_c = p['fc2_w'].shape[1]
    TM = N if N <= _ROW_TILE else _ROW_TILE
    R = pl.cdiv(N, TM)
    w1a = p['fc1_w'][:out_c]      # acts on x_agg
    w1b = p['fc1_w'][out_c:]      # acts on the broadcast time embedding
    r2 = lambda a: a.reshape(1, -1)

    def full2(shape):
        return pl.BlockSpec(shape, lambda i: (0, 0))

    return pl.pallas_call(
        _tail_kernel,
        out_shape=jax.ShapeDtypeStruct((N, out_c), jnp.float32),
        grid=(R,),
        in_specs=[
            pl.BlockSpec((TM, N), lambda i: (i, 0)),               # scat rows (bf16)
            full2((N, out_c)),                                     # h3 (resident)
            pl.BlockSpec((TM, in_c), lambda i: (i, 0)),            # raw input rows
            full2((1, out_c)),                                     # time_mean
            full2((in_c, out_c)),                                  # res_w
            full2((1, out_c)),                                     # res_b
            full2((out_c, out_c)),                                 # fc1_w (agg half)
            full2((out_c, out_c)),                                 # fc1_w (time half)
            full2((1, out_c)),                                     # fc1_b
            full2((out_c, out_c)),                                 # fc2_w
            full2((1, out_c)),                                     # fc2_b
            full2((1, out_c)),                                     # ln gamma
            full2((1, out_c)),                                     # ln beta
        ],
        out_specs=pl.BlockSpec((TM, out_c), lambda i: (i, 0)),
        compiler_params=pltpu.CompilerParams(
            dimension_semantics=("parallel",), vmem_limit_bytes=vmem_limit),
    )(scat, h3, x, time_mean, p['res_w'], r2(p['res_b']),
      w1a, w1b, r2(p['fc1_b']), p['fc2_w'], r2(p['fc2_b']),
      r2(p['ln_g']), r2(p['ln_b']))


# ---------------------------------------------------------------------------
# Full forward pass (glue in plain JAX, compute in Pallas)
# ---------------------------------------------------------------------------

def tgn_forward(params, x, edge_index, edge_time):
    N = x.shape[0]
    heads, hidden = 4, 128
    out_c = params['fc2_w'].shape[1]

    # add_self_loops(edge_index, num_nodes=N) as in forward()
    sl = jnp.arange(N, dtype=edge_index.dtype)
    ei = jnp.concatenate([edge_index, jnp.stack([sl, sl])], axis=1)
    src, dst = ei[0], ei[1]
    diag = jnp.arange(N)

    # adj[target, source] edge-multiplicity counts (+diag for GATConv's own
    # add_self_loops).  scat[source, target] is the scatter_add matrix, built
    # directly from the indices (no N^2 transpose pass).  Both stored in bf16
    # (small integer counts are exact; storage / DMA halved).
    adj = (jnp.zeros((N, N), jnp.float32).at[dst, src].add(1.0)
           .at[diag, diag].add(1.0)).astype(jnp.bfloat16)
    scat = jnp.zeros((N, N), jnp.float32).at[src, dst].add(1.0).astype(jnp.bfloat16)

    # temporal embedding mean (on the original edges, before self loops)
    t = edge_time.astype(jnp.float32).reshape(-1, 1)
    time_mean = temporal_embedding_mean(t, params['te_w1'], params['te_b1'],
                                        params['te_w2'], params['te_b2'])

    # GAT layers 1 & 2 (concat=True): head-major bf16 projection, row-tiled attention
    h = project_heads(x, params['g1_w'], heads=heads, head_dim=hidden)
    y = gat_concat(h, params['g1_as'], params['g1_ad'], params['g1_b'], adj)
    h = project_heads(y, params['g2_w'], heads=heads, head_dim=hidden)
    y = gat_concat(h, params['g2_as'], params['g2_ad'], params['g2_b'], adj)

    # Layer 3 (concat=False): projection kept lane-dense (N, heads*out_c=128);
    # the small (N,4,32)->(4,N,32) relayout happens once in XLA and is
    # negligible vs the N^2 attention traffic.  Head mean + bias + ReLU are
    # fused into the GAT kernel's cross-head accumulator.
    h2d = project_heads(y, params['g3_w'], heads=1, head_dim=heads * out_c)[0]
    h3heads = h2d.reshape(N, heads, out_c).transpose(1, 0, 2)
    h3 = gat_mean(h3heads, params['g3_as'], params['g3_ad'], params['g3_b'], adj)

    return fused_tail(scat, h3, x, time_mean, params)


# ---------------------------------------------------------------------------
# Deterministic parameter init (PyTorch Linear weights stored as (in, out))
# ---------------------------------------------------------------------------

def init_params(key, in_c, out_c, hidden=128, heads=4):
    ks = iter(jax.random.split(key, 32))

    def w(shape, scale=0.05):
        return (scale * jax.random.normal(next(ks), shape)).astype(jnp.float32)

    p = {}
    p['g1_w'], p['g1_as'], p['g1_ad'], p['g1_b'] = (
        w((in_c, heads * hidden)), w((heads, hidden)), w((heads, hidden)),
        w((heads * hidden,)))
    p['g2_w'], p['g2_as'], p['g2_ad'], p['g2_b'] = (
        w((heads * hidden, heads * hidden)), w((heads, hidden)),
        w((heads, hidden)), w((heads * hidden,)))
    p['g3_w'], p['g3_as'], p['g3_ad'], p['g3_b'] = (
        w((heads * hidden, heads * out_c)), w((heads, out_c)),
        w((heads, out_c)), w((out_c,)))
    p['te_w1'], p['te_b1'] = w((1, 64)), w((64,))
    p['te_w2'], p['te_b2'] = w((64, out_c)), w((out_c,))
    p['fc1_w'], p['fc1_b'] = w((2 * out_c, out_c)), w((out_c,))
    p['fc2_w'], p['fc2_b'] = w((out_c, out_c)), w((out_c,))
    p['res_w'], p['res_b'] = w((in_c, out_c)), w((out_c,))
    p['ln_g'] = jnp.ones((out_c,), jnp.float32)
    p['ln_b'] = jnp.zeros((out_c,), jnp.float32)
    return p


# ---------------------------------------------------------------------------
# Pure-JAX reference (same math, HIGHEST precision) for a correctness check
# ---------------------------------------------------------------------------

def reference_forward(p, x, edge_index, edge_time):
    hp = lax.Precision.HIGHEST
    N = x.shape[0]
    out_c = p['fc2_w'].shape[1]
    sl = jnp.arange(N, dtype=edge_index.dtype)
    ei = jnp.concatenate([edge_index, jnp.stack([sl, sl])], axis=1)
    src, dst = ei[0], ei[1]
    adj = (jnp.zeros((N, N), jnp.float32).at[dst, src].add(1.0)
           + jnp.eye(N, dtype=jnp.float32))
    scat = jnp.zeros((N, N), jnp.float32).at[src, dst].add(1.0)

    def gat(xin, w, a_s, a_d, b, heads, C, concat):
        h = jnp.dot(xin, w, precision=hp).reshape(N, heads, C)
        s_src = jnp.einsum('nhc,hc->nh', h, a_s, precision=hp)
        s_dst = jnp.einsum('nhc,hc->nh', h, a_d, precision=hp)
        logits = s_dst[:, None, :] + s_src[None, :, :]
        logits = jnp.where(logits > 0, logits, 0.2 * logits)
        mask = (adj > 0)[..., None]
        masked = jnp.where(mask, logits, -1e30)
        m = jnp.max(masked, axis=1, keepdims=True)
        wts = adj[..., None] * jnp.exp(masked - m)
        alpha = wts / jnp.sum(wts, axis=1, keepdims=True)
        out = jnp.einsum('ijh,jhc->ihc', alpha, h, precision=hp)
        if concat:
            out = out.reshape(N, heads * C) + b
        else:
            out = out.mean(axis=1) + b
        return jnp.maximum(out, 0.0)

    t = edge_time.astype(jnp.float32).reshape(-1, 1)
    th = jnp.maximum(jnp.dot(t, p['te_w1'], precision=hp) + p['te_b1'], 0.0)
    te = jnp.dot(th, p['te_w2'], precision=hp) + p['te_b2']
    time_mean = te.mean(axis=0)

    x_res = jnp.dot(x, p['res_w'], precision=hp) + p['res_b']
    h = gat(x, p['g1_w'], p['g1_as'], p['g1_ad'], p['g1_b'], 4, 128, True)
    h = gat(h, p['g2_w'], p['g2_as'], p['g2_ad'], p['g2_b'], 4, 128, True)
    h = gat(h, p['g3_w'], p['g3_as'], p['g3_ad'], p['g3_b'], 4, out_c, False)
    x_agg = jnp.dot(scat, h, precision=hp)
    feat = jnp.concatenate(
        [x_agg, jnp.broadcast_to(time_mean[None, :], (N, out_c))], axis=1)
    z = jnp.maximum(jnp.dot(feat, p['fc1_w'], precision=hp) + p['fc1_b'], 0.0)
    z = jnp.dot(z, p['fc2_w'], precision=hp) + p['fc2_b']
    mu = z.mean(axis=-1, keepdims=True)
    var = ((z - mu) ** 2).mean(axis=-1, keepdims=True)
    z = (z - mu) * lax.rsqrt(var + 1e-5) * p['ln_g'] + p['ln_b']
    return z + x_res


if __name__ == "__main__":
    key = jax.random.PRNGKey(0)
    in_c, out_c = 16, 32
    N, E = 12, 20
    k1, k2, k3, k4 = jax.random.split(key, 4)
    x = jax.random.normal(k1, (N, in_c), jnp.float32)
    edge_index = jax.random.randint(k2, (2, E), 0, N, dtype=jnp.int32)
    edge_time = jax.random.uniform(k3, (E,), jnp.float32) * 10.0
    params = init_params(k4, in_c, out_c)

    fwd = jax.jit(tgn_forward)
    out = jax.block_until_ready(fwd(params, x, edge_index, edge_time))
    assert out.shape == (N, out_c) and out.dtype == jnp.float32

    ref = jax.block_until_ready(reference_forward(params, x, edge_index, edge_time))
    # bf16 storage / MXU operands introduce ~1% drift vs the f32 HIGHEST-
    # precision reference.
    if not jnp.allclose(out, ref, atol=5e-2, rtol=5e-2):
        raise AssertionError(
            f"mismatch vs reference, max abs err = {jnp.max(jnp.abs(out - ref))}")

    print("KERNEL_OK")
</pallas_src>

<mosaic_0001>
module attributes {stable_mosaic.version = 11 : i64} {
  func.func private @main(%arg0: i32) attributes {dimension_semantics = [#tpu.dimension_semantics<core_parallel>], iteration_bounds = array<i64: 2>, tpu.core_type = #tpu.core_type<sc_scalar_subcore>, window_params = []} {
    return
  }
}

module attributes {stable_mosaic.version = 11 : i64} {
  func.func private @main(%arg0: i32) attributes {dimension_semantics = [#tpu.dimension_semantics<core_parallel>], iteration_bounds = array<i64: 2>, tpu.core_type = #tpu.core_type<sc_scalar_subcore>, window_params = []} {
    return
  }
}

module attributes {stable_mosaic.version = 11 : i64} {
  func.func @_proj_kernel(%arg0: i32, %arg1: i32, %arg2: i32, %arg3: memref<12x16xbf16, #tpu.memory_space<vmem>>, %arg4: memref<16x128xbf16, #tpu.memory_space<vmem>>, %arg5: memref<1x12x128xbf16, #tpu.memory_space<vmem>>, %arg6: memref<12x128xf32, #tpu.memory_space<vmem>>) attributes {dimension_semantics = [#tpu.dimension_semantics<parallel>, #tpu.dimension_semantics<parallel>, #tpu.dimension_semantics<arbitrary>], iteration_bounds = array<i64: 1, 4, 1>, scalar_prefetch = 0 : i64, scratch_operands = 1 : i64, tpu.core_type = #tpu.core_type<tc>, window_params = [{transform_indices = @transform_0, window_bounds = array<i64: 12, 16>}, {transform_indices = @transform_1, window_bounds = array<i64: 16, 128>}, {transform_indices = @transform_2, window_bounds = array<i64: 1, 12, 128>}]} {
    %c0_i32 = arith.constant 0 : i32
    %0 = arith.cmpi eq, %arg2, %c0_i32 : i32
    %1 = arith.extui %0 : i1 to i32
    %c0_i32_0 = arith.constant 0 : i32
    %2 = arith.cmpi ne, %1, %c0_i32_0 : i32
    scf.if %2 {
      %cst_10 = arith.constant 0.000000e+00 : f32
      %12 = vector.broadcast %cst_10 : f32 to vector<12x128xf32>
      %c0_11 = arith.constant 0 : index
      %c0_12 = arith.constant 0 : index
      %13 = vector.load %arg6[%c0_11, %c0_12] : memref<12x128xf32, #tpu.memory_space<vmem>>, vector<12x128xf32>
      tpu.vector_store %arg6[%c0_11, %c0_12], %12 {strides = array<i32>} : memref<12x128xf32, #tpu.memory_space<vmem>>, vector<12x128xf32>,
    } else {
    }
    %c0 = arith.constant 0 : index
    %c0_1 = arith.constant 0 : index
    %3 = vector.load %arg6[%c0, %c0_1] : memref<12x128xf32, #tpu.memory_space<vmem>>, vector<12x128xf32>
    %c0_2 = arith.constant 0 : index
    %c0_3 = arith.constant 0 : index
    %4 = vector.load %arg3[%c0_2, %c0_3] : memref<12x16xbf16, #tpu.memory_space<vmem>>, vector<12x16xbf16>
    %c0_4 = arith.constant 0 : index
    %c0_5 = arith.constant 0 : index
    %5 = vector.load %arg4[%c0_4, %c0_5] : memref<16x128xbf16, #tpu.memory_space<vmem>>, vector<16x128xbf16>
    %cst = arith.constant dense<0.000000e+00> : vector<12x128xf32>
    %6 = tpu.matmul %4, %5, %cst {dimension_numbers = #tpu.dot_dimension_numbers<[1], [0], [0], [1], [0, 0, 1, 1], [], []>} : vector<12x16xbf16>, vector<16x128xbf16>, vector<12x128xf32> -> vector<12x128xf32>
    %7 = arith.addf %3, %6 : vector<12x128xf32>
    %c0_6 = arith.constant 0 : index
    %c0_7 = arith.constant 0 : index
    %8 = vector.load %arg6[%c0_6, %c0_7] : memref<12x128xf32, #tpu.memory_space<vmem>>, vector<12x128xf32>
    tpu.vector_store %arg6[%c0_6, %c0_7], %7 {strides = array<i32>} : memref<12x128xf32, #tpu.memory_space<vmem>>, vector<12x128xf32>,
    %c0_i32_8 = arith.constant 0 : i32
    %9 = arith.cmpi eq, %arg2, %c0_i32_8 : i32
    %10 = arith.extui %9 : i1 to i32
    %c0_i32_9 = arith.constant 0 : i32
    %11 = arith.cmpi ne, %10, %c0_i32_9 : i32
    scf.if %11 {
      %c0_10 = arith.constant 0 : index
      %c0_11 = arith.constant 0 : index
      %12 = vector.load %arg6[%c0_10, %c0_11] : memref<12x128xf32, #tpu.memory_space<vmem>>, vector<12x128xf32>
      %13 = arith.truncf %12 : vector<12x128xf32> to vector<12x128xbf16>
      %c0_12 = arith.constant 0 : index
      %c0_13 = arith.constant 0 : index
      %c0_14 = arith.constant 0 : index
      %14 = vector.load %arg5[%c0_12, %c0_13, %c0_14] : memref<1x12x128xbf16, #tpu.memory_space<vmem>>, vector<1x12x128xbf16>
      %15 = vector.shape_cast %14 : vector<1x12x128xbf16> to vector<12x128xbf16>
      %16 = vector.shape_cast %13 : vector<12x128xbf16> to vector<1x12x128xbf16>
      tpu.vector_store %arg5[%c0_12, %c0_13, %c0_14], %16 {strides = array<i32>} : memref<1x12x128xbf16, #tpu.memory_space<vmem>>, vector<1x12x128xbf16>,
    } else {
    }
    return
  }
  func.func @transform_0(%arg0: i32, %arg1: i32, %arg2: i32) -> (i32, i32) {
    %c0_i32 = arith.constant 0 : i32
    return %arg0, %arg2 : i32, i32
  }
  func.func @transform_1(%arg0: i32, %arg1: i32, %arg2: i32) -> (i32, i32) {
    %c0_i32 = arith.constant 0 : i32
    return %arg2, %arg1 : i32, i32
  }
  func.func @transform_2(%arg0: i32, %arg1: i32, %arg2: i32) -> (i32, i32, i32) {
    %c0_i32 = arith.constant 0 : i32
    %c0_i32_0 = arith.constant 0 : i32
    return %arg1, %arg0, %c0_i32 : i32, i32, i32
  }
}

module attributes {stable_mosaic.version = 11 : i64} {
  func.func @_temporal_kernel(%arg0: i32, %arg1: memref<20x1xf32, #tpu.memory_space<vmem>>, %arg2: memref<1x64xf32, #tpu.memory_space<vmem>>, %arg3: memref<1x64xf32, #tpu.memory_space<vmem>>, %arg4: memref<64x32xf32, #tpu.memory_space<vmem>>, %arg5: memref<1x32xf32, #tpu.memory_space<vmem>>, %arg6: memref<1x32xf32, #tpu.memory_space<vmem>>) attributes {dimension_semantics = [#tpu.dimension_semantics<arbitrary>], iteration_bounds = array<i64: 1>, scalar_prefetch = 0 : i64, scratch_operands = 0 : i64, tpu.core_type = #tpu.core_type<tc>, window_params = [{transform_indices = @transform_0, window_bounds = array<i64: 20, 1>}, {pipeline_mode = #tpu.pipeline_mode<synchronous>, transform_indices = @transform_1, window_bounds = array<i64: 1, 64>}, {pipeline_mode = #tpu.pipeline_mode<synchronous>, transform_indices = @transform_2, window_bounds = array<i64: 1, 64>}, {pipeline_mode = #tpu.pipeline_mode<synchronous>, transform_indices = @transform_3, window_bounds = array<i64: 64, 32>}, {pipeline_mode = #tpu.pipeline_mode<synchronous>, transform_indices = @transform_4, window_bounds = array<i64: 1, 32>}, {pipeline_mode = #tpu.pipeline_mode<synchronous>, transform_indices = @transform_5, window_bounds = array<i64: 1, 32>}]} {
    %c0_i32 = arith.constant 0 : i32
    %0 = arith.cmpi eq, %arg0, %c0_i32 : i32
    %1 = arith.extui %0 : i1 to i32
    %c0_i32_0 = arith.constant 0 : i32
    %2 = arith.cmpi ne, %1, %c0_i32_0 : i32
    scf.if %2 {
      %cst_20 = arith.constant 0.000000e+00 : f32
      %34 = vector.broadcast %cst_20 : f32 to vector<1x32xf32>
      %c0_21 = arith.constant 0 : index
      %c0_22 = arith.constant 0 : index
      %35 = vector.load %arg6[%c0_21, %c0_22] : memref<1x32xf32, #tpu.memory_space<vmem>>, vector<1x32xf32>
      tpu.vector_store %arg6[%c0_21, %c0_22], %34 {strides = array<i32>} : memref<1x32xf32, #tpu.memory_space<vmem>>, vector<1x32xf32>,
    } else {
    }
    %c0 = arith.constant 0 : index
    %c0_1 = arith.constant 0 : index
    %3 = vector.load %arg1[%c0, %c0_1] : memref<20x1xf32, #tpu.memory_space<vmem>>, vector<20x1xf32>
    %c0_2 = arith.constant 0 : index
    %c0_3 = arith.constant 0 : index
    %4 = vector.load %arg2[%c0_2, %c0_3] : memref<1x64xf32, #tpu.memory_space<vmem>>, vector<1x64xf32>
    %5 = vector.broadcast %3 : vector<20x1xf32> to vector<20x64xf32>
    %6 = vector.broadcast %4 : vector<1x64xf32> to vector<20x64xf32>
    %7 = arith.mulf %5, %6 : vector<20x64xf32>
    %c0_4 = arith.constant 0 : index
    %c0_5 = arith.constant 0 : index
    %8 = vector.load %arg3[%c0_4, %c0_5] : memref<1x64xf32, #tpu.memory_space<vmem>>, vector<1x64xf32>
    %9 = vector.broadcast %8 : vector<1x64xf32> to vector<20x64xf32>
    %10 = arith.addf %7, %9 : vector<20x64xf32>
    %cst = arith.constant 0.000000e+00 : f32
    %11 = vector.broadcast %cst : f32 to vector<20x64xf32>
    %12 = arith.maximumf %10, %11 : vector<20x64xf32>
    %c0_6 = arith.constant 0 : index
    %c0_7 = arith.constant 0 : index
    %13 = vector.load %arg4[%c0_6, %c0_7] : memref<64x32xf32, #tpu.memory_space<vmem>>, vector<64x32xf32>
    %cst_8 = arith.constant dense<0.000000e+00> : vector<20x32xf32>
    %14 = tpu.matmul %12, %13, %cst_8 {dimension_numbers = #tpu.dot_dimension_numbers<[1], [0], [0], [1], [0, 0, 1, 1], [], []>} : vector<20x64xf32>, vector<64x32xf32>, vector<20x32xf32> -> vector<20x32xf32>
    %c0_9 = arith.constant 0 : index
    %c0_10 = arith.constant 0 : index
    %15 = vector.load %arg5[%c0_9, %c0_10] : memref<1x32xf32, #tpu.memory_space<vmem>>, vector<1x32xf32>
    %16 = vector.broadcast %15 : vector<1x32xf32> to vector<20x32xf32>
    %17 = arith.addf %14, %16 : vector<20x32xf32>
    %c20_i32 = arith.constant 20 : i32
    %18 = arith.muli %arg0, %c20_i32 : i32
    %19 = tpu.iota {dimensions = array<i32: 0>} : vector<20x32xi32>
    %20 = vector.broadcast %18 : i32 to vector<20x32xi32>
    %21 = arith.addi %20, %19 : vector<20x32xi32>
    %c20_i32_11 = arith.constant 20 : i32
    %22 = vector.broadcast %c20_i32_11 : i32 to vector<20x32xi32>
    %23 = arith.cmpi slt, %21, %22 : vector<20x32xi32>
    %cst_12 = arith.constant 0.000000e+00 : f32
    %24 = vector.broadcast %cst_12 : f32 to vector<20x32xf32>
    %25 = arith.select %23, %17, %24 : vector<20x32xi1>, vector<20x32xf32>
    %c0_13 = arith.constant 0 : index
    %c0_14 = arith.constant 0 : index
    %26 = vector.load %arg6[%c0_13, %c0_14] : memref<1x32xf32, #tpu.memory_space<vmem>>, vector<1x32xf32>
    %cst_15 = arith.constant dense<0.000000e+00> : vector<32xf32>
    %27 = vector.multi_reduction <add>, %25, %cst_15 [0] : vector<20x32xf32> to vector<32xf32>
    %28 = vector.shape_cast %27 : vector<32xf32> to vector<1x32xf32>
    %29 = arith.addf %26, %28 : vector<1x32xf32>
    %c0_16 = arith.constant 0 : index
    %c0_17 = arith.constant 0 : index
    %30 = vector.load %arg6[%c0_16, %c0_17] : memref<1x32xf32, #tpu.memory_space<vmem>>, vector<1x32xf32>
    tpu.vector_store %arg6[%c0_16, %c0_17], %29 {strides = array<i32>} : memref<1x32xf32, #tpu.memory_space<vmem>>, vector<1x32xf32>,
    %c0_i32_18 = arith.constant 0 : i32
    %31 = arith.cmpi eq, %arg0, %c0_i32_18 : i32
    %32 = arith.extui %31 : i1 to i32
    %c0_i32_19 = arith.constant 0 : i32
    %33 = arith.cmpi ne, %32, %c0_i32_19 : i32
    scf.if %33 {
      %c0_20 = arith.constant 0 : index
      %c0_21 = arith.constant 0 : index
      %34 = vector.load %arg6[%c0_20, %c0_21] : memref<1x32xf32, #tpu.memory_space<vmem>>, vector<1x32xf32>
      %cst_22 = arith.constant 5.000000e-02 : f32
      %35 = vector.broadcast %cst_22 : f32 to vector<1x32xf32>
      %36 = arith.mulf %34, %35 : vector<1x32xf32>
      %c0_23 = arith.constant 0 : index
      %c0_24 = arith.constant 0 : index
      %37 = vector.load %arg6[%c0_23, %c0_24] : memref<1x32xf32, #tpu.memory_space<vmem>>, vector<1x32xf32>
      tpu.vector_store %arg6[%c0_23, %c0_24], %36 {strides = array<i32>} : memref<1x32xf32, #tpu.memory_space<vmem>>, vector<1x32xf32>,
    } else {
    }
    return
  }
  func.func @transform_0(%arg0: i32) -> (i32, i32) {
    %c0_i32 = arith.constant 0 : i32
    %c0_i32_0 = arith.constant 0 : i32
    return %arg0, %c0_i32 : i32, i32
  }
  func.func @transform_1(%arg0: i32) -> (i32, i32) {
    %c0_i32 = arith.constant 0 : i32
    %c0_i32_0 = arith.constant 0 : i32
    %c0_i32_1 = arith.constant 0 : i32
    return %c0_i32, %c0_i32_0 : i32, i32
  }
  func.func @transform_2(%arg0: i32) -> (i32, i32) {
    %c0_i32 = arith.constant 0 : i32
    %c0_i32_0 = arith.constant 0 : i32
    %c0_i32_1 = arith.constant 0 : i32
    return %c0_i32, %c0_i32_0 : i32, i32
  }
  func.func @transform_3(%arg0: i32) -> (i32, i32) {
    %c0_i32 = arith.constant 0 : i32
    %c0_i32_0 = arith.constant 0 : i32
    %c0_i32_1 = arith.constant 0 : i32
    return %c0_i32, %c0_i32_0 : i32, i32
  }
  func.func @transform_4(%arg0: i32) -> (i32, i32) {
    %c0_i32 = arith.constant 0 : i32
    %c0_i32_0 = arith.constant 0 : i32
    %c0_i32_1 = arith.constant 0 : i32
    return %c0_i32, %c0_i32_0 : i32, i32
  }
  func.func @transform_5(%arg0: i32) -> (i32, i32) {
    %c0_i32 = arith.constant 0 : i32
    %c0_i32_0 = arith.constant 0 : i32
    %c0_i32_1 = arith.constant 0 : i32
    return %c0_i32, %c0_i32_0 : i32, i32
  }
}

module attributes {stable_mosaic.version = 11 : i64} {
  func.func @_gat_concat_kernel(%arg0: i32, %arg1: i32, %arg2: memref<4x12x128xbf16, #tpu.memory_space<vmem>>, %arg3: memref<1x12x128xbf16, #tpu.memory_space<vmem>>, %arg4: memref<1x1x128xf32, #tpu.memory_space<vmem>>, %arg5: memref<1x1x128xf32, #tpu.memory_space<vmem>>, %arg6: memref<12x12xbf16, #tpu.memory_space<vmem>>, %arg7: memref<1x1x128xf32, #tpu.memory_space<vmem>>, %arg8: memref<12x128xbf16, #tpu.memory_space<vmem>>) attributes {dimension_semantics = [#tpu.dimension_semantics<parallel>, #tpu.dimension_semantics<arbitrary>], iteration_bounds = array<i64: 1, 4>, scalar_prefetch = 0 : i64, scratch_operands = 0 : i64, tpu.core_type = #tpu.core_type<tc>, window_params = [{pipeline_mode = #tpu.pipeline_mode<synchronous>, transform_indices = @transform_0, window_bounds = array<i64: 4, 12, 128>}, {transform_indices = @transform_1, window_bounds = array<i64: 1, 12, 128>}, {transform_indices = @transform_2, window_bounds = array<i64: 1, 1, 128>}, {transform_indices = @transform_3, window_bounds = array<i64: 1, 1, 128>}, {transform_indices = @transform_4, window_bounds = array<i64: 12, 12>}, {transform_indices = @transform_5, window_bounds = array<i64: 1, 1, 128>}, {transform_indices = @transform_6, window_bounds = array<i64: 12, 128>}]} {
    %0 = arith.index_cast %arg1 : i32 to index
    %c0 = arith.constant 0 : index
    %c0_0 = arith.constant 0 : index
    %1 = vector.load %arg2[%0, %c0, %c0_0] : memref<4x12x128xbf16, #tpu.memory_space<vmem>>, vector<1x12x128xbf16>
    %2 = vector.shape_cast %1 : vector<1x12x128xbf16> to vector<12x128xbf16>
    %c0_1 = arith.constant 0 : index
    %c0_2 = arith.constant 0 : index
    %c0_3 = arith.constant 0 : index
    %3 = vector.load %arg3[%c0_1, %c0_2, %c0_3] : memref<1x12x128xbf16, #tpu.memory_space<vmem>>, vector<1x12x128xbf16>
    %4 = vector.shape_cast %3 : vector<1x12x128xbf16> to vector<12x128xbf16>
    %c0_4 = arith.constant 0 : index
    %c0_5 = arith.constant 0 : index
    %c0_6 = arith.constant 0 : index
    %5 = vector.load %arg4[%c0_4, %c0_5, %c0_6] : memref<1x1x128xf32, #tpu.memory_space<vmem>>, vector<1x1x128xf32>
    %6 = vector.shape_cast %5 : vector<1x1x128xf32> to vector<1x128xf32>
    %c0_7 = arith.constant 0 : index
    %c0_8 = arith.constant 0 : index
    %c0_9 = arith.constant 0 : index
    %7 = vector.load %arg5[%c0_7, %c0_8, %c0_9] : memref<1x1x128xf32, #tpu.memory_space<vmem>>, vector<1x1x128xf32>
    %8 = vector.shape_cast %7 : vector<1x1x128xf32> to vector<1x128xf32>
    %c0_10 = arith.constant 0 : index
    %c0_11 = arith.constant 0 : index
    %9 = vector.load %arg6[%c0_10, %c0_11] : memref<12x12xbf16, #tpu.memory_space<vmem>>, vector<12x12xbf16>
    %10 = arith.extf %4 : vector<12x128xbf16> to vector<12x128xf32>
    %11 = vector.broadcast %8 : vector<1x128xf32> to vector<12x128xf32>
    %12 = arith.mulf %10, %11 : vector<12x128xf32>
    %cst = arith.constant dense<0.000000e+00> : vector<12xf32>
    %13 = vector.multi_reduction <add>, %12, %cst [1] : vector<12x128xf32> to vector<12xf32>
    %14 = vector.shape_cast %13 : vector<12xf32> to vector<12x1xf32>
    %15 = arith.truncf %6 : vector<1x128xf32> to vector<1x128xbf16>
    %cst_12 = arith.constant dense<0.000000e+00> : vector<1x12xf32>
    %16 = tpu.matmul %15, %2, %cst_12 {dimension_numbers = #tpu.dot_dimension_numbers<[1], [1], [0], [0], [0, 0, 1, 0], [], []>} : vector<1x128xbf16>, vector<12x128xbf16>, vector<1x12xf32> -> vector<1x12xf32>
    %17 = vector.broadcast %14 : vector<12x1xf32> to vector<12x12xf32>
    %18 = vector.broadcast %16 : vector<1x12xf32> to vector<12x12xf32>
    %19 = arith.addf %17, %18 : vector<12x12xf32>
    %cst_13 = arith.constant 0.000000e+00 : f32
    %20 = vector.broadcast %cst_13 : f32 to vector<12x12xf32>
    %21 = arith.cmpf ogt, %19, %20 : vector<12x12xf32>
    %cst_14 = arith.constant 2.000000e-01 : f32
    %22 = vector.broadcast %cst_14 : f32 to vector<12x12xf32>
    %23 = arith.mulf %22, %19 : vector<12x12xf32>
    %24 = arith.select %21, %19, %23 : vector<12x12xi1>, vector<12x12xf32>
    %cst_15 = arith.constant dense<0xFF800000> : vector<12xf32>
    %25 = vector.multi_reduction <maximumf>, %24, %cst_15 [1] : vector<12x12xf32> to vector<12xf32>
    %26 = vector.shape_cast %25 : vector<12xf32> to vector<12x1xf32>
    %27 = arith.extf %9 : vector<12x12xbf16> to vector<12x12xf32>
    %28 = vector.broadcast %26 : vector<12x1xf32> to vector<12x12xf32>
    %29 = arith.subf %24, %28 : vector<12x12xf32>
    %30 = math.exp %29 : vector<12x12xf32>
    %31 = arith.mulf %27, %30 : vector<12x12xf32>
    %cst_16 = arith.constant dense<0.000000e+00> : vector<12xf32>
    %32 = vector.multi_reduction <add>, %31, %cst_16 [1] : vector<12x12xf32> to vector<12xf32>
    %33 = vector.shape_cast %32 : vector<12xf32> to vector<12x1xf32>
    %34 = arith.truncf %31 : vector<12x12xf32> to vector<12x12xbf16>
    %cst_17 = arith.constant dense<0.000000e+00> : vector<12x128xf32>
    %35 = tpu.matmul %34, %2, %cst_17 {dimension_numbers = #tpu.dot_dimension_numbers<[1], [0], [0], [1], [0, 0, 1, 1], [], []>} : vector<12x12xbf16>, vector<12x128xbf16>, vector<12x128xf32> -> vector<12x128xf32>
    %36 = tpu.reciprocal %33 : vector<12x1xf32> -> vector<12x1xf32>
    %37 = vector.broadcast %36 : vector<12x1xf32> to vector<12x128xf32>
    %38 = arith.mulf %35, %37 : vector<12x128xf32>
    %c0_18 = arith.constant 0 : index
    %c0_19 = arith.constant 0 : index
    %c0_20 = arith.constant 0 : index
    %39 = vector.load %arg7[%c0_18, %c0_19, %c0_20] : memref<1x1x128xf32, #tpu.memory_space<vmem>>, vector<1x1x128xf32>
    %40 = vector.shape_cast %39 : vector<1x1x128xf32> to vector<1x128xf32>
    %41 = vector.broadcast %40 : vector<1x128xf32> to vector<12x128xf32>
    %42 = arith.addf %38, %41 : vector<12x128xf32>
    %cst_21 = arith.constant 0.000000e+00 : f32
    %43 = vector.broadcast %cst_21 : f32 to vector<12x128xf32>
    %44 = arith.maximumf %42, %43 : vector<12x128xf32>
    %45 = arith.truncf %44 : vector<12x128xf32> to vector<12x128xbf16>
    %c0_22 = arith.constant 0 : index
    %c0_23 = arith.constant 0 : index
    %46 = vector.load %arg8[%c0_22, %c0_23] : memref<12x128xbf16, #tpu.memory_space<vmem>>, vector<12x128xbf16>
    tpu.vector_store %arg8[%c0_22, %c0_23], %45 {strides = array<i32>} : memref<12x128xbf16, #tpu.memory_space<vmem>>, vector<12x128xbf16>,
    return
  }
  func.func @transform_0(%arg0: i32, %arg1: i32) -> (i32, i32, i32) {
    %c0_i32 = arith.constant 0 : i32
    %c0_i32_0 = arith.constant 0 : i32
    %c0_i32_1 = arith.constant 0 : i32
    %c0_i32_2 = arith.constant 0 : i32
    return %c0_i32, %c0_i32_0, %c0_i32_1 : i32, i32, i32
  }
  func.func @transform_1(%arg0: i32, %arg1: i32) -> (i32, i32, i32) {
    %c0_i32 = arith.constant 0 : i32
    %c0_i32_0 = arith.constant 0 : i32
    return %arg1, %arg0, %c0_i32 : i32, i32, i32
  }
  func.func @transform_2(%arg0: i32, %arg1: i32) -> (i32, i32, i32) {
    %c0_i32 = arith.constant 0 : i32
    %c0_i32_0 = arith.constant 0 : i32
    %c0_i32_1 = arith.constant 0 : i32
    return %arg1, %c0_i32, %c0_i32_0 : i32, i32, i32
  }
  func.func @transform_3(%arg0: i32, %arg1: i32) -> (i32, i32, i32) {
    %c0_i32 = arith.constant 0 : i32
    %c0_i32_0 = arith.constant 0 : i32
    %c0_i32_1 = arith.constant 0 : i32
    return %arg1, %c0_i32, %c0_i32_0 : i32, i32, i32
  }
  func.func @transform_4(%arg0: i32, %arg1: i32) -> (i32, i32) {
    %c0_i32 = arith.constant 0 : i32
    %c0_i32_0 = arith.constant 0 : i32
    return %arg0, %c0_i32 : i32, i32
  }
  func.func @transform_5(%arg0: i32, %arg1: i32) -> (i32, i32, i32) {
    %c0_i32 = arith.constant 0 : i32
    %c0_i32_0 = arith.constant 0 : i32
    %c0_i32_1 = arith.constant 0 : i32
    return %arg1, %c0_i32, %c0_i32_0 : i32, i32, i32
  }
  func.func @transform_6(%arg0: i32, %arg1: i32) -> (i32, i32) {
    %c0_i32 = arith.constant 0 : i32
    return %arg0, %arg1 : i32, i32
  }
}

module attributes {stable_mosaic.version = 11 : i64} {
  func.func @_proj_kernel(%arg0: i32, %arg1: i32, %arg2: i32, %arg3: memref<12x512xbf16, #tpu.memory_space<vmem>>, %arg4: memref<512x128xbf16, #tpu.memory_space<vmem>>, %arg5: memref<1x12x128xbf16, #tpu.memory_space<vmem>>, %arg6: memref<12x128xf32, #tpu.memory_space<vmem>>) attributes {dimension_semantics = [#tpu.dimension_semantics<parallel>, #tpu.dimension_semantics<parallel>, #tpu.dimension_semantics<arbitrary>], iteration_bounds = array<i64: 1, 4, 1>, scalar_prefetch = 0 : i64, scratch_operands = 1 : i64, tpu.core_type = #tpu.core_type<tc>, window_params = [{transform_indices = @transform_0, window_bounds = array<i64: 12, 512>}, {transform_indices = @transform_1, window_bounds = array<i64: 512, 128>}, {transform_indices = @transform_2, window_bounds = array<i64: 1, 12, 128>}]} {
    %c0_i32 = arith.constant 0 : i32
    %0 = arith.cmpi eq, %arg2, %c0_i32 : i32
    %1 = arith.extui %0 : i1 to i32
    %c0_i32_0 = arith.constant 0 : i32
    %2 = arith.cmpi ne, %1, %c0_i32_0 : i32
    scf.if %2 {
      %cst_10 = arith.constant 0.000000e+00 : f32
      %12 = vector.broadcast %cst_10 : f32 to vector<12x128xf32>
      %c0_11 = arith.constant 0 : index
      %c0_12 = arith.constant 0 : index
      %13 = vector.load %arg6[%c0_11, %c0_12] : memref<12x128xf32, #tpu.memory_space<vmem>>, vector<12x128xf32>
      tpu.vector_store %arg6[%c0_11, %c0_12], %12 {strides = array<i32>} : memref<12x128xf32, #tpu.memory_space<vmem>>, vector<12x128xf32>,
    } else {
    }
    %c0 = arith.constant 0 : index
    %c0_1 = arith.constant 0 : index
    %3 = vector.load %arg6[%c0, %c0_1] : memref<12x128xf32, #tpu.memory_space<vmem>>, vector<12x128xf32>
    %c0_2 = arith.constant 0 : index
    %c0_3 = arith.constant 0 : index
    %4 = vector.load %arg3[%c0_2, %c0_3] : memref<12x512xbf16, #tpu.memory_space<vmem>>, vector<12x512xbf16>
    %c0_4 = arith.constant 0 : index
    %c0_5 = arith.constant 0 : index
    %5 = vector.load %arg4[%c0_4, %c0_5] : memref<512x128xbf16, #tpu.memory_space<vmem>>, vector<512x128xbf16>
    %cst = arith.constant dense<0.000000e+00> : vector<12x128xf32>
    %6 = tpu.matmul %4, %5, %cst {dimension_numbers = #tpu.dot_dimension_numbers<[1], [0], [0], [1], [0, 0, 1, 1], [], []>} : vector<12x512xbf16>, vector<512x128xbf16>, vector<12x128xf32> -> vector<12x128xf32>
    %7 = arith.addf %3, %6 : vector<12x128xf32>
    %c0_6 = arith.constant 0 : index
    %c0_7 = arith.constant 0 : index
    %8 = vector.load %arg6[%c0_6, %c0_7] : memref<12x128xf32, #tpu.memory_space<vmem>>, vector<12x128xf32>
    tpu.vector_store %arg6[%c0_6, %c0_7], %7 {strides = array<i32>} : memref<12x128xf32, #tpu.memory_space<vmem>>, vector<12x128xf32>,
    %c0_i32_8 = arith.constant 0 : i32
    %9 = arith.cmpi eq, %arg2, %c0_i32_8 : i32
    %10 = arith.extui %9 : i1 to i32
    %c0_i32_9 = arith.constant 0 : i32
    %11 = arith.cmpi ne, %10, %c0_i32_9 : i32
    scf.if %11 {
      %c0_10 = arith.constant 0 : index
      %c0_11 = arith.constant 0 : index
      %12 = vector.load %arg6[%c0_10, %c0_11] : memref<12x128xf32, #tpu.memory_space<vmem>>, vector<12x128xf32>
      %13 = arith.truncf %12 : vector<12x128xf32> to vector<12x128xbf16>
      %c0_12 = arith.constant 0 : index
      %c0_13 = arith.constant 0 : index
      %c0_14 = arith.constant 0 : index
      %14 = vector.load %arg5[%c0_12, %c0_13, %c0_14] : memref<1x12x128xbf16, #tpu.memory_space<vmem>>, vector<1x12x128xbf16>
      %15 = vector.shape_cast %14 : vector<1x12x128xbf16> to vector<12x128xbf16>
      %16 = vector.shape_cast %13 : vector<12x128xbf16> to vector<1x12x128xbf16>
      tpu.vector_store %arg5[%c0_12, %c0_13, %c0_14], %16 {strides = array<i32>} : memref<1x12x128xbf16, #tpu.memory_space<vmem>>, vector<1x12x128xbf16>,
    } else {
    }
    return
  }
  func.func @transform_0(%arg0: i32, %arg1: i32, %arg2: i32) -> (i32, i32) {
    %c0_i32 = arith.constant 0 : i32
    return %arg0, %arg2 : i32, i32
  }
  func.func @transform_1(%arg0: i32, %arg1: i32, %arg2: i32) -> (i32, i32) {
    %c0_i32 = arith.constant 0 : i32
    return %arg2, %arg1 : i32, i32
  }
  func.func @transform_2(%arg0: i32, %arg1: i32, %arg2: i32) -> (i32, i32, i32) {
    %c0_i32 = arith.constant 0 : i32
    %c0_i32_0 = arith.constant 0 : i32
    return %arg1, %arg0, %c0_i32 : i32, i32, i32
  }
}

module attributes {stable_mosaic.version = 11 : i64} {
  func.func @_proj_kernel(%arg0: i32, %arg1: i32, %arg2: i32, %arg3: memref<12x512xbf16, #tpu.memory_space<vmem>>, %arg4: memref<512x128xbf16, #tpu.memory_space<vmem>>, %arg5: memref<1x12x128xbf16, #tpu.memory_space<vmem>>, %arg6: memref<12x128xf32, #tpu.memory_space<vmem>>) attributes {dimension_semantics = [#tpu.dimension_semantics<parallel>, #tpu.dimension_semantics<parallel>, #tpu.dimension_semantics<arbitrary>], iteration_bounds = array<i64: 1, 1, 1>, scalar_prefetch = 0 : i64, scratch_operands = 1 : i64, tpu.core_type = #tpu.core_type<tc>, window_params = [{transform_indices = @transform_0, window_bounds = array<i64: 12, 512>}, {transform_indices = @transform_1, window_bounds = array<i64: 512, 128>}, {transform_indices = @transform_2, window_bounds = array<i64: 1, 12, 128>}]} {
    %c0_i32 = arith.constant 0 : i32
    %0 = arith.cmpi eq, %arg2, %c0_i32 : i32
    %1 = arith.extui %0 : i1 to i32
    %c0_i32_0 = arith.constant 0 : i32
    %2 = arith.cmpi ne, %1, %c0_i32_0 : i32
    scf.if %2 {
      %cst_10 = arith.constant 0.000000e+00 : f32
      %12 = vector.broadcast %cst_10 : f32 to vector<12x128xf32>
      %c0_11 = arith.constant 0 : index
      %c0_12 = arith.constant 0 : index
      %13 = vector.load %arg6[%c0_11, %c0_12] : memref<12x128xf32, #tpu.memory_space<vmem>>, vector<12x128xf32>
      tpu.vector_store %arg6[%c0_11, %c0_12], %12 {strides = array<i32>} : memref<12x128xf32, #tpu.memory_space<vmem>>, vector<12x128xf32>,
    } else {
    }
    %c0 = arith.constant 0 : index
    %c0_1 = arith.constant 0 : index
    %3 = vector.load %arg6[%c0, %c0_1] : memref<12x128xf32, #tpu.memory_space<vmem>>, vector<12x128xf32>
    %c0_2 = arith.constant 0 : index
    %c0_3 = arith.constant 0 : index
    %4 = vector.load %arg3[%c0_2, %c0_3] : memref<12x512xbf16, #tpu.memory_space<vmem>>, vector<12x512xbf16>
    %c0_4 = arith.constant 0 : index
    %c0_5 = arith.constant 0 : index
    %5 = vector.load %arg4[%c0_4, %c0_5] : memref<512x128xbf16, #tpu.memory_space<vmem>>, vector<512x128xbf16>
    %cst = arith.constant dense<0.000000e+00> : vector<12x128xf32>
    %6 = tpu.matmul %4, %5, %cst {dimension_numbers = #tpu.dot_dimension_numbers<[1], [0], [0], [1], [0, 0, 1, 1], [], []>} : vector<12x512xbf16>, vector<512x128xbf16>, vector<12x128xf32> -> vector<12x128xf32>
    %7 = arith.addf %3, %6 : vector<12x128xf32>
    %c0_6 = arith.constant 0 : index
    %c0_7 = arith.constant 0 : index
    %8 = vector.load %arg6[%c0_6, %c0_7] : memref<12x128xf32, #tpu.memory_space<vmem>>, vector<12x128xf32>
    tpu.vector_store %arg6[%c0_6, %c0_7], %7 {strides = array<i32>} : memref<12x128xf32, #tpu.memory_space<vmem>>, vector<12x128xf32>,
    %c0_i32_8 = arith.constant 0 : i32
    %9 = arith.cmpi eq, %arg2, %c0_i32_8 : i32
    %10 = arith.extui %9 : i1 to i32
    %c0_i32_9 = arith.constant 0 : i32
    %11 = arith.cmpi ne, %10, %c0_i32_9 : i32
    scf.if %11 {
      %c0_10 = arith.constant 0 : index
      %c0_11 = arith.constant 0 : index
      %12 = vector.load %arg6[%c0_10, %c0_11] : memref<12x128xf32, #tpu.memory_space<vmem>>, vector<12x128xf32>
      %13 = arith.truncf %12 : vector<12x128xf32> to vector<12x128xbf16>
      %c0_12 = arith.constant 0 : index
      %c0_13 = arith.constant 0 : index
      %c0_14 = arith.constant 0 : index
      %14 = vector.load %arg5[%c0_12, %c0_13, %c0_14] : memref<1x12x128xbf16, #tpu.memory_space<vmem>>, vector<1x12x128xbf16>
      %15 = vector.shape_cast %14 : vector<1x12x128xbf16> to vector<12x128xbf16>
      %16 = vector.shape_cast %13 : vector<12x128xbf16> to vector<1x12x128xbf16>
      tpu.vector_store %arg5[%c0_12, %c0_13, %c0_14], %16 {strides = array<i32>} : memref<1x12x128xbf16, #tpu.memory_space<vmem>>, vector<1x12x128xbf16>,
    } else {
    }
    return
  }
  func.func @transform_0(%arg0: i32, %arg1: i32, %arg2: i32) -> (i32, i32) {
    %c0_i32 = arith.constant 0 : i32
    return %arg0, %arg2 : i32, i32
  }
  func.func @transform_1(%arg0: i32, %arg1: i32, %arg2: i32) -> (i32, i32) {
    %c0_i32 = arith.constant 0 : i32
    return %arg2, %arg1 : i32, i32
  }
  func.func @transform_2(%arg0: i32, %arg1: i32, %arg2: i32) -> (i32, i32, i32) {
    %c0_i32 = arith.constant 0 : i32
    %c0_i32_0 = arith.constant 0 : i32
    return %arg1, %arg0, %c0_i32 : i32, i32, i32
  }
}

module attributes {stable_mosaic.version = 11 : i64} {
  func.func @_gat_mean_kernel(%arg0: i32, %arg1: i32, %arg2: memref<4x12x32xbf16, #tpu.memory_space<vmem>>, %arg3: memref<1x12x32xbf16, #tpu.memory_space<vmem>>, %arg4: memref<1x1x32xf32, #tpu.memory_space<vmem>>, %arg5: memref<1x1x32xf32, #tpu.memory_space<vmem>>, %arg6: memref<12x12xbf16, #tpu.memory_space<vmem>>, %arg7: memref<1x32xf32, #tpu.memory_space<vmem>>, %arg8: memref<12x32xf32, #tpu.memory_space<vmem>>, %arg9: memref<12x32xf32, #tpu.memory_space<vmem>>) attributes {dimension_semantics = [#tpu.dimension_semantics<parallel>, #tpu.dimension_semantics<arbitrary>], iteration_bounds = array<i64: 1, 4>, scalar_prefetch = 0 : i64, scratch_operands = 1 : i64, tpu.core_type = #tpu.core_type<tc>, window_params = [{pipeline_mode = #tpu.pipeline_mode<synchronous>, transform_indices = @transform_0, window_bounds = array<i64: 4, 12, 32>}, {transform_indices = @transform_1, window_bounds = array<i64: 1, 12, 32>}, {transform_indices = @transform_2, window_bounds = array<i64: 1, 1, 32>}, {transform_indices = @transform_3, window_bounds = array<i64: 1, 1, 32>}, {transform_indices = @transform_4, window_bounds = array<i64: 12, 12>}, {pipeline_mode = #tpu.pipeline_mode<synchronous>, transform_indices = @transform_5, window_bounds = array<i64: 1, 32>}, {transform_indices = @transform_6, window_bounds = array<i64: 12, 32>}]} {
    %c0_i32 = arith.constant 0 : i32
    %0 = arith.cmpi eq, %arg1, %c0_i32 : i32
    %1 = arith.extui %0 : i1 to i32
    %c0_i32_0 = arith.constant 0 : i32
    %2 = arith.cmpi ne, %1, %c0_i32_0 : i32
    scf.if %2 {
      %cst_24 = arith.constant 0.000000e+00 : f32
      %48 = vector.broadcast %cst_24 : f32 to vector<12x32xf32>
      %c0_25 = arith.constant 0 : index
      %c0_26 = arith.constant 0 : index
      %49 = vector.load %arg9[%c0_25, %c0_26] : memref<12x32xf32, #tpu.memory_space<vmem>>, vector<12x32xf32>
      tpu.vector_store %arg9[%c0_25, %c0_26], %48 {strides = array<i32>} : memref<12x32xf32, #tpu.memory_space<vmem>>, vector<12x32xf32>,
    } else {
    }
    %c0 = arith.constant 0 : index
    %c0_1 = arith.constant 0 : index
    %3 = vector.load %arg9[%c0, %c0_1] : memref<12x32xf32, #tpu.memory_space<vmem>>, vector<12x32xf32>
    %4 = arith.index_cast %arg1 : i32 to index
    %c0_2 = arith.constant 0 : index
    %c0_3 = arith.constant 0 : index
    %5 = vector.load %arg2[%4, %c0_2, %c0_3] : memref<4x12x32xbf16, #tpu.memory_space<vmem>>, vector<1x12x32xbf16>
    %6 = vector.shape_cast %5 : vector<1x12x32xbf16> to vector<12x32xbf16>
    %c0_4 = arith.constant 0 : index
    %c0_5 = arith.constant 0 : index
    %c0_6 = arith.constant 0 : index
    %7 = vector.load %arg3[%c0_4, %c0_5, %c0_6] : memref<1x12x32xbf16, #tpu.memory_space<vmem>>, vector<1x12x32xbf16>
    %8 = vector.shape_cast %7 : vector<1x12x32xbf16> to vector<12x32xbf16>
    %c0_7 = arith.constant 0 : index
    %c0_8 = arith.constant 0 : index
    %c0_9 = arith.constant 0 : index
    %9 = vector.load %arg4[%c0_7, %c0_8, %c0_9] : memref<1x1x32xf32, #tpu.memory_space<vmem>>, vector<1x1x32xf32>
    %10 = vector.shape_cast %9 : vector<1x1x32xf32> to vector<1x32xf32>
    %c0_10 = arith.constant 0 : index
    %c0_11 = arith.constant 0 : index
    %c0_12 = arith.constant 0 : index
    %11 = vector.load %arg5[%c0_10, %c0_11, %c0_12] : memref<1x1x32xf32, #tpu.memory_space<vmem>>, vector<1x1x32xf32>
    %12 = vector.shape_cast %11 : vector<1x1x32xf32> to vector<1x32xf32>
    %c0_13 = arith.constant 0 : index
    %c0_14 = arith.constant 0 : index
    %13 = vector.load %arg6[%c0_13, %c0_14] : memref<12x12xbf16, #tpu.memory_space<vmem>>, vector<12x12xbf16>
    %14 = arith.extf %8 : vector<12x32xbf16> to vector<12x32xf32>
    %15 = vector.broadcast %12 : vector<1x32xf32> to vector<12x32xf32>
    %16 = arith.mulf %14, %15 : vector<12x32xf32>
    %cst = arith.constant dense<0.000000e+00> : vector<12xf32>
    %17 = vector.multi_reduction <add>, %16, %cst [1] : vector<12x32xf32> to vector<12xf32>
    %18 = vector.shape_cast %17 : vector<12xf32> to vector<12x1xf32>
    %19 = arith.truncf %10 : vector<1x32xf32> to vector<1x32xbf16>
    %cst_15 = arith.constant dense<0.000000e+00> : vector<1x12xf32>
    %20 = tpu.matmul %19, %6, %cst_15 {dimension_numbers = #tpu.dot_dimension_numbers<[1], [1], [0], [0], [0, 0, 1, 0], [], []>} : vector<1x32xbf16>, vector<12x32xbf16>, vector<1x12xf32> -> vector<1x12xf32>
    %21 = vector.broadcast %18 : vector<12x1xf32> to vector<12x12xf32>
    %22 = vector.broadcast %20 : vector<1x12xf32> to vector<12x12xf32>
    %23 = arith.addf %21, %22 : vector<12x12xf32>
    %cst_16 = arith.constant 0.000000e+00 : f32
    %24 = vector.broadcast %cst_16 : f32 to vector<12x12xf32>
    %25 = arith.cmpf ogt, %23, %24 : vector<12x12xf32>
    %cst_17 = arith.constant 2.000000e-01 : f32
    %26 = vector.broadcast %cst_17 : f32 to vector<12x12xf32>
    %27 = arith.mulf %26, %23 : vector<12x12xf32>
    %28 = arith.select %25, %23, %27 : vector<12x12xi1>, vector<12x12xf32>
    %cst_18 = arith.constant dense<0xFF800000> : vector<12xf32>
    %29 = vector.multi_reduction <maximumf>, %28, %cst_18 [1] : vector<12x12xf32> to vector<12xf32>
    %30 = vector.shape_cast %29 : vector<12xf32> to vector<12x1xf32>
    %31 = arith.extf %13 : vector<12x12xbf16> to vector<12x12xf32>
    %32 = vector.broadcast %30 : vector<12x1xf32> to vector<12x12xf32>
    %33 = arith.subf %28, %32 : vector<12x12xf32>
    %34 = math.exp %33 : vector<12x12xf32>
    %35 = arith.mulf %31, %34 : vector<12x12xf32>
    %cst_19 = arith.constant dense<0.000000e+00> : vector<12xf32>
    %36 = vector.multi_reduction <add>, %35, %cst_19 [1] : vector<12x12xf32> to vector<12xf32>
    %37 = vector.shape_cast %36 : vector<12xf32> to vector<12x1xf32>
    %38 = arith.truncf %35 : vector<12x12xf32> to vector<12x12xbf16>
    %cst_20 = arith.constant dense<0.000000e+00> : vector<12x32xf32>
    %39 = tpu.matmul %38, %6, %cst_20 {dimension_numbers = #tpu.dot_dimension_numbers<[1], [0], [0], [1], [0, 0, 1, 1], [], []>} : vector<12x12xbf16>, vector<12x32xbf16>, vector<12x32xf32> -> vector<12x32xf32>
    %40 = tpu.reciprocal %37 : vector<12x1xf32> -> vector<12x1xf32>
    %41 = vector.broadcast %40 : vector<12x1xf32> to vector<12x32xf32>
    %42 = arith.mulf %39, %41 : vector<12x32xf32>
    %43 = arith.addf %3, %42 : vector<12x32xf32>
    %c0_21 = arith.constant 0 : index
    %c0_22 = arith.constant 0 : index
    %44 = vector.load %arg9[%c0_21, %c0_22] : memref<12x32xf32, #tpu.memory_space<vmem>>, vector<12x32xf32>
    tpu.vector_store %arg9[%c0_21, %c0_22], %43 {strides = array<i32>} : memref<12x32xf32, #tpu.memory_space<vmem>>, vector<12x32xf32>,
    %c3_i32 = arith.constant 3 : i32
    %45 = arith.cmpi eq, %arg1, %c3_i32 : i32
    %46 = arith.extui %45 : i1 to i32
    %c0_i32_23 = arith.constant 0 : i32
    %47 = arith.cmpi ne, %46, %c0_i32_23 : i32
    scf.if %47 {
      %c0_24 = arith.constant 0 : index
      %c0_25 = arith.constant 0 : index
      %48 = vector.load %arg9[%c0_24, %c0_25] : memref<12x32xf32, #tpu.memory_space<vmem>>, vector<12x32xf32>
      %cst_26 = arith.constant 2.500000e-01 : f32
      %49 = vector.broadcast %cst_26 : f32 to vector<12x32xf32>
      %50 = arith.mulf %48, %49 : vector<12x32xf32>
      %c0_27 = arith.constant 0 : index
      %c0_28 = arith.constant 0 : index
      %51 = vector.load %arg7[%c0_27, %c0_28] : memref<1x32xf32, #tpu.memory_space<vmem>>, vector<1x32xf32>
      %52 = vector.broadcast %51 : vector<1x32xf32> to vector<12x32xf32>
      %53 = arith.addf %50, %52 : vector<12x32xf32>
      %cst_29 = arith.constant 0.000000e+00 : f32
      %54 = vector.broadcast %cst_29 : f32 to vector<12x32xf32>
      %55 = arith.maximumf %53, %54 : vector<12x32xf32>
      %c0_30 = arith.constant 0 : index
      %c0_31 = arith.constant 0 : index
      %56 = vector.load %arg8[%c0_30, %c0_31] : memref<12x32xf32, #tpu.memory_space<vmem>>, vector<12x32xf32>
      tpu.vector_store %arg8[%c0_30, %c0_31], %55 {strides = array<i32>} : memref<12x32xf32, #tpu.memory_space<vmem>>, vector<12x32xf32>,
    } else {
    }
    return
  }
  func.func @transform_0(%arg0: i32, %arg1: i32) -> (i32, i32, i32) {
    %c0_i32 = arith.constant 0 : i32
    %c0_i32_0 = arith.constant 0 : i32
    %c0_i32_1 = arith.constant 0 : i32
    %c0_i32_2 = arith.constant 0 : i32
    return %c0_i32, %c0_i32_0, %c0_i32_1 : i32, i32, i32
  }
  func.func @transform_1(%arg0: i32, %arg1: i32) -> (i32, i32, i32) {
    %c0_i32 = arith.constant 0 : i32
    %c0_i32_0 = arith.constant 0 : i32
    return %arg1, %arg0, %c0_i32 : i32, i32, i32
  }
  func.func @transform_2(%arg0: i32, %arg1: i32) -> (i32, i32, i32) {
    %c0_i32 = arith.constant 0 : i32
    %c0_i32_0 = arith.constant 0 : i32
    %c0_i32_1 = arith.constant 0 : i32
    return %arg1, %c0_i32, %c0_i32_0 : i32, i32, i32
  }
  func.func @transform_3(%arg0: i32, %arg1: i32) -> (i32, i32, i32) {
    %c0_i32 = arith.constant 0 : i32
    %c0_i32_0 = arith.constant 0 : i32
    %c0_i32_1 = arith.constant 0 : i32
    return %arg1, %c0_i32, %c0_i32_0 : i32, i32, i32
  }
  func.func @transform_4(%arg0: i32, %arg1: i32) -> (i32, i32) {
    %c0_i32 = arith.constant 0 : i32
    %c0_i32_0 = arith.constant 0 : i32
    return %arg0, %c0_i32 : i32, i32
  }
  func.func @transform_5(%arg0: i32, %arg1: i32) -> (i32, i32) {
    %c0_i32 = arith.constant 0 : i32
    %c0_i32_0 = arith.constant 0 : i32
    %c0_i32_1 = arith.constant 0 : i32
    return %c0_i32, %c0_i32_0 : i32, i32
  }
  func.func @transform_6(%arg0: i32, %arg1: i32) -> (i32, i32) {
    %c0_i32 = arith.constant 0 : i32
    %c0_i32_0 = arith.constant 0 : i32
    return %arg0, %c0_i32 : i32, i32
  }
}

module attributes {stable_mosaic.version = 11 : i64} {
  func.func @_tail_kernel(%arg0: i32, %arg1: memref<12x12xbf16, #tpu.memory_space<vmem>>, %arg2: memref<12x32xf32, #tpu.memory_space<vmem>>, %arg3: memref<12x16xf32, #tpu.memory_space<vmem>>, %arg4: memref<1x32xf32, #tpu.memory_space<vmem>>, %arg5: memref<16x32xf32, #tpu.memory_space<vmem>>, %arg6: memref<1x32xf32, #tpu.memory_space<vmem>>, %arg7: memref<32x32xf32, #tpu.memory_space<vmem>>, %arg8: memref<32x32xf32, #tpu.memory_space<vmem>>, %arg9: memref<1x32xf32, #tpu.memory_space<vmem>>, %arg10: memref<32x32xf32, #tpu.memory_space<vmem>>, %arg11: memref<1x32xf32, #tpu.memory_space<vmem>>, %arg12: memref<1x32xf32, #tpu.memory_space<vmem>>, %arg13: memref<1x32xf32, #tpu.memory_space<vmem>>, %arg14: memref<12x32xf32, #tpu.memory_space<vmem>>) attributes {dimension_semantics = [#tpu.dimension_semantics<parallel>], iteration_bounds = array<i64: 1>, scalar_prefetch = 0 : i64, scratch_operands = 0 : i64, tpu.core_type = #tpu.core_type<tc>, window_params = [{transform_indices = @transform_0, window_bounds = array<i64: 12, 12>}, {pipeline_mode = #tpu.pipeline_mode<synchronous>, transform_indices = @transform_1, window_bounds = array<i64: 12, 32>}, {transform_indices = @transform_2, window_bounds = array<i64: 12, 16>}, {pipeline_mode = #tpu.pipeline_mode<synchronous>, transform_indices = @transform_3, window_bounds = array<i64: 1, 32>}, {pipeline_mode = #tpu.pipeline_mode<synchronous>, transform_indices = @transform_4, window_bounds = array<i64: 16, 32>}, {pipeline_mode = #tpu.pipeline_mode<synchronous>, transform_indices = @transform_5, window_bounds = array<i64: 1, 32>}, {pipeline_mode = #tpu.pipeline_mode<synchronous>, transform_indices = @transform_6, window_bounds = array<i64: 32, 32>}, {pipeline_mode = #tpu.pipeline_mode<synchronous>, transform_indices = @transform_7, window_bounds = array<i64: 32, 32>}, {pipeline_mode = #tpu.pipeline_mode<synchronous>, transform_indices = @transform_8, window_bounds = array<i64: 1, 32>}, {pipeline_mode = #tpu.pipeline_mode<synchronous>, transform_indices = @transform_9, window_bounds = array<i64: 32, 32>}, {pipeline_mode = #tpu.pipeline_mode<synchronous>, transform_indices = @transform_10, window_bounds = array<i64: 1, 32>}, {pipeline_mode = #tpu.pipeline_mode<synchronous>, transform_indices = @transform_11, window_bounds = array<i64: 1, 32>}, {pipeline_mode = #tpu.pipeline_mode<synchronous>, transform_indices = @transform_12, window_bounds = array<i64: 1, 32>}, {transform_indices = @transform_13, window_bounds = array<i64: 12, 32>}]} {
    %c0 = arith.constant 0 : index
    %c0_0 = arith.constant 0 : index
    %0 = vector.load %arg2[%c0, %c0_0] : memref<12x32xf32, #tpu.memory_space<vmem>>, vector<12x32xf32>
    %1 = arith.truncf %0 : vector<12x32xf32> to vector<12x32xbf16>
    %c0_1 = arith.constant 0 : index
    %c0_2 = arith.constant 0 : index
    %2 = vector.load %arg1[%c0_1, %c0_2] : memref<12x12xbf16, #tpu.memory_space<vmem>>, vector<12x12xbf16>
    %cst = arith.constant dense<0.000000e+00> : vector<12x32xf32>
    %3 = tpu.matmul %2, %1, %cst {dimension_numbers = #tpu.dot_dimension_numbers<[1], [0], [0], [1], [0, 0, 1, 1], [], []>} : vector<12x12xbf16>, vector<12x32xbf16>, vector<12x32xf32> -> vector<12x32xf32>
    %c0_3 = arith.constant 0 : index
    %c0_4 = arith.constant 0 : index
    %4 = vector.load %arg3[%c0_3, %c0_4] : memref<12x16xf32, #tpu.memory_space<vmem>>, vector<12x16xf32>
    %c0_5 = arith.constant 0 : index
    %c0_6 = arith.constant 0 : index
    %5 = vector.load %arg5[%c0_5, %c0_6] : memref<16x32xf32, #tpu.memory_space<vmem>>, vector<16x32xf32>
    %cst_7 = arith.constant dense<0.000000e+00> : vector<12x32xf32>
    %6 = tpu.matmul %4, %5, %cst_7 {dimension_numbers = #tpu.dot_dimension_numbers<[1], [0], [0], [1], [0, 0, 1, 1], [], []>} : vector<12x16xf32>, vector<16x32xf32>, vector<12x32xf32> -> vector<12x32xf32>
    %c0_8 = arith.constant 0 : index
    %c0_9 = arith.constant 0 : index
    %7 = vector.load %arg6[%c0_8, %c0_9] : memref<1x32xf32, #tpu.memory_space<vmem>>, vector<1x32xf32>
    %8 = vector.broadcast %7 : vector<1x32xf32> to vector<12x32xf32>
    %9 = arith.addf %6, %8 : vector<12x32xf32>
    %c0_10 = arith.constant 0 : index
    %c0_11 = arith.constant 0 : index
    %10 = vector.load %arg4[%c0_10, %c0_11] : memref<1x32xf32, #tpu.memory_space<vmem>>, vector<1x32xf32>
    %c0_12 = arith.constant 0 : index
    %c0_13 = arith.constant 0 : index
    %11 = vector.load %arg8[%c0_12, %c0_13] : memref<32x32xf32, #tpu.memory_space<vmem>>, vector<32x32xf32>
    %cst_14 = arith.constant dense<0.000000e+00> : vector<1x32xf32>
    %12 = tpu.matmul %10, %11, %cst_14 {dimension_numbers = #tpu.dot_dimension_numbers<[1], [0], [0], [1], [0, 0, 1, 1], [], []>} : vector<1x32xf32>, vector<32x32xf32>, vector<1x32xf32> -> vector<1x32xf32>
    %c0_15 = arith.constant 0 : index
    %c0_16 = arith.constant 0 : index
    %13 = vector.load %arg7[%c0_15, %c0_16] : memref<32x32xf32, #tpu.memory_space<vmem>>, vector<32x32xf32>
    %cst_17 = arith.constant dense<0.000000e+00> : vector<12x32xf32>
    %14 = tpu.matmul %3, %13, %cst_17 {dimension_numbers = #tpu.dot_dimension_numbers<[1], [0], [0], [1], [0, 0, 1, 1], [], []>} : vector<12x32xf32>, vector<32x32xf32>, vector<12x32xf32> -> vector<12x32xf32>
    %15 = vector.broadcast %12 : vector<1x32xf32> to vector<12x32xf32>
    %16 = arith.addf %14, %15 : vector<12x32xf32>
    %c0_18 = arith.constant 0 : index
    %c0_19 = arith.constant 0 : index
    %17 = vector.load %arg9[%c0_18, %c0_19] : memref<1x32xf32, #tpu.memory_space<vmem>>, vector<1x32xf32>
    %18 = vector.broadcast %17 : vector<1x32xf32> to vector<12x32xf32>
    %19 = arith.addf %16, %18 : vector<12x32xf32>
    %cst_20 = arith.constant 0.000000e+00 : f32
    %20 = vector.broadcast %cst_20 : f32 to vector<12x32xf32>
    %21 = arith.maximumf %19, %20 : vector<12x32xf32>
    %c0_21 = arith.constant 0 : index
    %c0_22 = arith.constant 0 : index
    %22 = vector.load %arg10[%c0_21, %c0_22] : memref<32x32xf32, #tpu.memory_space<vmem>>, vector<32x32xf32>
    %cst_23 = arith.constant dense<0.000000e+00> : vector<12x32xf32>
    %23 = tpu.matmul %21, %22, %cst_23 {dimension_numbers = #tpu.dot_dimension_numbers<[1], [0], [0], [1], [0, 0, 1, 1], [], []>} : vector<12x32xf32>, vector<32x32xf32>, vector<12x32xf32> -> vector<12x32xf32>
    %c0_24 = arith.constant 0 : index
    %c0_25 = arith.constant 0 : index
    %24 = vector.load %arg11[%c0_24, %c0_25] : memref<1x32xf32, #tpu.memory_space<vmem>>, vector<1x32xf32>
    %25 = vector.broadcast %24 : vector<1x32xf32> to vector<12x32xf32>
    %26 = arith.addf %23, %25 : vector<12x32xf32>
    %cst_26 = arith.constant dense<0.000000e+00> : vector<12xf32>
    %27 = vector.multi_reduction <add>, %26, %cst_26 [1] : vector<12x32xf32> to vector<12xf32>
    %28 = vector.shape_cast %27 : vector<12xf32> to vector<12x1xf32>
    %cst_27 = arith.constant 3.200000e+01 : f32
    %29 = vector.broadcast %cst_27 : f32 to vector<12x1xf32>
    %30 = arith.divf %28, %29 : vector<12x1xf32>
    %31 = vector.broadcast %30 : vector<12x1xf32> to vector<12x32xf32>
    %32 = arith.subf %26, %31 : vector<12x32xf32>
    %33 = arith.mulf %32, %32 : vector<12x32xf32>
    %cst_28 = arith.constant dense<0.000000e+00> : vector<12xf32>
    %34 = vector.multi_reduction <add>, %33, %cst_28 [1] : vector<12x32xf32> to vector<12xf32>
    %35 = vector.shape_cast %34 : vector<12xf32> to vector<12x1xf32>
    %cst_29 = arith.constant 3.200000e+01 : f32
    %36 = vector.broadcast %cst_29 : f32 to vector<12x1xf32>
    %37 = arith.divf %35, %36 : vector<12x1xf32>
    %38 = vector.broadcast %30 : vector<12x1xf32> to vector<12x32xf32>
    %39 = arith.subf %26, %38 : vector<12x32xf32>
    %cst_30 = arith.constant 9.99999974E-6 : f32
    %40 = vector.broadcast %cst_30 : f32 to vector<12x1xf32>
    %41 = arith.addf %37, %40 : vector<12x1xf32>
    %42 = math.rsqrt %41 : vector<12x1xf32>
    %43 = vector.broadcast %42 : vector<12x1xf32> to vector<12x32xf32>
    %44 = arith.mulf %39, %43 : vector<12x32xf32>
    %c0_31 = arith.constant 0 : index
    %c0_32 = arith.constant 0 : index
    %45 = vector.load %arg12[%c0_31, %c0_32] : memref<1x32xf32, #tpu.memory_space<vmem>>, vector<1x32xf32>
    %46 = vector.broadcast %45 : vector<1x32xf32> to vector<12x32xf32>
    %47 = arith.mulf %44, %46 : vector<12x32xf32>
    %c0_33 = arith.constant 0 : index
    %c0_34 = arith.constant 0 : index
    %48 = vector.load %arg13[%c0_33, %c0_34] : memref<1x32xf32, #tpu.memory_space<vmem>>, vector<1x32xf32>
    %49 = vector.broadcast %48 : vector<1x32xf32> to vector<12x32xf32>
    %50 = arith.addf %47, %49 : vector<12x32xf32>
    %51 = arith.addf %50, %9 : vector<12x32xf32>
    %c0_35 = arith.constant 0 : index
    %c0_36 = arith.constant 0 : index
    %52 = vector.load %arg14[%c0_35, %c0_36] : memref<12x32xf32, #tpu.memory_space<vmem>>, vector<12x32xf32>
    tpu.vector_store %arg14[%c0_35, %c0_36], %51 {strides = array<i32>} : memref<12x32xf32, #tpu.memory_space<vmem>>, vector<12x32xf32>,
    return
  }
  func.func @transform_0(%arg0: i32) -> (i32, i32) {
    %c0_i32 = arith.constant 0 : i32
    %c0_i32_0 = arith.constant 0 : i32
    return %arg0, %c0_i32 : i32, i32
  }
  func.func @transform_1(%arg0: i32) -> (i32, i32) {
    %c0_i32 = arith.constant 0 : i32
    %c0_i32_0 = arith.constant 0 : i32
    %c0_i32_1 = arith.constant 0 : i32
    return %c0_i32, %c0_i32_0 : i32, i32
  }
  func.func @transform_2(%arg0: i32) -> (i32, i32) {
    %c0_i32 = arith.constant 0 : i32
    %c0_i32_0 = arith.constant 0 : i32
    return %arg0, %c0_i32 : i32, i32
  }
  func.func @transform_3(%arg0: i32) -> (i32, i32) {
    %c0_i32 = arith.constant 0 : i32
    %c0_i32_0 = arith.constant 0 : i32
    %c0_i32_1 = arith.constant 0 : i32
    return %c0_i32, %c0_i32_0 : i32, i32
  }
  func.func @transform_4(%arg0: i32) -> (i32, i32) {
    %c0_i32 = arith.constant 0 : i32
    %c0_i32_0 = arith.constant 0 : i32
    %c0_i32_1 = arith.constant 0 : i32
    return %c0_i32, %c0_i32_0 : i32, i32
  }
  func.func @transform_5(%arg0: i32) -> (i32, i32) {
    %c0_i32 = arith.constant 0 : i32
    %c0_i32_0 = arith.constant 0 : i32
    %c0_i32_1 = arith.constant 0 : i32
    return %c0_i32, %c0_i32_0 : i32, i32
  }
  func.func @transform_6(%arg0: i32) -> (i32, i32) {
    %c0_i32 = arith.constant 0 : i32
    %c0_i32_0 = arith.constant 0 : i32
    %c0_i32_1 = arith.constant 0 : i32
    return %c0_i32, %c0_i32_0 : i32, i32
  }
  func.func @transform_7(%arg0: i32) -> (i32, i32) {
    %c0_i32 = arith.constant 0 : i32
    %c0_i32_0 = arith.constant 0 : i32
    %c0_i32_1 = arith.constant 0 : i32
    return %c0_i32, %c0_i32_0 : i32, i32
  }
  func.func @transform_8(%arg0: i32) -> (i32, i32) {
    %c0_i32 = arith.constant 0 : i32
    %c0_i32_0 = arith.constant 0 : i32
    %c0_i32_1 = arith.constant 0 : i32
    return %c0_i32, %c0_i32_0 : i32, i32
  }
  func.func @transform_9(%arg0: i32) -> (i32, i32) {
    %c0_i32 = arith.constant 0 : i32
    %c0_i32_0 = arith.constant 0 : i32
    %c0_i32_1 = arith.constant 0 : i32
    return %c0_i32, %c0_i32_0 : i32, i32
  }
  func.func @transform_10(%arg0: i32) -> (i32, i32) {
    %c0_i32 = arith.constant 0 : i32
    %c0_i32_0 = arith.constant 0 : i32
    %c0_i32_1 = arith.constant 0 : i32
    return %c0_i32, %c0_i32_0 : i32, i32
  }
  func.func @transform_11(%arg0: i32) -> (i32, i32) {
    %c0_i32 = arith.constant 0 : i32
    %c0_i32_0 = arith.constant 0 : i32
    %c0_i32_1 = arith.constant 0 : i32
    return %c0_i32, %c0_i32_0 : i32, i32
  }
  func.func @transform_12(%arg0: i32) -> (i32, i32) {
    %c0_i32 = arith.constant 0 : i32
    %c0_i32_0 = arith.constant 0 : i32
    %c0_i32_1 = arith.constant 0 : i32
    return %c0_i32, %c0_i32_0 : i32, i32
  }
  func.func @transform_13(%arg0: i32) -> (i32, i32) {
    %c0_i32 = arith.constant 0 : i32
    %c0_i32_0 = arith.constant 0 : i32
    return %arg0, %c0_i32 : i32, i32
  }
}

</mosaic_0001>

<llo_original>
// kernel: tgn_forward.9
$region0: #{tgn_forward.9}
  #allocation0 [shape = 'u32[]', space=smem, size = 0x4, offset = 0x4, fixed_abs, tag = 'smem constant byte address 0x4 - core index']
  #allocation1 [shape = 'u32[144,128]{1,0:T(1,128)}', space=vmem, size = 0x12000, scoped, tag = 'internal scratch']
  #allocation2 [shape = 'f32[12,128]{1,0:T(8,128)}', space=vmem, size = 0x2000, scoped, tag = 'scratch operand']
  %s0 = inlined_call_operand.vmem [shape: bf16[12,16], index: 0, kind: input, shape index: {}]
  %s1 = inlined_call_operand.vmem [shape: bf16[16,512], index: 1, kind: input, shape index: {}]
  %s2 = inlined_call_operand.vmem [shape: bf16[4,12,128], index: 2, kind: output, shape index: {}]
  %s3 = sld [smem:[#allocation0]]
  $region90: #{tgn_forward.9} parent=0
    _
  %s5 = ssub.s32 1, %s3
  %s6 = scalar_select 0, %s5, %s3
  $region1: #{tgn_forward.9} parent=0
    #allocation3 [shape = 'u8[8192]{0}', space=vmem, size = 0x2000, scoped, tag = 'input window, operand 1']
    loop: start=0, step=1, limit=6
    $region2: #{tgn_forward.9} parent=1 // loop_pre_header
      _
    $region3: #{tgn_forward.9} parent=1 // loop_header
      %s8 = sphi 0, %s12
      %p9 = scmp.ge.s32.totalorder %s8, 6
      %s15 = sphi 0, %s34
      %s16 = sphi 0, %s30
      %s17 = sphi 0, %s26
      %s18 = sphi 0, %s15
      %s19 = sphi 0, %s16
      %s20 = sphi 0, %s17
      %s21 = sphi 0, %s18
      %s22 = sphi 0, %s19
      %s23 = sphi 0, %s20
      %s39 = sphi 0, %s41
      %s42 = sphi 0, %s39
      %s43 = sphi 0, %s42
      %s59 = sphi 0, %s43
      %s67 = sphi 0, %s69
      %s70 = sphi 0, %s67
      %s71 = sphi 0, %s70
      %s87 = sphi 0, %s71
      %s95 = sphi 0, %s97
      %s98 = sphi 0, %s95
      %s99 = sphi 0, %s98
      %s115 = sphi 0, %s99
    $region4: #{tgn_forward.9} parent=1 // loop_header_branch
      %11 = sbr.rel (%p9) target = $region8
    $region5: #{tgn_forward.9} parent=1 // loop_body
      %s13 = ssub.s32 %s8, 1
      %s14 = ssub.s32 %s8, 2
      %s24 = sadd.s32 1, %s17
      %p25 = scmp.ge.s32.totalorder %s24, 1
      %s26 = scalar_select %p25, 0, %s24
      %s27 = sadd.s32 1, %s16
      %s28 = scalar_select %p25, %s27, %s16
      %p29 = scmp.ge.s32.totalorder %s28, 4
      %s30 = scalar_select %p29, 0, %s28
      %s31 = sadd.s32 1, %s15
      %s32 = scalar_select %p29, %s31, %s15
      %p33 = scmp.ge.s32.totalorder %s32, 1
      %s34 = scalar_select %p33, 0, %s32
      %s35 = ssub.s32 %s15, %s34
      %s36 = ssub.s32 %s17, %s26
      %s37 = sor.u32 %s35, %s36
      %p38 = scmp.eq.s32.totalorder %s37, 0
      %s40 = sadd.s32 %s39, 1
      %s41 = scalar_select %p38, %s39, %s40
      %p44 = pneg %p38
      %p45 = scmp.eq.s32.totalorder %s8, 3
      %p46 = por %p44, %p45
      %p47 = scmp.ne.s32.totalorder %s39, %s42
      %p48 = scmp.eq.s32.totalorder %s8, 0
      %p49 = por %p47, %p48
      %p50 = scmp.ne.s32.totalorder %s39, %s42
      %p51 = scmp.eq.s32.totalorder %s13, 3
      %p52 = por %p50, %p51
      %p53 = scmp.ne.s32.totalorder %s42, %s43
      %p54 = scmp.eq.s32.totalorder %s13, 0
      %p55 = por %p53, %p54
      %p56 = scmp.ne.s32.totalorder %s42, %s43
      %p57 = scmp.eq.s32.totalorder %s14, 3
      %p58 = por %p56, %p57
      %p60 = scmp.ne.s32.totalorder %s43, %s59
      %p61 = scmp.eq.s32.totalorder %s14, 0
      %p62 = por %p60, %p61
      %s63 = ssub.s32 %s17, %s26
      %s64 = ssub.s32 %s16, %s30
      %s65 = sor.u32 %s63, %s64
      %p66 = scmp.eq.s32.totalorder %s65, 0
      %s68 = sadd.s32 %s67, 1
      %s69 = scalar_select %p66, %s67, %s68
      %p72 = pneg %p66
      %p73 = scmp.eq.s32.totalorder %s8, 3
      %p74 = por %p72, %p73
      %p75 = scmp.ne.s32.totalorder %s67, %s70
      %p76 = scmp.eq.s32.totalorder %s8, 0
      %p77 = por %p75, %p76
      %p78 = scmp.ne.s32.totalorder %s67, %s70
      %p79 = scmp.eq.s32.totalorder %s13, 3
      %p80 = por %p78, %p79
      %p81 = scmp.ne.s32.totalorder %s70, %s71
      %p82 = scmp.eq.s32.totalorder %s13, 0
      %p83 = por %p81, %p82
      %p84 = scmp.ne.s32.totalorder %s70, %s71
      %p85 = scmp.eq.s32.totalorder %s14, 3
      %p86 = por %p84, %p85
      %p88 = scmp.ne.s32.totalorder %s71, %s87
      %p89 = scmp.eq.s32.totalorder %s14, 0
      %p90 = por %p88, %p89
      %s91 = ssub.s32 %s16, %s30
      %s92 = ssub.s32 %s15, %s34
      %s93 = sor.u32 %s91, %s92
      %p94 = scmp.eq.s32.totalorder %s93, 0
      %s96 = sadd.s32 %s95, 1
      %s97 = scalar_select %p94, %s95, %s96
      %p100 = pneg %p94
      %p101 = scmp.eq.s32.totalorder %s8, 3
      %p102 = por %p100, %p101
      %p103 = scmp.ne.s32.totalorder %s95, %s98
      %p104 = scmp.eq.s32.totalorder %s8, 0
      %p105 = por %p103, %p104
      %p106 = scmp.ne.s32.totalorder %s95, %s98
      %p107 = scmp.eq.s32.totalorder %s13, 3
      %p108 = por %p106, %p107
      %p109 = scmp.ne.s32.totalorder %s98, %s99
      %p110 = scmp.eq.s32.totalorder %s13, 0
      %p111 = por %p109, %p110
      %p112 = scmp.ne.s32.totalorder %s98, %s99
      %p113 = scmp.eq.s32.totalorder %s14, 3
      %p114 = por %p112, %p113
      %p116 = scmp.ne.s32.totalorder %s99, %s115
      %p117 = scmp.eq.s32.totalorder %s14, 0
      %p118 = por %p116, %p117
      %p119 = scmp.le.s32.totalorder 1, %s8
      %p120 = scmp.lt.s32.totalorder %s8, 5
      %p121 = pnand %p119, %p120
      %p122 = pneg %p121
      // Predicated region
      $region9: #{tgn_forward.9} parent=5 // pred_check
        _
      $region10: #{tgn_forward.9} parent=5 // pred_check_branch
        %124 = sbr.rel (%p121) target = $region12
      $region11: #{tgn_forward.9} parent=5 // pred_region
        %s125 = ssub.s32 %s8, 1
        // Predicated region
        $region13: #{tgn_forward.9} parent=11 // pred_check
          %p126 = pneg %p55
        $region14: #{tgn_forward.9} parent=11 // pred_check_branch
          %128 = sbr.rel (%p126) target = $region16
        $region15: #{tgn_forward.9} parent=11 // pred_region
          %s129 = smul.u32 2, %s18
          %p130 = scmp.lt.s32.totalorder %s129, 1
          %s131 = scalar_select %p130, %s129, 1
          %p132 = scmp.lt.s32.totalorder %s20, 0
          %s133 = scalar_select %p132, %s20, 0
          %s134 = sadd.s32 %s133, %s131
          %s135 = smul.addr %s134, 4
          %s136 = scalar_lea.vmem %s0, %s135
          %s137 = smul.u32 2, %s18
        $region16: #{tgn_forward.9} parent=11 // pred_fallthru
          _
      $region12: #{tgn_forward.9} parent=5 // pred_fallthru
        _
      %p138 = scmp.lt.s32.totalorder %s8, 4
      // Predicated region
      $region17: #{tgn_forward.9} parent=5 // pred_check
        %p139 = pneg %p138
      $region18: #{tgn_forward.9} parent=5 // pred_check_branch
        %141 = sbr.rel (%p139) target = $region20
      $region19: #{tgn_forward.9} parent=5 // pred_region
        // Predicated region
        $region21: #{tgn_forward.9} parent=19 // pred_check
          %p142 = pneg %p77
        $region22: #{tgn_forward.9} parent=19 // pred_check_branch
          %144 = sbr.rel (%p142) target = $region24
        $region23: #{tgn_forward.9} parent=19 // pred_region
          %s145 = sand.u32 %s67, 1
          %s146 = sand.u32 %s67, 1
          %s147 = smul.addr %s146, 8
          %s148 = scalar_lea.vmem [#allocation3], %s147
          %s149 = smul.u32 2, %s17
          %s150 = smul.addr %s149, 4
          %s151 = sadd.s32 %s16, %s150
          %s152 = smul.addr %s151, 4
          %s153 = scalar_lea.vmem %s1, %s152
          // Predicated region
          $region25: #{tgn_forward.9} parent=23 // pred_check
            _
          $region26: #{tgn_forward.9} parent=23 // pred_check_branch
            %155 = sbr.rel (0) target = $region28
          $region27: #{tgn_forward.9} parent=23 // pred_region
            // Predicated region
            $region29: #{tgn_forward.9} parent=27 // pred_check
              _
            $region30: #{tgn_forward.9} parent=27 // pred_check_branch
              %157 = sbr.rel target = $region32
            $region31: #{tgn_forward.9} parent=27 // pred_region
              // Predicated region
              $region44: #{tgn_forward.9} parent=31 // pred_check
                _
              $region45: #{tgn_forward.9} parent=31 // pred_check_branch
                %174 = sbr.rel (0) target = $region47
              $region46: #{tgn_forward.9} parent=31 // pred_region
                loop: start=0, step=1, limit=1
                $region48: #{tgn_forward.9} parent=46 // loop_pre_header
                  _
                $region49: #{tgn_forward.9} parent=46 // loop_header
                  %s176 = sphi 0, %s180
                  %p177 = scmp.ge.s32.totalorder %s176, 1
                  %s181 = sphi %s153, %s153
                  %s182 = sphi %s148, %s148
                $region50: #{tgn_forward.9} parent=46 // loop_header_branch
                  %179 = sbr.rel (%p177) target = $region54
                $region51: #{tgn_forward.9} parent=46 // loop_body
                  _
                $region52: #{tgn_forward.9} parent=46 // loop_footer
                  %s180 = sadd.s32 1, %s176
                $region53: #{tgn_forward.9} parent=46 // loop_footer_branch
                  %175 = sbr.rel target = $region49
                $region54: #{tgn_forward.9} parent=46 // loop_exit
                  _
                loop: start=0, step=1, limit=1
                $region55: #{tgn_forward.9} parent=46 // loop_pre_header
                  _
                $region56: #{tgn_forward.9} parent=46 // loop_header
                  %s185 = sphi 0, %s189
                  %p186 = scmp.ge.s32.totalorder %s185, 1
                  %s190 = sphi %s153, %s153
                  %s191 = sphi %s148, %s148
                $region57: #{tgn_forward.9} parent=46 // loop_header_branch
                  %188 = sbr.rel (%p186) target = $region61
                $region58: #{tgn_forward.9} parent=46 // loop_body
                  %v192 = vld [vmem:[%s190] sm:$0xf]
                  %193 = vst [vmem:[%s191] sm:$0xf] %v192
                  %v194 = vld [vmem:[%s190 + $0x10] sm:$0xf]
                  %195 = vst [vmem:[%s191 + $0x4] sm:$0xf] %v194
                $region59: #{tgn_forward.9} parent=46 // loop_footer
                  %s189 = sadd.s32 1, %s185
                $region60: #{tgn_forward.9} parent=46 // loop_footer_branch
                  %184 = sbr.rel target = $region56
                $region61: #{tgn_forward.9} parent=46 // loop_exit
                  _
              $region47: #{tgn_forward.9} parent=31 // pred_fallthru
                _
            $region32: #{tgn_forward.9} parent=27 // pred_fallthru
              _
            // Predicated region
            $region33: #{tgn_forward.9} parent=27 // pred_check
              _
            $region34: #{tgn_forward.9} parent=27 // pred_check_branch
              %159 = sbr.rel (0) target = $region36
            $region35: #{tgn_forward.9} parent=27 // pred_region
              loop: start=0, step=1, limit=1
              $region37: #{tgn_forward.9} parent=35 // loop_pre_header
                _
              $region38: #{tgn_forward.9} parent=35 // loop_header
                %s162 = sphi 0, %s166
                %p163 = scmp.ge.s32.totalorder %s162, 1
                %s167 = sphi %s153, %s153
                %s168 = sphi %s148, %s148
              $region39: #{tgn_forward.9} parent=35 // loop_header_branch
                %165 = sbr.rel (%p163) target = $region43
              $region40: #{tgn_forward.9} parent=35 // loop_body
                %v169 = vld [vmem:[%s167] sm:$0xf]
                %170 = vst [vmem:[%s168] sm:$0xf] %v169
                %v171 = vld [vmem:[%s167 + $0x10] sm:$0xf]
                %172 = vst [vmem:[%s168 + $0x4] sm:$0xf] %v171
              $region41: #{tgn_forward.9} parent=35 // loop_footer
                %s166 = sadd.s32 1, %s162
              $region42: #{tgn_forward.9} parent=35 // loop_footer_branch
                %161 = sbr.rel target = $region38
              $region43: #{tgn_forward.9} parent=35 // loop_exit
                _
            $region36: #{tgn_forward.9} parent=27 // pred_fallthru
              _
          $region28: #{tgn_forward.9} parent=23 // pred_fallthru
            _
          %196 = vnop
        $region24: #{tgn_forward.9} parent=19 // pred_fallthru
          _
      $region20: #{tgn_forward.9} parent=5 // pred_fallthru
        _
      %p197 = scmp.le.s32.totalorder 1, %s8
      %p198 = scmp.lt.s32.totalorder %s8, 5
      %p199 = pnand %p197, %p198
      %p200 = pneg %p199
      // Predicated region
      $region62: #{tgn_forward.9} parent=5 // pred_check
        _
      $region63: #{tgn_forward.9} parent=5 // pred_check_branch
        %202 = sbr.rel (%p199) target = $region65
      $region64: #{tgn_forward.9} parent=5 // pred_region
        %s203 = ssub.s32 %s8, 1
        %s204 = sand.u32 %s70, 1
        %s205 = sand.u32 %s70, 1
        %s206 = smul.addr %s205, 8
        %s207 = scalar_lea.vmem [#allocation3], %s206
        // Predicated region
        $region66: #{tgn_forward.9} parent=64 // pred_check
          %p208 = pneg %p83
        $region67: #{tgn_forward.9} parent=64 // pred_check_branch
          %210 = sbr.rel (%p208) target = $region69
        $region68: #{tgn_forward.9} parent=64 // pred_region
          _
        $region69: #{tgn_forward.9} parent=64 // pred_fallthru
          _
        %s211 = smul.u32 2, %s18
        %p212 = scmp.lt.s32.totalorder %s211, 1
        %s213 = scalar_select %p212, %s211, 1
        %p214 = scmp.lt.s32.totalorder %s20, 0
        %s215 = scalar_select %p214, %s20, 0
        %s216 = sadd.s32 %s215, %s213
        %s217 = smul.addr %s216, 4
        %s218 = scalar_lea.vmem %s0, %s217
        %p219 = pneg %p55
        %p220 = pneg %p52
        %s221 = sand.u32 %s70, 1
        %s222 = sand.u32 %s70, 1
        %s223 = smul.addr %s222, 8
        %s224 = scalar_lea.vmem [#allocation3], %s223
        %p225 = pneg %p83
        %p226 = pneg %p80
        %p227 = pneg %p111
        %p228 = pneg %p108
        %s229 = smul.u32 2, %s18
        %p230 = scmp.lt.s32.totalorder %s19, 3
        %s231 = scalar_select %p230, %s19, 3
        %p232 = scmp.lt.s32.totalorder %s229, 1
        %s233 = scalar_select %p232, %s229, 1
        %s234 = smul.addr %s231, 2
        %s235 = sadd.s32 %s233, %s234
        %s236 = smul.addr %s235, 4
        %s237 = scalar_lea.vmem %s2, %s236
        %s238 = smul.u32 2, %s18
        %p239 = scmp.lt.s32.totalorder %s238, 1
        %s240 = scalar_select %p239, %s238, 1
        %p241 = scmp.lt.s32.totalorder %s20, 0
        %s242 = scalar_select %p241, %s20, 0
        %s243 = sadd.s32 %s242, %s240
        %s244 = smul.addr %s243, 4
        %s245 = scalar_lea.vmem %s0, %s244
        %s246 = smul.u32 2, %s18
        %s247 = smul.u32 2, %s20
        %s248 = smul.u32 2, %s18
        %p249 = scmp.lt.s32.totalorder %s19, 3
        %s250 = scalar_select %p249, %s19, 3
        %p251 = scmp.lt.s32.totalorder %s248, 1
        %s252 = scalar_select %p251, %s248, 1
        %s253 = smul.addr %s250, 2
        %s254 = sadd.s32 %s252, %s253
        %s255 = smul.addr %s254, 4
        %s256 = scalar_lea.vmem %s2, %s255
        %s257 = smul.u32 2, %s18
        %p259 = scmp.eq.s32.totalorder %s20, 0
        // Predicated region
        $region70: #{tgn_forward.9} parent=64 // pred_check
          %p260 = pneg %p259
        $region71: #{tgn_forward.9} parent=64 // pred_check_branch
          %262 = sbr.rel (%p260) target = $region73
        $region72: #{tgn_forward.9} parent=64 // pred_region
          %263 = vst [vmem:[#allocation2] sm:$0xff] 0.0
          %264 = vst [vmem:[#allocation2 + $0x8] sm:$0xf] 0.0
        $region73: #{tgn_forward.9} parent=64 // pred_fallthru
          _
        %v265 = vld [vmem:[#allocation2] sm:$0xff]
        %v266 = vld [vmem:[#allocation2 + $0x8] sm:$0xf]
        %v267 = vld [vmem:[%s245] sm:$0xf]
        %v268 = vld [vmem:[%s245 + $0x4] sm:$0x3]
        %v269 = vld [vmem:[%s207] sm:$0xf]
        %v270 = vld [vmem:[%s207 + $0x4] sm:$0xf]
        %v273 = vunpack.c.l.b16 %v267
        %v274 = vunpack.c.l.b16 %v268
        %v275 = vpack.c.b16 %v274, %v273
        %v278 = vunpack.c.l.b16 %v269
        %v279 = vunpack.c.l.b16 %v270
        %v280 = vpack.c.b16 %v279, %v278
        %vm282 = vcmask 130048
        %v284 = vsel %vm282, %v275, 0
        %286 = vmatprep.subr.bf16.mxu0 0
        %287 = vmatpush1.bf16.msra.mxu0 %v280
        %288 = vmatprep.subr.bf16.mxu0 0
        %289 = vmatpush1.bf16.msra.mxu0 0
        %290 = vmatprep.subr.bf16.mxu0 0
        %291 = vmatpush1.bf16.msra.mxu0 0
        %292 = vmatprep.subr.bf16.mxu0 0
        %293 = vmatpush1.bf16.msra.mxu0 0
        %294 = vmatprep.subr.bf16.mxu0 0
        %295 = vmatpush1.bf16.msra.mxu0 0
        %296 = vmatprep.subr.bf16.mxu0 0
        %297 = vmatpush1.bf16.msra.mxu0 0
        %298 = vmatprep.subr.bf16.mxu0 0
        %299 = vmatpush1.bf16.msra.mxu0 0
        %300 = vmatprep.subr.bf16.mxu0 0
        %301 = vmatpush1.bf16.msra.mxu0 0
        %302 = vmatprep.subr.bf16.mxu0 0
        %303 = vmatpush1.bf16.msra.mxu0 0
        %304 = vmatprep.subr.bf16.mxu0 0
        %305 = vmatpush1.bf16.msra.mxu0 0
        %306 = vmatprep.subr.bf16.mxu0 0
        %307 = vmatpush1.bf16.msra.mxu0 0
        %308 = vmatprep.subr.bf16.mxu0 0
        %309 = vmatpush1.bf16.msra.mxu0 0
        %310 = vmatprep.subr.bf16.mxu0 0
        %311 = vmatpush1.bf16.msra.mxu0 0
        %312 = vmatprep.subr.bf16.mxu0 0
        %313 = vmatpush1.bf16.msra.mxu0 0
        %314 = vmatprep.subr.bf16.mxu0 0
        %315 = vmatpush1.bf16.msra.mxu0 0
        %316 = vmatprep.subr.bf16.mxu0 0
        %317 = vmatpush1.bf16.msra.mxu0 0
        %318 = vmatprep.mubr.bf16.mxu0 0
        %319 = vmatmul.mubr.bf16.gmra.mrb[0].mxu0 %v284
        %v320 = vpop.f32.mrb[0].mxu0
        %v321 = vadd.f32 0.0, %v320
        %v322 = vpop.f32.mrb[0].mxu0
        %v323 = vpop.f32.mrb[0].mxu0
        %v324 = vadd.f32 0.0, %v323
        %v325 = vpop.f32.mrb[0].mxu0
        %326 = vdwg.mxu0
        %v327 = vadd.f32 %v265, %v321
        %v328 = vadd.f32 %v266, %v324
        %329 = vst [vmem:[#allocation2] sm:$0xff] %v327
        %330 = vst [vmem:[#allocation2 + $0x8] sm:$0xf] %v328
        // Predicated region
        $region74: #{tgn_forward.9} parent=64 // pred_check
          %p331 = pneg %p259
        $region75: #{tgn_forward.9} parent=64 // pred_check_branch
          %333 = sbr.rel (%p331) target = $region77
        $region76: #{tgn_forward.9} parent=64 // pred_region
          %v334 = vld [vmem:[#allocation2] sm:$0xff]
          %v335 = vld [vmem:[#allocation2 + $0x8] sm:$0xf]
          %v336 = vpack.c.bf16 %v335, %v334
          %v338 = vunpack.c.l.b16 %v336
          %v339 = vunpack.c.h.b16 %v336
          %v340 = vpack.c.b16 %v338, %v338
          %v341 = vpack.c.b16 %v339, %v339
          %344 = vst [vmem:[%s256] sm:$0xf] %v340
          %345 = vst [vmem:[%s256 + $0x4] sm:$0x3] %v341
        $region77: #{tgn_forward.9} parent=64 // pred_fallthru
          _
        %s346 = smul.u32 2, %s18
        %p347 = scmp.lt.s32.totalorder %s19, 3
        %s348 = scalar_select %p347, %s19, 3
        %p349 = scmp.lt.s32.totalorder %s346, 1
        %s350 = scalar_select %p349, %s346, 1
        %s351 = smul.addr %s348, 2
        %s352 = sadd.s32 %s350, %s351
        %s353 = smul.addr %s352, 4
        %s354 = scalar_lea.vmem %s2, %s353
        // Predicated region
        $region78: #{tgn_forward.9} parent=64 // pred_check
          %p355 = pneg %p108
        $region79: #{tgn_forward.9} parent=64 // pred_check_branch
          %357 = sbr.rel (%p355) target = $region81
        $region80: #{tgn_forward.9} parent=64 // pred_region
          %s358 = smul.u32 2, %s18
        $region81: #{tgn_forward.9} parent=64 // pred_fallthru
          _
      $region65: #{tgn_forward.9} parent=5 // pred_fallthru
        _
      %p359 = scmp.le.s32.totalorder 2, %s8
      // Predicated region
      $region82: #{tgn_forward.9} parent=5 // pred_check
        %p360 = pneg %p359
      $region83: #{tgn_forward.9} parent=5 // pred_check_branch
        %362 = sbr.rel (%p360) target = $region85
      $region84: #{tgn_forward.9} parent=5 // pred_region
        %s363 = ssub.s32 %s8, 2
        // Predicated region
        $region86: #{tgn_forward.9} parent=84 // pred_check
          %p364 = pneg %p114
        $region87: #{tgn_forward.9} parent=84 // pred_check_branch
          %366 = sbr.rel (%p364) target = $region89
        $region88: #{tgn_forward.9} parent=84 // pred_region
          %s367 = smul.u32 2, %s21
          %p368 = scmp.lt.s32.totalorder %s22, 3
          %s369 = scalar_select %p368, %s22, 3
          %p370 = scmp.lt.s32.totalorder %s367, 1
          %s371 = scalar_select %p370, %s367, 1
          %s372 = smul.addr %s369, 2
          %s373 = sadd.s32 %s371, %s372
          %s374 = smul.addr %s373, 4
          %s375 = scalar_lea.vmem %s2, %s374
        $region89: #{tgn_forward.9} parent=84 // pred_fallthru
          _
      $region85: #{tgn_forward.9} parent=5 // pred_fallthru
        _
    $region6: #{tgn_forward.9} parent=1 // loop_footer
      %s12 = sadd.s32 1, %s8
    $region7: #{tgn_forward.9} parent=1 // loop_footer_branch
      %7 = sbr.rel target = $region3
    $region8: #{tgn_forward.9} parent=1 // loop_exit
      _

// kernel: tgn_forward.8
$region0: #{tgn_forward.8}
  #allocation0 [shape = 'u32[]', space=smem, size = 0x4, offset = 0x4, fixed_abs, tag = 'smem constant byte address 0x4 - core index']
  #allocation1 [shape = 'u32[144,128]{1,0:T(1,128)}', space=vmem, size = 0x12000, scoped, tag = 'internal scratch']
  %s0 = inlined_call_operand.vmem [shape: f32[20,1], index: 0, kind: input, shape index: {}]
  %s1 = inlined_call_operand.vmem [shape: f32[1,64], index: 1, kind: input, shape index: {}]
  %s2 = inlined_call_operand.vmem [shape: f32[1,64], index: 2, kind: input, shape index: {}]
  %s3 = inlined_call_operand.vmem [shape: f32[64,32], index: 3, kind: input, shape index: {}]
  %s4 = inlined_call_operand.vmem [shape: f32[1,32], index: 4, kind: input, shape index: {}]
  %s5 = inlined_call_operand.vmem [shape: f32[1,32], index: 5, kind: output, shape index: {}]
  %s6 = sld [smem:[#allocation0]]
  $region38: #{tgn_forward.8} parent=0
    _
  %s8 = ssub.s32 1, %s6
  %s9 = scalar_select 0, %s8, %s6
  // Predicated region
  $region2: #{tgn_forward.8} parent=0 // pred_check
    _
  $region3: #{tgn_forward.8} parent=0 // pred_check_branch
    %11 = sbr.rel (0) target = $region5
  $region4: #{tgn_forward.8} parent=0 // pred_region
    _
  $region5: #{tgn_forward.8} parent=0 // pred_fallthru
    _
  // Predicated region
  $region6: #{tgn_forward.8} parent=0 // pred_check
    _
  $region7: #{tgn_forward.8} parent=0 // pred_check_branch
    %13 = sbr.rel (0) target = $region9
  $region8: #{tgn_forward.8} parent=0 // pred_region
    _
  $region9: #{tgn_forward.8} parent=0 // pred_fallthru
    _
  // Predicated region
  $region10: #{tgn_forward.8} parent=0 // pred_check
    _
  $region11: #{tgn_forward.8} parent=0 // pred_check_branch
    %15 = sbr.rel (0) target = $region13
  $region12: #{tgn_forward.8} parent=0 // pred_region
    _
  $region13: #{tgn_forward.8} parent=0 // pred_fallthru
    _
  // Predicated region
  $region14: #{tgn_forward.8} parent=0 // pred_check
    _
  $region15: #{tgn_forward.8} parent=0 // pred_check_branch
    %17 = sbr.rel (0) target = $region17
  $region16: #{tgn_forward.8} parent=0 // pred_region
    _
  $region17: #{tgn_forward.8} parent=0 // pred_fallthru
    _
  // Predicated region
  $region18: #{tgn_forward.8} parent=0 // pred_check
    _
  $region19: #{tgn_forward.8} parent=0 // pred_check_branch
    %19 = sbr.rel (0) target = $region21
  $region20: #{tgn_forward.8} parent=0 // pred_region
    _
  $region21: #{tgn_forward.8} parent=0 // pred_fallthru
    _
  %p20 = scmp.eq.s32.totalorder 0, 0
  // Predicated region
  $region22: #{tgn_forward.8} parent=0 // pred_check
    %p21 = pneg %p20
  $region23: #{tgn_forward.8} parent=0 // pred_check_branch
    %23 = sbr.rel (%p21) target = $region25
  $region24: #{tgn_forward.8} parent=0 // pred_region
    %vm24 = vcmask 253952
    %25 = vst.msk [vmem:[%s5] sm:$0x1] %vm24, 0.0
  $region25: #{tgn_forward.8} parent=0 // pred_fallthru
    _
  %v26 = vld [vmem:[%s0] sm:$0xff]
  %v27 = vld [vmem:[%s0 + $0x8] sm:$0xff]
  %v28 = vld [vmem:[%s0 + $0x10] sm:$0xf]
  %v29 = vld [vmem:[%s1] sm:$0x1]
  %31 = vset.pattern.permute.xlu0 0
  %32 = vperm.xlu0 %31, %v26
  %v33 = vpop.permute.xlu0 %32
  %36 = vset.pattern.permute.xlu0 0
  %37 = vperm.xlu0 %36, %v27
  %v38 = vpop.permute.xlu0 %37
  %41 = vset.pattern.permute.xlu0 0
  %42 = vperm.xlu0 %41, %v28
  %v43 = vpop.permute.xlu0 %42
  %v46 = vlaneseq
  %v47 = vshrl.u32 %v46, 7
  %v48 = vsub.s32 0, %v47
  %v49 = vrot.slane %v29, %v48
  %v51 = vmul.f32 %v33, %v49
  %v52 = vmul.f32 %v38, %v49
  %v53 = vmul.f32 %v43, %v49
  %v54 = vld [vmem:[%s2] sm:$0x1]
  %v56 = vlaneseq
  %v57 = vshrl.u32 %v56, 7
  %v58 = vsub.s32 0, %v57
  %v59 = vrot.slane %v54, %v58
  %v61 = vadd.f32 %v51, %v59
  %v62 = vadd.f32 %v52, %v59
  %v63 = vadd.f32 %v53, %v59
  %v64 = vmax.f32 %v61, 0.0
  %v65 = vmax.f32 %v62, 0.0
  %v66 = vmax.f32 %v63, 0.0
  %v67 = vld [vmem:[%s3] sm:$0xff]
  %v68 = vld [vmem:[%s3 + $0x8] sm:$0xff]
  %v69 = vld [vmem:[%s3 + $0x10] sm:$0xff]
  %v70 = vld [vmem:[%s3 + $0x18] sm:$0xff]
  %v71 = vld [vmem:[%s3 + $0x20] sm:$0xff]
  %v72 = vld [vmem:[%s3 + $0x28] sm:$0xff]
  %v73 = vld [vmem:[%s3 + $0x30] sm:$0xff]
  %v74 = vld [vmem:[%s3 + $0x38] sm:$0xff]
  %v75 = vld [vmem:[%s4] sm:$0x1]
  %v77 = vlaneseq
  %v78 = vshrl.u32 %v77, 7
  %v79 = vsub.s32 0, %v78
  %v80 = vrot.slane %v75, %v79
  %vm82 = vcmask 523264
  %v84 = vsel %vm82, %v64, 0
  %v87 = vsel %vm82, %v65, 0
  %v90 = vsel %vm82, %v66, 0
  %92 = vmatprep.subr.mxu0 0.0
  %93 = vmatpush1.msra.mxu0 %v67
  %94 = vmatprep.subr.mxu0 0.0
  %95 = vmatpush1.msra.mxu0 %v68
  %96 = vmatprep.subr.mxu0 0.0
  %97 = vmatpush1.msra.mxu0 %v69
  %98 = vmatprep.subr.mxu0 0.0
  %99 = vmatpush1.msra.mxu0 %v70
  %100 = vmatprep.subr.mxu0 0.0
  %101 = vmatpush1.msra.mxu0 %v71
  %102 = vmatprep.subr.mxu0 0.0
  %103 = vmatpush1.msra.mxu0 %v72
  %104 = vmatprep.subr.mxu0 0.0
  %105 = vmatpush1.msra.mxu0 %v73
  %106 = vmatprep.subr.mxu0 0.0
  %107 = vmatpush1.msra.mxu0 %v74
  %108 = vmatprep.subr.mxu0 0.0
  %109 = vmatpush1.msra.mxu0 0.0
  %110 = vmatprep.subr.mxu0 0.0
  %111 = vmatpush1.msra.mxu0 0.0
  %112 = vmatprep.subr.mxu0 0.0
  %113 = vmatpush1.msra.mxu0 0.0
  %114 = vmatprep.subr.mxu0 0.0
  %115 = vmatpush1.msra.mxu0 0.0
  %116 = vmatprep.subr.mxu0 0.0
  %117 = vmatpush1.msra.mxu0 0.0
  %118 = vmatprep.subr.mxu0 0.0
  %119 = vmatpush1.msra.mxu0 0.0
  %120 = vmatprep.subr.mxu0 0.0
  %121 = vmatpush1.msra.mxu0 0.0
  %122 = vmatprep.subr.mxu0 0.0
  %123 = vmatpush1.msra.mxu0 0.0
  %124 = vmatprep.subr.mxu0 0.0
  %125 = vmatpush1.msra.mxu0 0.0
  %126 = vmatprep.subr.mxu0 0.0
  %127 = vmatpush1.msra.mxu0 0.0
  %128 = vmatprep.subr.mxu0 0.0
  %129 = vmatpush1.msra.mxu0 0.0
  %130 = vmatprep.subr.mxu0 0.0
  %131 = vmatpush1.msra.mxu0 0.0
  %132 = vmatprep.subr.mxu0 0.0
  %133 = vmatpush1.msra.mxu0 0.0
  %134 = vmatprep.subr.mxu0 0.0
  %135 = vmatpush1.msra.mxu0 0.0
  %136 = vmatprep.subr.mxu0 0.0
  %137 = vmatpush1.msra.mxu0 0.0
  %138 = vmatprep.subr.mxu0 0.0
  %139 = vmatpush1.msra.mxu0 0.0
  %140 = vmatprep.subr.mxu0 0.0
  %141 = vmatpush1.msra.mxu0 0.0
  %142 = vmatprep.subr.mxu0 0.0
  %143 = vmatpush1.msra.mxu0 0.0
  %144 = vmatprep.subr.mxu0 0.0
  %145 = vmatpush1.msra.mxu0 0.0
  %146 = vmatprep.subr.mxu0 0.0
  %147 = vmatpush1.msra.mxu0 0.0
  %148 = vmatprep.subr.mxu0 0.0
  %149 = vmatpush1.msra.mxu0 0.0
  %150 = vmatprep.subr.mxu0 0.0
  %151 = vmatpush1.msra.mxu0 0.0
  %152 = vmatprep.subr.mxu0 0.0
  %153 = vmatpush1.msra.mxu0 0.0
  %154 = vmatprep.subr.mxu0 0.0
  %155 = vmatpush1.msra.mxu0 0.0
  %156 = vmatprep.mubr.f32.mxu0 0.0
  %157 = vmatmul.mubr.f32.gmra.mrb[0].mxu0 %v84
  %v158 = vpop.f32.mrb[0].mxu0
  %v159 = vadd.f32 %v80, %v158
  %v160 = vpop.f32.mrb[0].mxu0
  %161 = vmatprep.mubr.f32.mxu0 0.0
  %162 = vmatmul.mubr.f32.gmra.mrb[0].mxu0 %v87
  %v163 = vpop.f32.mrb[0].mxu0
  %v164 = vadd.f32 %v80, %v163
  %v165 = vpop.f32.mrb[0].mxu0
  %166 = vmatprep.mubr.f32.mxu0 0.0
  %167 = vmatmul.mubr.f32.gmra.mrb[0].mxu0 %v90
  %v168 = vpop.f32.mrb[0].mxu0
  %v169 = vadd.f32 %v80, %v168
  %v170 = vpop.f32.mrb[0].mxu0
  %171 = vdwg.mxu0
  %s172 = smul.u32 0, 20
  %v173 = vlaneseq
  %v174 = vshrl.u32 %v173, 7
  %v175 = vadd.s32 %v174, 8
  %v176 = vadd.s32 %v174, 16
  %v177 = vstv %s172
  %v178 = vadd.s32 %v177, %v174
  %v179 = vadd.s32 %v177, %v175
  %v180 = vadd.s32 %v177, %v176
  %vm181 = vcmp.lt.s32.totalorder %v178, 20
  %vm182 = vcmp.lt.s32.totalorder %v179, 20
  %vm183 = vcmp.lt.s32.totalorder %v180, 20
  %v184 = vsel %vm181, %v159, 0.0
  %v185 = vsel %vm182, %v164, 0.0
  %v186 = vsel %vm183, %v169, 0.0
  %v187 = vld [vmem:[%s5] sm:$0x1]
  %vm188 = vcmask 261120
  %v189 = vsel %vm188, %v184, 0.0
  %v190 = vsel %vm188, %v185, 0.0
  %v191 = vadd.f32 %v189, %v190
  %vm192 = vcmask 257024
  %v193 = vsel %vm192, %v186, 0.0
  %v194 = vadd.f32 %v191, %v193
  %v195 = vrot.slane %v194, 4
  %v196 = vadd.f32 %v194, %v195
  %v197 = vrot.slane %v196, 2
  %v198 = vadd.f32 %v196, %v197
  %v199 = vrot.slane %v198, 1
  %v200 = vadd.f32 %v198, %v199
  %v201 = vadd.f32 %v187, %v200
  %vm202 = vcmask 253952
  %203 = vst.msk [vmem:[%s5] sm:$0x1] %vm202, %v201
  // Predicated region
  $region26: #{tgn_forward.8} parent=0 // pred_check
    %p204 = pneg %p20
  $region27: #{tgn_forward.8} parent=0 // pred_check_branch
    %206 = sbr.rel (%p204) target = $region29
  $region28: #{tgn_forward.8} parent=0 // pred_region
    %v207 = vld [vmem:[%s5] sm:$0x1]
    %v208 = vmul.f32 %v207, 0.05
    %209 = vst.msk [vmem:[%s5] sm:$0x1] %vm202, %v208
  $region29: #{tgn_forward.8} parent=0 // pred_fallthru
    _
  // Predicated region
  $region30: #{tgn_forward.8} parent=0 // pred_check
    _
  $region31: #{tgn_forward.8} parent=0 // pred_check_branch
    %211 = sbr.rel (0) target = $region33
  $region32: #{tgn_forward.8} parent=0 // pred_region
    _
  $region33: #{tgn_forward.8} parent=0 // pred_fallthru
    _
  // Predicated region
  $region34: #{tgn_forward.8} parent=0 // pred_check
    _
  $region35: #{tgn_forward.8} parent=0 // pred_check_branch
    %213 = sbr.rel (0) target = $region37
  $region36: #{tgn_forward.8} parent=0 // pred_region
    _
  $region37: #{tgn_forward.8} parent=0 // pred_fallthru
    _

// kernel: tgn_forward.10
$region0: #{tgn_forward.10}
  #allocation0 [shape = 'u32[]', space=smem, size = 0x4, offset = 0x4, fixed_abs, tag = 'smem constant byte address 0x4 - core index']
  #allocation1 [shape = 'u32[144,128]{1,0:T(1,128)}', space=vmem, size = 0x12000, scoped, tag = 'internal scratch']
  %s0 = inlined_call_operand.vmem [shape: bf16[4,12,128], index: 0, kind: input, shape index: {}, may-alias: {0,1}]
  %s1 = inlined_call_operand.vmem [shape: bf16[4,12,128], index: 1, kind: input, shape index: {}, may-alias: {0,1}]
  %s2 = inlined_call_operand.vmem [shape: f32[4,1,128], index: 2, kind: input, shape index: {}]
  %s3 = inlined_call_operand.vmem [shape: f32[4,1,128], index: 3, kind: input, shape index: {}]
  %s4 = inlined_call_operand.vmem [shape: bf16[12,12], index: 4, kind: input, shape index: {}]
  %s5 = inlined_call_operand.vmem [shape: f32[4,1,128], index: 5, kind: input, shape index: {}]
  %s6 = inlined_call_operand.vmem [shape: bf16[12,512], index: 6, kind: output, shape index: {}]
  %s7 = sld [smem:[#allocation0]]
  $region94: #{tgn_forward.10} parent=0
    _
  %s9 = ssub.s32 1, %s7
  %s10 = scalar_select 0, %s9, %s7
  $region1: #{tgn_forward.10} parent=0
    #allocation2 [shape = 'u8[8192]{0}', space=vmem, size = 0x2000, scoped, tag = 'output window, operand 0']
    loop: start=0, step=1, limit=6
    $region2: #{tgn_forward.10} parent=1 // loop_pre_header
      _
    $region3: #{tgn_forward.10} parent=1 // loop_header
      %s12 = sphi 0, %s16
      %p13 = scmp.ge.s32.totalorder %s12, 6
      %s19 = sphi 0, %s31
      %s20 = sphi 0, %s27
      %s21 = sphi 0, %s19
      %s22 = sphi 0, %s20
      %s23 = sphi 0, %s21
      %s24 = sphi 0, %s22
      %s32 = sphi 0, %s32
      %s34 = sphi 0, %s32
      %s35 = sphi 0, %s34
      %s49 = sphi 0, %s35
      %s57 = sphi 0, %s59
      %s60 = sphi 0, %s57
      %s61 = sphi 0, %s60
      %s77 = sphi 0, %s61
      %s83 = sphi 0, %s85
      %s86 = sphi 0, %s83
      %s87 = sphi 0, %s86
      %s103 = sphi 0, %s87
      %s109 = sphi 0, %s111
      %s112 = sphi 0, %s109
      %s113 = sphi 0, %s112
      %s129 = sphi 0, %s113
      %s135 = sphi 0, %s137
      %s138 = sphi 0, %s135
      %s139 = sphi 0, %s138
      %s155 = sphi 0, %s139
      %s161 = sphi 0, %s163
      %s164 = sphi 0, %s161
      %s165 = sphi 0, %s164
      %s181 = sphi 0, %s165
      %s189 = sphi 0, %s191
      %s192 = sphi 0, %s189
      %s193 = sphi 0, %s192
      %s209 = sphi 0, %s193
    $region4: #{tgn_forward.10} parent=1 // loop_header_branch
      %15 = sbr.rel (%p13) target = $region8
    $region5: #{tgn_forward.10} parent=1 // loop_body
      %s17 = ssub.s32 %s12, 1
      %s18 = ssub.s32 %s12, 2
      %s25 = sadd.s32 1, %s20
      %p26 = scmp.ge.s32.totalorder %s25, 4
      %s27 = scalar_select %p26, 0, %s25
      %s28 = sadd.s32 1, %s19
      %s29 = scalar_select %p26, %s28, %s19
      %p30 = scmp.ge.s32.totalorder %s29, 1
      %s31 = scalar_select %p30, 0, %s29
      %s33 = sadd.s32 %s32, 1
      %p36 = scmp.eq.s32.totalorder %s12, 3
      %p37 = scmp.ne.s32.totalorder %s32, %s34
      %p38 = scmp.eq.s32.totalorder %s12, 0
      %p39 = por %p37, %p38
      %p40 = scmp.ne.s32.totalorder %s32, %s34
      %p41 = scmp.eq.s32.totalorder %s17, 3
      %p42 = por %p40, %p41
      %p43 = scmp.ne.s32.totalorder %s34, %s35
      %p44 = scmp.eq.s32.totalorder %s17, 0
      %p45 = por %p43, %p44
      %p46 = scmp.ne.s32.totalorder %s34, %s35
      %p47 = scmp.eq.s32.totalorder %s18, 3
      %p48 = por %p46, %p47
      %p50 = scmp.ne.s32.totalorder %s35, %s49
      %p51 = scmp.eq.s32.totalorder %s18, 0
      %p52 = por %p50, %p51
      %s53 = ssub.s32 %s20, %s27
      %s54 = ssub.s32 %s19, %s31
      %s55 = sor.u32 %s53, %s54
      %p56 = scmp.eq.s32.totalorder %s55, 0
      %s58 = sadd.s32 %s57, 1
      %s59 = scalar_select %p56, %s57, %s58
      %p62 = pneg %p56
      %p63 = scmp.eq.s32.totalorder %s12, 3
      %p64 = por %p62, %p63
      %p65 = scmp.ne.s32.totalorder %s57, %s60
      %p66 = scmp.eq.s32.totalorder %s12, 0
      %p67 = por %p65, %p66
      %p68 = scmp.ne.s32.totalorder %s57, %s60
      %p69 = scmp.eq.s32.totalorder %s17, 3
      %p70 = por %p68, %p69
      %p71 = scmp.ne.s32.totalorder %s60, %s61
      %p72 = scmp.eq.s32.totalorder %s17, 0
      %p73 = por %p71, %p72
      %p74 = scmp.ne.s32.totalorder %s60, %s61
      %p75 = scmp.eq.s32.totalorder %s18, 3
      %p76 = por %p74, %p75
      %p78 = scmp.ne.s32.totalorder %s61, %s77
      %p79 = scmp.eq.s32.totalorder %s18, 0
      %p80 = por %p78, %p79
      %s81 = ssub.s32 %s20, %s27
      %p82 = scmp.eq.s32.totalorder %s81, 0
      %s84 = sadd.s32 %s83, 1
      %s85 = scalar_select %p82, %s83, %s84
      %p88 = pneg %p82
      %p89 = scmp.eq.s32.totalorder %s12, 3
      %p90 = por %p88, %p89
      %p91 = scmp.ne.s32.totalorder %s83, %s86
      %p92 = scmp.eq.s32.totalorder %s12, 0
      %p93 = por %p91, %p92
      %p94 = scmp.ne.s32.totalorder %s83, %s86
      %p95 = scmp.eq.s32.totalorder %s17, 3
      %p96 = por %p94, %p95
      %p97 = scmp.ne.s32.totalorder %s86, %s87
      %p98 = scmp.eq.s32.totalorder %s17, 0
      %p99 = por %p97, %p98
      %p100 = scmp.ne.s32.totalorder %s86, %s87
      %p101 = scmp.eq.s32.totalorder %s18, 3
      %p102 = por %p100, %p101
      %p104 = scmp.ne.s32.totalorder %s87, %s103
      %p105 = scmp.eq.s32.totalorder %s18, 0
      %p106 = por %p104, %p105
      %s107 = ssub.s32 %s20, %s27
      %p108 = scmp.eq.s32.totalorder %s107, 0
      %s110 = sadd.s32 %s109, 1
      %s111 = scalar_select %p108, %s109, %s110
      %p114 = pneg %p108
      %p115 = scmp.eq.s32.totalorder %s12, 3
      %p116 = por %p114, %p115
      %p117 = scmp.ne.s32.totalorder %s109, %s112
      %p118 = scmp.eq.s32.totalorder %s12, 0
      %p119 = por %p117, %p118
      %p120 = scmp.ne.s32.totalorder %s109, %s112
      %p121 = scmp.eq.s32.totalorder %s17, 3
      %p122 = por %p120, %p121
      %p123 = scmp.ne.s32.totalorder %s112, %s113
      %p124 = scmp.eq.s32.totalorder %s17, 0
      %p125 = por %p123, %p124
      %p126 = scmp.ne.s32.totalorder %s112, %s113
      %p127 = scmp.eq.s32.totalorder %s18, 3
      %p128 = por %p126, %p127
      %p130 = scmp.ne.s32.totalorder %s113, %s129
      %p131 = scmp.eq.s32.totalorder %s18, 0
      %p132 = por %p130, %p131
      %s133 = ssub.s32 %s19, %s31
      %p134 = scmp.eq.s32.totalorder %s133, 0
      %s136 = sadd.s32 %s135, 1
      %s137 = scalar_select %p134, %s135, %s136
      %p140 = pneg %p134
      %p141 = scmp.eq.s32.totalorder %s12, 3
      %p142 = por %p140, %p141
      %p143 = scmp.ne.s32.totalorder %s135, %s138
      %p144 = scmp.eq.s32.totalorder %s12, 0
      %p145 = por %p143, %p144
      %p146 = scmp.ne.s32.totalorder %s135, %s138
      %p147 = scmp.eq.s32.totalorder %s17, 3
      %p148 = por %p146, %p147
      %p149 = scmp.ne.s32.totalorder %s138, %s139
      %p150 = scmp.eq.s32.totalorder %s17, 0
      %p151 = por %p149, %p150
      %p152 = scmp.ne.s32.totalorder %s138, %s139
      %p153 = scmp.eq.s32.totalorder %s18, 3
      %p154 = por %p152, %p153
      %p156 = scmp.ne.s32.totalorder %s139, %s155
      %p157 = scmp.eq.s32.totalorder %s18, 0
      %p158 = por %p156, %p157
      %s159 = ssub.s32 %s20, %s27
      %p160 = scmp.eq.s32.totalorder %s159, 0
      %s162 = sadd.s32 %s161, 1
      %s163 = scalar_select %p160, %s161, %s162
      %p166 = pneg %p160
      %p167 = scmp.eq.s32.totalorder %s12, 3
      %p168 = por %p166, %p167
      %p169 = scmp.ne.s32.totalorder %s161, %s164
      %p170 = scmp.eq.s32.totalorder %s12, 0
      %p171 = por %p169, %p170
      %p172 = scmp.ne.s32.totalorder %s161, %s164
      %p173 = scmp.eq.s32.totalorder %s17, 3
      %p174 = por %p172, %p173
      %p175 = scmp.ne.s32.totalorder %s164, %s165
      %p176 = scmp.eq.s32.totalorder %s17, 0
      %p177 = por %p175, %p176
      %p178 = scmp.ne.s32.totalorder %s164, %s165
      %p179 = scmp.eq.s32.totalorder %s18, 3
      %p180 = por %p178, %p179
      %p182 = scmp.ne.s32.totalorder %s165, %s181
      %p183 = scmp.eq.s32.totalorder %s18, 0
      %p184 = por %p182, %p183
      %s185 = ssub.s32 %s19, %s31
      %s186 = ssub.s32 %s20, %s27
      %s187 = sor.u32 %s185, %s186
      %p188 = scmp.eq.s32.totalorder %s187, 0
      %s190 = sadd.s32 %s189, 1
      %s191 = scalar_select %p188, %s189, %s190
      %p194 = pneg %p188
      %p195 = scmp.eq.s32.totalorder %s12, 3
      %p196 = por %p194, %p195
      %p197 = scmp.ne.s32.totalorder %s189, %s192
      %p198 = scmp.eq.s32.totalorder %s12, 0
      %p199 = por %p197, %p198
      %p200 = scmp.ne.s32.totalorder %s189, %s192
      %p201 = scmp.eq.s32.totalorder %s17, 3
      %p202 = por %p200, %p201
      %p203 = scmp.ne.s32.totalorder %s192, %s193
      %p204 = scmp.eq.s32.totalorder %s17, 0
      %p205 = por %p203, %p204
      %p206 = scmp.ne.s32.totalorder %s192, %s193
      %p207 = scmp.eq.s32.totalorder %s18, 3
      %p208 = por %p206, %p207
      %p210 = scmp.ne.s32.totalorder %s193, %s209
      %p211 = scmp.eq.s32.totalorder %s18, 0
      %p212 = por %p210, %p211
      %p213 = scmp.le.s32.totalorder 1, %s12
      %p214 = scmp.lt.s32.totalorder %s12, 5
      %p215 = pnand %p213, %p214
      %p216 = pneg %p215
      // Predicated region
      $region9: #{tgn_forward.10} parent=5 // pred_check
        _
      $region10: #{tgn_forward.10} parent=5 // pred_check_branch
        %218 = sbr.rel (%p215) target = $region12
      $region11: #{tgn_forward.10} parent=5 // pred_region
        %s219 = ssub.s32 %s12, 1
        // Predicated region
        $region13: #{tgn_forward.10} parent=11 // pred_check
          %p220 = pneg %p45
        $region14: #{tgn_forward.10} parent=11 // pred_check_branch
          %222 = sbr.rel (%p220) target = $region16
        $region15: #{tgn_forward.10} parent=11 // pred_region
          _
        $region16: #{tgn_forward.10} parent=11 // pred_fallthru
          _
        // Predicated region
        $region17: #{tgn_forward.10} parent=11 // pred_check
          %p223 = pneg %p151
        $region18: #{tgn_forward.10} parent=11 // pred_check_branch
          %225 = sbr.rel (%p223) target = $region20
        $region19: #{tgn_forward.10} parent=11 // pred_region
          %s226 = smul.u32 2, %s21
          %p227 = scmp.lt.s32.totalorder %s226, 1
          %s228 = scalar_select %p227, %s226, 1
          %s229 = smul.addr %s228, 4
          %s230 = scalar_lea.vmem %s4, %s229
          %s231 = smul.u32 2, %s21
        $region20: #{tgn_forward.10} parent=11 // pred_fallthru
          _
      $region12: #{tgn_forward.10} parent=5 // pred_fallthru
        _
      %p232 = scmp.lt.s32.totalorder %s12, 4
      // Predicated region
      $region21: #{tgn_forward.10} parent=5 // pred_check
        %p233 = pneg %p232
      $region22: #{tgn_forward.10} parent=5 // pred_check_branch
        %235 = sbr.rel (%p233) target = $region24
      $region23: #{tgn_forward.10} parent=5 // pred_region
        // Predicated region
        $region25: #{tgn_forward.10} parent=23 // pred_check
          %p236 = pneg %p67
        $region26: #{tgn_forward.10} parent=23 // pred_check_branch
          %238 = sbr.rel (%p236) target = $region28
        $region27: #{tgn_forward.10} parent=23 // pred_region
          %s239 = smul.u32 2, %s19
          %p240 = scmp.lt.s32.totalorder %s20, 3
          %s241 = scalar_select %p240, %s20, 3
          %p242 = scmp.lt.s32.totalorder %s239, 1
          %s243 = scalar_select %p242, %s239, 1
          %s244 = smul.addr %s241, 2
          %s245 = sadd.s32 %s243, %s244
          %s246 = smul.addr %s245, 4
          %s247 = scalar_lea.vmem %s1, %s246
          %s248 = smul.u32 2, %s19
        $region28: #{tgn_forward.10} parent=23 // pred_fallthru
          _
        // Predicated region
        $region29: #{tgn_forward.10} parent=23 // pred_check
          %p249 = pneg %p93
        $region30: #{tgn_forward.10} parent=23 // pred_check_branch
          %251 = sbr.rel (%p249) target = $region32
        $region31: #{tgn_forward.10} parent=23 // pred_region
          %p252 = scmp.lt.s32.totalorder %s20, 3
          %s253 = scalar_select %p252, %s20, 3
          %s254 = scalar_lea.vmem %s2, %s253
        $region32: #{tgn_forward.10} parent=23 // pred_fallthru
          _
        // Predicated region
        $region33: #{tgn_forward.10} parent=23 // pred_check
          %p255 = pneg %p119
        $region34: #{tgn_forward.10} parent=23 // pred_check_branch
          %257 = sbr.rel (%p255) target = $region36
        $region35: #{tgn_forward.10} parent=23 // pred_region
          %p258 = scmp.lt.s32.totalorder %s20, 3
          %s259 = scalar_select %p258, %s20, 3
          %s260 = scalar_lea.vmem %s3, %s259
        $region36: #{tgn_forward.10} parent=23 // pred_fallthru
          _
        // Predicated region
        $region37: #{tgn_forward.10} parent=23 // pred_check
          %p261 = pneg %p171
        $region38: #{tgn_forward.10} parent=23 // pred_check_branch
          %263 = sbr.rel (%p261) target = $region40
        $region39: #{tgn_forward.10} parent=23 // pred_region
          %p264 = scmp.lt.s32.totalorder %s20, 3
          %s265 = scalar_select %p264, %s20, 3
          %s266 = scalar_lea.vmem %s5, %s265
        $region40: #{tgn_forward.10} parent=23 // pred_fallthru
          _
      $region24: #{tgn_forward.10} parent=5 // pred_fallthru
        _
      %p267 = scmp.le.s32.totalorder 1, %s12
      %p268 = scmp.lt.s32.totalorder %s12, 5
      %p269 = pnand %p267, %p268
      %p270 = pneg %p269
      // Predicated region
      $region41: #{tgn_forward.10} parent=5 // pred_check
        _
      $region42: #{tgn_forward.10} parent=5 // pred_check_branch
        %272 = sbr.rel (%p269) target = $region44
      $region43: #{tgn_forward.10} parent=5 // pred_region
        %s273 = ssub.s32 %s12, 1
        %p274 = pneg %p45
        %p275 = pneg %p42
        %s276 = smul.u32 2, %s21
        %p277 = scmp.lt.s32.totalorder %s22, 3
        %s278 = scalar_select %p277, %s22, 3
        %p279 = scmp.lt.s32.totalorder %s276, 1
        %s280 = scalar_select %p279, %s276, 1
        %s281 = smul.addr %s278, 2
        %s282 = sadd.s32 %s280, %s281
        %s283 = smul.addr %s282, 4
        %s284 = scalar_lea.vmem %s1, %s283
        %p285 = pneg %p73
        %p286 = pneg %p70
        %p287 = scmp.lt.s32.totalorder %s22, 3
        %s288 = scalar_select %p287, %s22, 3
        %s289 = scalar_lea.vmem %s2, %s288
        %p290 = pneg %p99
        %p291 = pneg %p96
        %p292 = scmp.lt.s32.totalorder %s22, 3
        %s293 = scalar_select %p292, %s22, 3
        %s294 = scalar_lea.vmem %s3, %s293
        %p295 = pneg %p125
        %p296 = pneg %p122
        %s297 = smul.u32 2, %s21
        %p298 = scmp.lt.s32.totalorder %s297, 1
        %s299 = scalar_select %p298, %s297, 1
        %s300 = smul.addr %s299, 4
        %s301 = scalar_lea.vmem %s4, %s300
        %p302 = pneg %p151
        %p303 = pneg %p148
        %p304 = scmp.lt.s32.totalorder %s22, 3
        %s305 = scalar_select %p304, %s22, 3
        %s306 = scalar_lea.vmem %s5, %s305
        %p307 = pneg %p177
        %p308 = pneg %p174
        %p309 = pneg %p205
        %p310 = pneg %p202
        %s311 = sand.u32 %s192, 1
        %s312 = sand.u32 %s192, 1
        %s313 = smul.addr %s312, 8
        %s314 = scalar_lea.vmem [#allocation2], %s313
        %s315 = smul.u32 2, %s21
        %p316 = scmp.lt.s32.totalorder %s22, 3
        %s317 = scalar_select %p316, %s22, 3
        %p318 = scmp.lt.s32.totalorder %s315, 1
        %s319 = scalar_select %p318, %s315, 1
        %s320 = smul.addr %s317, 2
        %s321 = sadd.s32 %s319, %s320
        %s322 = smul.addr %s321, 4
        %s323 = scalar_lea.vmem %s1, %s322
        %s324 = smul.u32 2, %s21
        %p325 = scmp.lt.s32.totalorder %s22, 3
        %s326 = scalar_select %p325, %s22, 3
        %s327 = scalar_lea.vmem %s2, %s326
        %p328 = scmp.lt.s32.totalorder %s22, 3
        %s329 = scalar_select %p328, %s22, 3
        %s330 = scalar_lea.vmem %s3, %s329
        %s331 = smul.u32 2, %s21
        %p332 = scmp.lt.s32.totalorder %s331, 1
        %s333 = scalar_select %p332, %s331, 1
        %s334 = smul.addr %s333, 4
        %s335 = scalar_lea.vmem %s4, %s334
        %s336 = smul.u32 2, %s21
        %p337 = scmp.lt.s32.totalorder %s22, 3
        %s338 = scalar_select %p337, %s22, 3
        %s339 = scalar_lea.vmem %s5, %s338
        %s340 = smul.u32 2, %s21
        %s342 = smul.u32 %s22, 2
        %s343 = smul.addr %s342, 4
        %s344 = scalar_lea.vmem %s0, %s343
        %v345 = vld [vmem:[%s344] sm:$0xf]
        %v346 = vld [vmem:[%s344 + $0x4] sm:$0x3]
        %v347 = vld [vmem:[%s323] sm:$0xf]
        %v348 = vld [vmem:[%s323 + $0x4] sm:$0x3]
        %v349 = vld [vmem:[%s327] sm:$0x1]
        %v350 = vld [vmem:[%s330] sm:$0x1]
        %v351 = vld [vmem:[%s335] sm:$0xf]
        %v352 = vld [vmem:[%s335 + $0x4] sm:$0x3]
        %v353 = vunpack.c.l.bf16 %v347
        %v354 = vunpack.c.l.bf16 %v348
        %v356 = vlaneseq
        %v357 = vshrl.u32 %v356, 7
        %v358 = vsub.s32 0, %v357
        %v359 = vrot.slane %v350, %v358
        %v361 = vmul.f32 %v353, %v359
        %v362 = vmul.f32 %v354, %v359
        %363 = vadd.xlane.f32.xlu0 %v361
        %v364 = vpop.xlane.xlu0 %363
        %vm365 = vcmask 1043456
        %v366 = vsel %vm365, %v362, 0.0
        %367 = vadd.xlane.f32.xlu0 %v366
        %v368 = vpop.xlane.xlu0 %367
        %v369 = vpack.c.bf16 %v349, %v349
        %v372 = vunpack.c.l.b16 %v345
        %v373 = vunpack.c.l.b16 %v346
        %v374 = vpack.c.b16 %v373, %v372
        %376 = vmatprep.subr.bf16.mxu0 0
        %377 = vmatpush1.bf16.xpose.msra.mxu0 %v374
        %378 = vmatprep.subr.bf16.mxu0 0
        %379 = vmatpush1.bf16.xpose.msra.mxu0 0
        %380 = vmatprep.subr.bf16.mxu0 0
        %381 = vmatpush1.bf16.xpose.msra.mxu0 0
        %382 = vmatprep.subr.bf16.mxu0 0
        %383 = vmatpush1.bf16.xpose.msra.mxu0 0
        %384 = vmatprep.subr.bf16.mxu0 0
        %385 = vmatpush1.bf16.xpose.msra.mxu0 0
        %386 = vmatprep.subr.bf16.mxu0 0
        %387 = vmatpush1.bf16.xpose.msra.mxu0 0
        %388 = vmatprep.subr.bf16.mxu0 0
        %389 = vmatpush1.bf16.xpose.msra.mxu0 0
        %390 = vmatprep.subr.bf16.mxu0 0
        %391 = vmatpush1.bf16.xpose.msra.mxu0 0
        %392 = vmatprep.subr.bf16.mxu0 0
        %393 = vmatpush1.bf16.xpose.msra.mxu0 0
        %394 = vmatprep.subr.bf16.mxu0 0
        %395 = vmatpush1.bf16.xpose.msra.mxu0 0
        %396 = vmatprep.subr.bf16.mxu0 0
        %397 = vmatpush1.bf16.xpose.msra.mxu0 0
        %398 = vmatprep.subr.bf16.mxu0 0
        %399 = vmatpush1.bf16.xpose.msra.mxu0 0
        %400 = vmatprep.subr.bf16.mxu0 0
        %401 = vmatpush1.bf16.xpose.msra.mxu0 0
        %402 = vmatprep.subr.bf16.mxu0 0
        %403 = vmatpush1.bf16.xpose.msra.mxu0 0
        %404 = vmatprep.subr.bf16.mxu0 0
        %405 = vmatpush1.bf16.xpose.msra.mxu0 0
        %406 = vmatprep.subr.bf16.mxu0 0
        %407 = vmatpush1.bf16.xpose.msra.mxu0 0
        %408 = vmatprep.mubr.bf16.mxu0 0
        %409 = vmatmul.mubr.bf16.gmra.mrb[0].mxu0 %v369
        %v410 = vpop.f32.mrb[0].mxu0
        %v411 = vadd.f32 0.0, %v410
        %v412 = vpop.f32.mrb[0].mxu0
        %v413 = vpop.f32.mrb[0].mxu0
        %v414 = vpop.f32.mrb[0].mxu0
        %415 = vdwg.mxu0
        %v416 = vlaneseq
        %v417 = vshrl.u32 %v416, 7
        %v418 = vsub.s32 0, %v417
        %v419 = vrot.slane %v411, %v418
        %v420 = vadd.f32 %v364, %v419
        %v421 = vadd.f32 %v368, %v419
        %vm422 = vcmp.gt.f32.partialorder %v420, 0.0
        %vm423 = vcmp.gt.f32.partialorder %v421, 0.0
        %v424 = vmul.f32 %v420, 0.2
        %v425 = vmul.f32 %v421, 0.2
        %v426 = vsel %vm422, %v420, %v424
        %v427 = vsel %vm423, %v421, %v425
        %vm428 = vcmask 97280
        %v429 = vsel %vm428, %v426, -inf
        %430 = vmax.xlane.f32.xlu0 %v429
        %v431 = vpop.xlane.xlu0 %430
        %vm432 = vcmask 93184
        %v433 = vsel %vm432, %v427, -inf
        %434 = vmax.xlane.f32.xlu0 %v433
        %v435 = vpop.xlane.xlu0 %434
        %v436 = vunpack.c.l.bf16 %v351
        %v437 = vunpack.c.l.bf16 %v352
        %v438 = vsub.f32 %v426, %v431
        %v439 = vsub.f32 %v427, %v435
        %v440 = vmul.f32 %v438, 1.442695
        %v441 = vpow.pop %v440
        %v442 = vmul.f32 %v439, 1.442695
        %v443 = vpow.pop %v442
        %v444 = vmul.f32 %v436, %v441
        %v445 = vmul.f32 %v437, %v443
        %v446 = vsel %vm428, %v444, 0.0
        %447 = vadd.xlane.f32.xlu0 %v446
        %v448 = vpop.xlane.xlu0 %447
        %v449 = vsel %vm432, %v445, 0.0
        %450 = vadd.xlane.f32.xlu0 %v449
        %v451 = vpop.xlane.xlu0 %450
        %v452 = vpack.c.bf16 %v445, %v444
        %v454 = vsel %vm428, %v452, 0
        %vm456 = vcmask 1045504
        %v458 = vsel %vm456, %v374, 0
        %460 = vmatprep.subr.bf16.mxu0 0
        %461 = vmatpush1.bf16.msra.mxu0 %v458
        %462 = vmatprep.subr.bf16.mxu0 0
        %463 = vmatpush1.bf16.msra.mxu0 0
        %464 = vmatprep.subr.bf16.mxu0 0
        %465 = vmatpush1.bf16.msra.mxu0 0
        %466 = vmatprep.subr.bf16.mxu0 0
        %467 = vmatpush1.bf16.msra.mxu0 0
        %468 = vmatprep.subr.bf16.mxu0 0
        %469 = vmatpush1.bf16.msra.mxu0 0
        %470 = vmatprep.subr.bf16.mxu0 0
        %471 = vmatpush1.bf16.msra.mxu0 0
        %472 = vmatprep.subr.bf16.mxu0 0
        %473 = vmatpush1.bf16.msra.mxu0 0
        %474 = vmatprep.subr.bf16.mxu0 0
        %475 = vmatpush1.bf16.msra.mxu0 0
        %476 = vmatprep.subr.bf16.mxu0 0
        %477 = vmatpush1.bf16.msra.mxu0 0
        %478 = vmatprep.subr.bf16.mxu0 0
        %479 = vmatpush1.bf16.msra.mxu0 0
        %480 = vmatprep.subr.bf16.mxu0 0
        %481 = vmatpush1.bf16.msra.mxu0 0
        %482 = vmatprep.subr.bf16.mxu0 0
        %483 = vmatpush1.bf16.msra.mxu0 0
        %484 = vmatprep.subr.bf16.mxu0 0
        %485 = vmatpush1.bf16.msra.mxu0 0
        %486 = vmatprep.subr.bf16.mxu0 0
        %487 = vmatpush1.bf16.msra.mxu0 0
        %488 = vmatprep.subr.bf16.mxu0 0
        %489 = vmatpush1.bf16.msra.mxu0 0
        %490 = vmatprep.subr.bf16.mxu0 0
        %491 = vmatpush1.bf16.msra.mxu0 0
        %492 = vmatprep.mubr.bf16.mxu0 0
        %493 = vmatmul.mubr.bf16.gmra.mrb[0].mxu0 %v454
        %v494 = vpop.f32.mrb[0].mxu0
        %v495 = vadd.f32 0.0, %v494
        %v496 = vpop.f32.mrb[0].mxu0
        %v497 = vpop.f32.mrb[0].mxu0
        %v498 = vadd.f32 0.0, %v497
        %v499 = vpop.f32.mrb[0].mxu0
        %500 = vdwg.mxu0
        %v501 = vrcp.pop %v448
        %v502 = vrcp.pop %v451
        %v503 = vmul.f32 %v495, %v501
        %v504 = vmul.f32 %v498, %v502
        %v505 = vld [vmem:[%s339] sm:$0x1]
        %v507 = vlaneseq
        %v508 = vshrl.u32 %v507, 7
        %v509 = vsub.s32 0, %v508
        %v510 = vrot.slane %v505, %v509
        %v512 = vadd.f32 %v503, %v510
        %v513 = vadd.f32 %v504, %v510
        %v514 = vmax.f32 %v512, 0.0
        %v515 = vmax.f32 %v513, 0.0
        %v516 = vpack.c.bf16 %v515, %v514
        %v518 = vunpack.c.l.b16 %v516
        %v519 = vunpack.c.h.b16 %v516
        %v520 = vpack.c.b16 %v518, %v518
        %v521 = vpack.c.b16 %v519, %v519
        %524 = vst [vmem:[%s314] sm:$0xf] %v520
        %525 = vst [vmem:[%s314 + $0x4] sm:$0x3] %v521
        %s526 = sand.u32 %s192, 1
        %s527 = sand.u32 %s192, 1
        %s528 = smul.addr %s527, 8
        %s529 = scalar_lea.vmem [#allocation2], %s528
        // Predicated region
        $region45: #{tgn_forward.10} parent=43 // pred_check
          %p530 = pneg %p202
        $region46: #{tgn_forward.10} parent=43 // pred_check_branch
          %532 = sbr.rel (%p530) target = $region48
        $region47: #{tgn_forward.10} parent=43 // pred_region
          %s533 = smul.u32 2, %s21
          %s534 = smul.addr %s533, 4
          %s535 = sadd.s32 %s22, %s534
          %s536 = smul.addr %s535, 4
          %s537 = scalar_lea.vmem %s6, %s536
          // Predicated region
          $region49: #{tgn_forward.10} parent=47 // pred_check
            _
          $region50: #{tgn_forward.10} parent=47 // pred_check_branch
            %539 = sbr.rel (0) target = $region52
          $region51: #{tgn_forward.10} parent=47 // pred_region
            // Predicated region
            $region53: #{tgn_forward.10} parent=51 // pred_check
              _
            $region54: #{tgn_forward.10} parent=51 // pred_check_branch
              %541 = sbr.rel target = $region56
            $region55: #{tgn_forward.10} parent=51 // pred_region
              // Predicated region
              $region68: #{tgn_forward.10} parent=55 // pred_check
                _
              $region69: #{tgn_forward.10} parent=55 // pred_check_branch
                %558 = sbr.rel (0) target = $region71
              $region70: #{tgn_forward.10} parent=55 // pred_region
                loop: start=0, step=1, limit=1
                $region72: #{tgn_forward.10} parent=70 // loop_pre_header
                  _
                $region73: #{tgn_forward.10} parent=70 // loop_header
                  %s560 = sphi 0, %s564
                  %p561 = scmp.ge.s32.totalorder %s560, 1
                  %s565 = sphi %s529, %s529
                  %s566 = sphi %s537, %s537
                $region74: #{tgn_forward.10} parent=70 // loop_header_branch
                  %563 = sbr.rel (%p561) target = $region78
                $region75: #{tgn_forward.10} parent=70 // loop_body
                  _
                $region76: #{tgn_forward.10} parent=70 // loop_footer
                  %s564 = sadd.s32 1, %s560
                $region77: #{tgn_forward.10} parent=70 // loop_footer_branch
                  %559 = sbr.rel target = $region73
                $region78: #{tgn_forward.10} parent=70 // loop_exit
                  _
                loop: start=0, step=1, limit=1
                $region79: #{tgn_forward.10} parent=70 // loop_pre_header
                  _
                $region80: #{tgn_forward.10} parent=70 // loop_header
                  %s569 = sphi 0, %s573
                  %p570 = scmp.ge.s32.totalorder %s569, 1
                  %s574 = sphi %s529, %s529
                  %s575 = sphi %s537, %s537
                $region81: #{tgn_forward.10} parent=70 // loop_header_branch
                  %572 = sbr.rel (%p570) target = $region85
                $region82: #{tgn_forward.10} parent=70 // loop_body
                  %v576 = vld [vmem:[%s574] sm:$0xf]
                  %577 = vst [vmem:[%s575] sm:$0xf] %v576
                  %v578 = vld [vmem:[%s574 + $0x4] sm:$0xf]
                  %579 = vst [vmem:[%s575 + $0x10] sm:$0xf] %v578
                $region83: #{tgn_forward.10} parent=70 // loop_footer
                  %s573 = sadd.s32 1, %s569
                $region84: #{tgn_forward.10} parent=70 // loop_footer_branch
                  %568 = sbr.rel target = $region80
                $region85: #{tgn_forward.10} parent=70 // loop_exit
                  _
              $region71: #{tgn_forward.10} parent=55 // pred_fallthru
                _
            $region56: #{tgn_forward.10} parent=51 // pred_fallthru
              _
            // Predicated region
            $region57: #{tgn_forward.10} parent=51 // pred_check
              _
            $region58: #{tgn_forward.10} parent=51 // pred_check_branch
              %543 = sbr.rel (0) target = $region60
            $region59: #{tgn_forward.10} parent=51 // pred_region
              loop: start=0, step=1, limit=1
              $region61: #{tgn_forward.10} parent=59 // loop_pre_header
                _
              $region62: #{tgn_forward.10} parent=59 // loop_header
                %s546 = sphi 0, %s550
                %p547 = scmp.ge.s32.totalorder %s546, 1
                %s551 = sphi %s529, %s529
                %s552 = sphi %s537, %s537
              $region63: #{tgn_forward.10} parent=59 // loop_header_branch
                %549 = sbr.rel (%p547) target = $region67
              $region64: #{tgn_forward.10} parent=59 // loop_body
                %v553 = vld [vmem:[%s551] sm:$0xf]
                %554 = vst [vmem:[%s552] sm:$0xf] %v553
                %v555 = vld [vmem:[%s551 + $0x4] sm:$0xf]
                %556 = vst [vmem:[%s552 + $0x10] sm:$0xf] %v555
              $region65: #{tgn_forward.10} parent=59 // loop_footer
                %s550 = sadd.s32 1, %s546
              $region66: #{tgn_forward.10} parent=59 // loop_footer_branch
                %545 = sbr.rel target = $region62
              $region67: #{tgn_forward.10} parent=59 // loop_exit
                _
            $region60: #{tgn_forward.10} parent=51 // pred_fallthru
              _
          $region52: #{tgn_forward.10} parent=47 // pred_fallthru
            _
          %580 = vnop
        $region48: #{tgn_forward.10} parent=43 // pred_fallthru
          _
      $region44: #{tgn_forward.10} parent=5 // pred_fallthru
        _
      %p581 = scmp.le.s32.totalorder 2, %s12
      // Predicated region
      $region86: #{tgn_forward.10} parent=5 // pred_check
        %p582 = pneg %p581
      $region87: #{tgn_forward.10} parent=5 // pred_check_branch
        %584 = sbr.rel (%p582) target = $region89
      $region88: #{tgn_forward.10} parent=5 // pred_region
        %s585 = ssub.s32 %s12, 2
        // Predicated region
        $region90: #{tgn_forward.10} parent=88 // pred_check
          %p586 = pneg %p208
        $region91: #{tgn_forward.10} parent=88 // pred_check_branch
          %588 = sbr.rel (%p586) target = $region93
        $region92: #{tgn_forward.10} parent=88 // pred_region
          %s589 = sand.u32 %s193, 1
          %s590 = sand.u32 %s193, 1
          %s591 = smul.addr %s590, 8
          %s592 = scalar_lea.vmem [#allocation2], %s591
        $region93: #{tgn_forward.10} parent=88 // pred_fallthru
          _
      $region89: #{tgn_forward.10} parent=5 // pred_fallthru
        _
    $region6: #{tgn_forward.10} parent=1 // loop_footer
      %s16 = sadd.s32 1, %s12
    $region7: #{tgn_forward.10} parent=1 // loop_footer_branch
      %11 = sbr.rel target = $region3
    $region8: #{tgn_forward.10} parent=1 // loop_exit
      _

// kernel: squeeze.5
$region0: #{squeeze.5}
  %s0 = inlined_call_operand.vmem [shape: bf16[1,12,128], index: 0, kind: input, shape index: {}]
  %s1 = inlined_call_operand.vmem [shape: bf16[12,4,32], index: 1, kind: output, shape index: {}]
  $region1: #{squeeze.5} parent=0
    #allocation0 [shape = 'u8[49152]{0}', space=vmem, size = 0xc000, scoped, tag = 'scoped mem for output reshape']
    #allocation1 [shape = 'u8[8192]{0}', space=vmem, size = 0x2000, scoped, tag = 'scoped mem for input reshape']
    %s3 = smul.u32 4, 2
    %s4 = sshllo.u32 0, %s3
    %s5 = scalar_lea.vmem %s0, 4
    %s6 = sshrl.u32 %s4, 1
    %s7 = sor.u32 %s4, %s6
    %s8 = sand.u32 %s7, 85
    %s9 = sshrl.u32 %s8, 1
    %s10 = sor.u32 %s8, %s9
    %s11 = sand.u32 51, %s10
    %s12 = sshrl.u32 %s11, 2
    %s13 = sor.u32 %s11, %s12
    %s14 = sand.u32 15, %s13
    %v15 = vld [vmem:[%s5] sm:%s14]
    %v16 = vunpack.c.l.bf16 %v15
    %v17 = vunpack.c.h.bf16 %v15
    %s18 = scalar_lea.vmem [#allocation1], 8
    %19 = vst [vmem:[%s18] sm:%s4] %v16
    %s20 = sshrl.u32 %s4, 1
    %s21 = sor.u32 %s4, %s20
    %s22 = sand.u32 %s21, 85
    %s23 = sshrl.u32 %s22, 1
    %s24 = sor.u32 %s22, %s23
    %s25 = sand.u32 51, %s24
    %s26 = sshrl.u32 %s25, 2
    %s27 = sor.u32 %s25, %s26
    %s28 = sand.u32 15, %s27
    %v29 = vld [vmem:[%s0] sm:%s28]
    %v30 = vunpack.c.l.bf16 %v29
    %v31 = vunpack.c.h.bf16 %v29
    %32 = vst [vmem:[#allocation1] sm:%s4] %v30
    %v33 = vld [vmem:[#allocation1] sm:$0xff]
    %vm34 = vcmask 261120
    %35 = vst.msk [vmem:[#allocation0] ss:$8 sm:$0xf] %vm34, %v33
    %36 = vst.msk [vmem:[#allocation0] ss:$8 sm:$0xf0] %vm34, %v33
    %s37 = scalar_lea.vmem [#allocation1], 8
    %v38 = vld [vmem:[%s37] sm:$0xf]
    %vm39 = vcmask 261120
    %s40 = scalar_lea.vmem [#allocation0], 64
    %41 = vst.msk [vmem:[%s40] ss:$8 sm:$0xf] %vm39, %v38
    %v42 = vld [vmem:[#allocation1] sm:$0xff]
    %43 = vrot.lane.b32.xlu0 %v42, 96
    %v44 = vpop.permute.xlu0 %43
    %vm45 = vcmask 261120
    %s46 = scalar_lea.vmem [#allocation0], 1
    %47 = vst.msk [vmem:[%s46] ss:$8 sm:$0xf] %vm45, %v44
    %s48 = scalar_lea.vmem [#allocation0], 1
    %49 = vst.msk [vmem:[%s48] ss:$8 sm:$0xf0] %vm45, %v44
    %s50 = scalar_lea.vmem [#allocation1], 8
    %v51 = vld [vmem:[%s50] sm:$0xf]
    %52 = vrot.lane.b32.xlu0 %v51, 96
    %v53 = vpop.permute.xlu0 %52
    %vm54 = vcmask 261120
    %s55 = scalar_lea.vmem [#allocation0], 65
    %56 = vst.msk [vmem:[%s55] ss:$8 sm:$0xf] %vm54, %v53
    %v57 = vld [vmem:[#allocation1] sm:$0xff]
    %58 = vrot.lane.b32.xlu0 %v57, 64
    %v59 = vpop.permute.xlu0 %58
    %vm60 = vcmask 261120
    %s61 = scalar_lea.vmem [#allocation0], 2
    %62 = vst.msk [vmem:[%s61] ss:$8 sm:$0xf] %vm60, %v59
    %s63 = scalar_lea.vmem [#allocation0], 2
    %64 = vst.msk [vmem:[%s63] ss:$8 sm:$0xf0] %vm60, %v59
    %s65 = scalar_lea.vmem [#allocation1], 8
    %v66 = vld [vmem:[%s65] sm:$0xf]
    %67 = vrot.lane.b32.xlu0 %v66, 64
    %v68 = vpop.permute.xlu0 %67
    %vm69 = vcmask 261120
    %s70 = scalar_lea.vmem [#allocation0], 66
    %71 = vst.msk [vmem:[%s70] ss:$8 sm:$0xf] %vm69, %v68
    %v72 = vld [vmem:[#allocation1] sm:$0xff]
    %73 = vrot.lane.b32.xlu0 %v72, 32
    %v74 = vpop.permute.xlu0 %73
    %vm75 = vcmask 261120
    %s76 = scalar_lea.vmem [#allocation0], 3
    %77 = vst.msk [vmem:[%s76] ss:$8 sm:$0xf] %vm75, %v74
    %s78 = scalar_lea.vmem [#allocation0], 3
    %79 = vst.msk [vmem:[%s78] ss:$8 sm:$0xf0] %vm75, %v74
    %s80 = scalar_lea.vmem [#allocation1], 8
    %v81 = vld [vmem:[%s80] sm:$0xf]
    %82 = vrot.lane.b32.xlu0 %v81, 32
    %v83 = vpop.permute.xlu0 %82
    %vm84 = vcmask 261120
    %s85 = scalar_lea.vmem [#allocation0], 67
    %86 = vst.msk [vmem:[%s85] ss:$8 sm:$0xf] %vm84, %v83
    %s88 = smul.u32 2, 2
    %s89 = sshllo.u32 0, %s88
    %s90 = sshrl.u32 %s88, 1
    %v91 = vld [vmem:[#allocation0] sm:%s89]
    %v92 = vpack.c.bf16 0.0, %v91
    %s93 = sshllo.u32 0, %s90
    %94 = vst [vmem:[%s1] sm:%s93] %v92
    %s95 = scalar_lea.vmem [#allocation0], 8
    %v96 = vld [vmem:[%s95] sm:%s89]
    %v97 = vpack.c.bf16 0.0, %v96
    %s98 = sshllo.u32 0, %s90
    %s99 = scalar_lea.vmem %s1, 2
    %100 = vst [vmem:[%s99] sm:%s98] %v97
    %s101 = scalar_lea.vmem [#allocation0], 16
    %v102 = vld [vmem:[%s101] sm:%s89]
    %v103 = vpack.c.bf16 0.0, %v102
    %s104 = sshllo.u32 0, %s90
    %s105 = smul.addr 2, 2
    %s106 = scalar_lea.vmem %s1, %s105
    %107 = vst [vmem:[%s106] sm:%s104] %v103
    %s108 = scalar_lea.vmem [#allocation0], 24
    %v109 = vld [vmem:[%s108] sm:%s89]
    %v110 = vpack.c.bf16 0.0, %v109
    %s111 = sshllo.u32 0, %s90
    %s112 = smul.addr 2, 3
    %s113 = scalar_lea.vmem %s1, %s112
    %114 = vst [vmem:[%s113] sm:%s111] %v110
    %s115 = scalar_lea.vmem [#allocation0], 32
    %v116 = vld [vmem:[%s115] sm:%s89]
    %v117 = vpack.c.bf16 0.0, %v116
    %s118 = sshllo.u32 0, %s90
    %s119 = smul.addr 2, 4
    %s120 = scalar_lea.vmem %s1, %s119
    %121 = vst [vmem:[%s120] sm:%s118] %v117
    %s122 = scalar_lea.vmem [#allocation0], 40
    %v123 = vld [vmem:[%s122] sm:%s89]
    %v124 = vpack.c.bf16 0.0, %v123
    %s125 = sshllo.u32 0, %s90
    %s126 = smul.addr 2, 5
    %s127 = scalar_lea.vmem %s1, %s126
    %128 = vst [vmem:[%s127] sm:%s125] %v124
    %s129 = scalar_lea.vmem [#allocation0], 48
    %v130 = vld [vmem:[%s129] sm:%s89]
    %v131 = vpack.c.bf16 0.0, %v130
    %s132 = sshllo.u32 0, %s90
    %s133 = smul.addr 2, 6
    %s134 = scalar_lea.vmem %s1, %s133
    %135 = vst [vmem:[%s134] sm:%s132] %v131
    %s136 = scalar_lea.vmem [#allocation0], 56
    %v137 = vld [vmem:[%s136] sm:%s89]
    %v138 = vpack.c.bf16 0.0, %v137
    %s139 = sshllo.u32 0, %s90
    %s140 = smul.addr 2, 7
    %s141 = scalar_lea.vmem %s1, %s140
    %142 = vst [vmem:[%s141] sm:%s139] %v138
    %s143 = scalar_lea.vmem [#allocation0], 64
    %v144 = vld [vmem:[%s143] sm:%s89]
    %v145 = vpack.c.bf16 0.0, %v144
    %s146 = sshllo.u32 0, %s90
    %s147 = smul.addr 2, 8
    %s148 = scalar_lea.vmem %s1, %s147
    %149 = vst [vmem:[%s148] sm:%s146] %v145
    %s150 = scalar_lea.vmem [#allocation0], 72
    %v151 = vld [vmem:[%s150] sm:%s89]
    %v152 = vpack.c.bf16 0.0, %v151
    %s153 = sshllo.u32 0, %s90
    %s154 = smul.addr 2, 9
    %s155 = scalar_lea.vmem %s1, %s154
    %156 = vst [vmem:[%s155] sm:%s153] %v152
    %s157 = scalar_lea.vmem [#allocation0], 80
    %v158 = vld [vmem:[%s157] sm:%s89]
    %v159 = vpack.c.bf16 0.0, %v158
    %s160 = sshllo.u32 0, %s90
    %s161 = smul.addr 2, 10
    %s162 = scalar_lea.vmem %s1, %s161
    %163 = vst [vmem:[%s162] sm:%s160] %v159
    %s164 = scalar_lea.vmem [#allocation0], 88
    %v165 = vld [vmem:[%s164] sm:%s89]
    %v166 = vpack.c.bf16 0.0, %v165
    %s167 = sshllo.u32 0, %s90
    %s168 = smul.addr 2, 11
    %s169 = scalar_lea.vmem %s1, %s168
    %170 = vst [vmem:[%s169] sm:%s167] %v166

// kernel: tgn_forward.11
$region0: #{tgn_forward.11}
  #allocation0 [shape = 'u32[]', space=smem, size = 0x4, offset = 0x4, fixed_abs, tag = 'smem constant byte address 0x4 - core index']
  #allocation1 [shape = 'u32[144,128]{1,0:T(1,128)}', space=vmem, size = 0x12000, scoped, tag = 'internal scratch']
  #allocation2 [shape = 'f32[12,128]{1,0:T(8,128)}', space=vmem, size = 0x2000, scoped, tag = 'scratch operand']
  %s0 = inlined_call_operand.vmem [shape: bf16[12,512], index: 0, kind: input, shape index: {}]
  %s1 = inlined_call_operand.vmem [shape: bf16[512,512], index: 1, kind: input, shape index: {}]
  %s2 = inlined_call_operand.vmem [shape: bf16[4,12,128], index: 2, kind: output, shape index: {}]
  %s3 = sld [smem:[#allocation0]]
  $region90: #{tgn_forward.11} parent=0
    _
  %s5 = ssub.s32 1, %s3
  %s6 = scalar_select 0, %s5, %s3
  $region1: #{tgn_forward.11} parent=0
    #allocation3 [shape = 'u8[262144]{0}', space=vmem, size = 0x40000, scoped, tag = 'input window, operand 1']
    loop: start=0, step=1, limit=6
    $region2: #{tgn_forward.11} parent=1 // loop_pre_header
      _
    $region3: #{tgn_forward.11} parent=1 // loop_header
      %s8 = sphi 0, %s12
      %p9 = scmp.ge.s32.totalorder %s8, 6
      %s15 = sphi 0, %s34
      %s16 = sphi 0, %s30
      %s17 = sphi 0, %s26
      %s18 = sphi 0, %s15
      %s19 = sphi 0, %s16
      %s20 = sphi 0, %s17
      %s21 = sphi 0, %s18
      %s22 = sphi 0, %s19
      %s23 = sphi 0, %s20
      %s39 = sphi 0, %s41
      %s42 = sphi 0, %s39
      %s43 = sphi 0, %s42
      %s59 = sphi 0, %s43
      %s67 = sphi 0, %s69
      %s70 = sphi 0, %s67
      %s71 = sphi 0, %s70
      %s87 = sphi 0, %s71
      %s95 = sphi 0, %s97
      %s98 = sphi 0, %s95
      %s99 = sphi 0, %s98
      %s115 = sphi 0, %s99
    $region4: #{tgn_forward.11} parent=1 // loop_header_branch
      %11 = sbr.rel (%p9) target = $region8
    $region5: #{tgn_forward.11} parent=1 // loop_body
      %s13 = ssub.s32 %s8, 1
      %s14 = ssub.s32 %s8, 2
      %s24 = sadd.s32 1, %s17
      %p25 = scmp.ge.s32.totalorder %s24, 1
      %s26 = scalar_select %p25, 0, %s24
      %s27 = sadd.s32 1, %s16
      %s28 = scalar_select %p25, %s27, %s16
      %p29 = scmp.ge.s32.totalorder %s28, 4
      %s30 = scalar_select %p29, 0, %s28
      %s31 = sadd.s32 1, %s15
      %s32 = scalar_select %p29, %s31, %s15
      %p33 = scmp.ge.s32.totalorder %s32, 1
      %s34 = scalar_select %p33, 0, %s32
      %s35 = ssub.s32 %s15, %s34
      %s36 = ssub.s32 %s17, %s26
      %s37 = sor.u32 %s35, %s36
      %p38 = scmp.eq.s32.totalorder %s37, 0
      %s40 = sadd.s32 %s39, 1
      %s41 = scalar_select %p38, %s39, %s40
      %p44 = pneg %p38
      %p45 = scmp.eq.s32.totalorder %s8, 3
      %p46 = por %p44, %p45
      %p47 = scmp.ne.s32.totalorder %s39, %s42
      %p48 = scmp.eq.s32.totalorder %s8, 0
      %p49 = por %p47, %p48
      %p50 = scmp.ne.s32.totalorder %s39, %s42
      %p51 = scmp.eq.s32.totalorder %s13, 3
      %p52 = por %p50, %p51
      %p53 = scmp.ne.s32.totalorder %s42, %s43
      %p54 = scmp.eq.s32.totalorder %s13, 0
      %p55 = por %p53, %p54
      %p56 = scmp.ne.s32.totalorder %s42, %s43
      %p57 = scmp.eq.s32.totalorder %s14, 3
      %p58 = por %p56, %p57
      %p60 = scmp.ne.s32.totalorder %s43, %s59
      %p61 = scmp.eq.s32.totalorder %s14, 0
      %p62 = por %p60, %p61
      %s63 = ssub.s32 %s17, %s26
      %s64 = ssub.s32 %s16, %s30
      %s65 = sor.u32 %s63, %s64
      %p66 = scmp.eq.s32.totalorder %s65, 0
      %s68 = sadd.s32 %s67, 1
      %s69 = scalar_select %p66, %s67, %s68
      %p72 = pneg %p66
      %p73 = scmp.eq.s32.totalorder %s8, 3
      %p74 = por %p72, %p73
      %p75 = scmp.ne.s32.totalorder %s67, %s70
      %p76 = scmp.eq.s32.totalorder %s8, 0
      %p77 = por %p75, %p76
      %p78 = scmp.ne.s32.totalorder %s67, %s70
      %p79 = scmp.eq.s32.totalorder %s13, 3
      %p80 = por %p78, %p79
      %p81 = scmp.ne.s32.totalorder %s70, %s71
      %p82 = scmp.eq.s32.totalorder %s13, 0
      %p83 = por %p81, %p82
      %p84 = scmp.ne.s32.totalorder %s70, %s71
      %p85 = scmp.eq.s32.totalorder %s14, 3
      %p86 = por %p84, %p85
      %p88 = scmp.ne.s32.totalorder %s71, %s87
      %p89 = scmp.eq.s32.totalorder %s14, 0
      %p90 = por %p88, %p89
      %s91 = ssub.s32 %s16, %s30
      %s92 = ssub.s32 %s15, %s34
      %s93 = sor.u32 %s91, %s92
      %p94 = scmp.eq.s32.totalorder %s93, 0
      %s96 = sadd.s32 %s95, 1
      %s97 = scalar_select %p94, %s95, %s96
      %p100 = pneg %p94
      %p101 = scmp.eq.s32.totalorder %s8, 3
      %p102 = por %p100, %p101
      %p103 = scmp.ne.s32.totalorder %s95, %s98
      %p104 = scmp.eq.s32.totalorder %s8, 0
      %p105 = por %p103, %p104
      %p106 = scmp.ne.s32.totalorder %s95, %s98
      %p107 = scmp.eq.s32.totalorder %s13, 3
      %p108 = por %p106, %p107
      %p109 = scmp.ne.s32.totalorder %s98, %s99
      %p110 = scmp.eq.s32.totalorder %s13, 0
      %p111 = por %p109, %p110
      %p112 = scmp.ne.s32.totalorder %s98, %s99
      %p113 = scmp.eq.s32.totalorder %s14, 3
      %p114 = por %p112, %p113
      %p116 = scmp.ne.s32.totalorder %s99, %s115
      %p117 = scmp.eq.s32.totalorder %s14, 0
      %p118 = por %p116, %p117
      %p119 = scmp.le.s32.totalorder 1, %s8
      %p120 = scmp.lt.s32.totalorder %s8, 5
      %p121 = pnand %p119, %p120
      %p122 = pneg %p121
      // Predicated region
      $region9: #{tgn_forward.11} parent=5 // pred_check
        _
      $region10: #{tgn_forward.11} parent=5 // pred_check_branch
        %124 = sbr.rel (%p121) target = $region12
      $region11: #{tgn_forward.11} parent=5 // pred_region
        %s125 = ssub.s32 %s8, 1
        // Predicated region
        $region13: #{tgn_forward.11} parent=11 // pred_check
          %p126 = pneg %p55
        $region14: #{tgn_forward.11} parent=11 // pred_check_branch
          %128 = sbr.rel (%p126) target = $region16
        $region15: #{tgn_forward.11} parent=11 // pred_region
          %s129 = smul.u32 2, %s18
          %s130 = smul.u32 4, %s20
          %p131 = scmp.lt.s32.totalorder %s129, 1
          %s132 = scalar_select %p131, %s129, 1
          %p133 = scmp.lt.s32.totalorder %s130, 3
          %s134 = scalar_select %p133, %s130, 3
          %s135 = smul.addr %s132, 4
          %s136 = sadd.s32 %s134, %s135
          %s137 = smul.addr %s136, 4
          %s138 = scalar_lea.vmem %s0, %s137
          %s139 = smul.u32 2, %s18
          %s140 = smul.u32 4, %s20
        $region16: #{tgn_forward.11} parent=11 // pred_fallthru
          _
      $region12: #{tgn_forward.11} parent=5 // pred_fallthru
        _
      %p141 = scmp.lt.s32.totalorder %s8, 4
      // Predicated region
      $region17: #{tgn_forward.11} parent=5 // pred_check
        %p142 = pneg %p141
      $region18: #{tgn_forward.11} parent=5 // pred_check_branch
        %144 = sbr.rel (%p142) target = $region20
      $region19: #{tgn_forward.11} parent=5 // pred_region
        // Predicated region
        $region21: #{tgn_forward.11} parent=19 // pred_check
          %p145 = pneg %p77
        $region22: #{tgn_forward.11} parent=19 // pred_check_branch
          %147 = sbr.rel (%p145) target = $region24
        $region23: #{tgn_forward.11} parent=19 // pred_region
          %s148 = sand.u32 %s67, 1
          %s149 = sand.u32 %s67, 1
          %s150 = smul.addr %s149, 256
          %s151 = scalar_lea.vmem [#allocation3], %s150
          %s152 = smul.u32 64, %s17
          %s153 = smul.addr %s152, 4
          %s154 = sadd.s32 %s16, %s153
          %s155 = smul.addr %s154, 4
          %s156 = scalar_lea.vmem %s1, %s155
          // Predicated region
          $region25: #{tgn_forward.11} parent=23 // pred_check
            _
          $region26: #{tgn_forward.11} parent=23 // pred_check_branch
            %158 = sbr.rel (0) target = $region28
          $region27: #{tgn_forward.11} parent=23 // pred_region
            // Predicated region
            $region29: #{tgn_forward.11} parent=27 // pred_check
              _
            $region30: #{tgn_forward.11} parent=27 // pred_check_branch
              %160 = sbr.rel target = $region32
            $region31: #{tgn_forward.11} parent=27 // pred_region
              // Predicated region
              $region44: #{tgn_forward.11} parent=31 // pred_check
                _
              $region45: #{tgn_forward.11} parent=31 // pred_check_branch
                %301 = sbr.rel (0) target = $region47
              $region46: #{tgn_forward.11} parent=31 // pred_region
                loop: start=0, step=1, limit=1
                $region48: #{tgn_forward.11} parent=46 // loop_pre_header
                  _
                $region49: #{tgn_forward.11} parent=46 // loop_header
                  %s303 = sphi 0, %s307
                  %p304 = scmp.ge.s32.totalorder %s303, 1
                  %s308 = sphi %s156, %s156
                  %s309 = sphi %s151, %s151
                $region50: #{tgn_forward.11} parent=46 // loop_header_branch
                  %306 = sbr.rel (%p304) target = $region54
                $region51: #{tgn_forward.11} parent=46 // loop_body
                  _
                $region52: #{tgn_forward.11} parent=46 // loop_footer
                  %s307 = sadd.s32 1, %s303
                $region53: #{tgn_forward.11} parent=46 // loop_footer_branch
                  %302 = sbr.rel target = $region49
                $region54: #{tgn_forward.11} parent=46 // loop_exit
                  _
                loop: start=0, step=1, limit=1
                $region55: #{tgn_forward.11} parent=46 // loop_pre_header
                  _
                $region56: #{tgn_forward.11} parent=46 // loop_header
                  %s312 = sphi 0, %s316
                  %p313 = scmp.ge.s32.totalorder %s312, 1
                  %s317 = sphi %s156, %s156
                  %s318 = sphi %s151, %s151
                $region57: #{tgn_forward.11} parent=46 // loop_header_branch
                  %315 = sbr.rel (%p313) target = $region61
                $region58: #{tgn_forward.11} parent=46 // loop_body
                  %v319 = vld [vmem:[%s317] sm:$0xf]
                  %320 = vst [vmem:[%s318] sm:$0xf] %v319
                  %v321 = vld [vmem:[%s317 + $0x10] sm:$0xf]
                  %322 = vst [vmem:[%s318 + $0x4] sm:$0xf] %v321
                  %v323 = vld [vmem:[%s317 + $0x20] sm:$0xf]
                  %324 = vst [vmem:[%s318 + $0x8] sm:$0xf] %v323
                  %v325 = vld [vmem:[%s317 + $0x30] sm:$0xf]
                  %326 = vst [vmem:[%s318 + $0xc] sm:$0xf] %v325
                  %v327 = vld [vmem:[%s317 + $0x40] sm:$0xf]
                  %328 = vst [vmem:[%s318 + $0x10] sm:$0xf] %v327
                  %v329 = vld [vmem:[%s317 + $0x50] sm:$0xf]
                  %330 = vst [vmem:[%s318 + $0x14] sm:$0xf] %v329
                  %v331 = vld [vmem:[%s317 + $0x60] sm:$0xf]
                  %332 = vst [vmem:[%s318 + $0x18] sm:$0xf] %v331
                  %v333 = vld [vmem:[%s317 + $0x70] sm:$0xf]
                  %334 = vst [vmem:[%s318 + $0x1c] sm:$0xf] %v333
                  %v335 = vld [vmem:[%s317 + $0x80] sm:$0xf]
                  %336 = vst [vmem:[%s318 + $0x20] sm:$0xf] %v335
                  %v337 = vld [vmem:[%s317 + $0x90] sm:$0xf]
                  %338 = vst [vmem:[%s318 + $0x24] sm:$0xf] %v337
                  %v339 = vld [vmem:[%s317 + $0xa0] sm:$0xf]
                  %340 = vst [vmem:[%s318 + $0x28] sm:$0xf] %v339
                  %v341 = vld [vmem:[%s317 + $0xb0] sm:$0xf]
                  %342 = vst [vmem:[%s318 + $0x2c] sm:$0xf] %v341
                  %v343 = vld [vmem:[%s317 + $0xc0] sm:$0xf]
                  %344 = vst [vmem:[%s318 + $0x30] sm:$0xf] %v343
                  %v345 = vld [vmem:[%s317 + $0xd0] sm:$0xf]
                  %346 = vst [vmem:[%s318 + $0x34] sm:$0xf] %v345
                  %v347 = vld [vmem:[%s317 + $0xe0] sm:$0xf]
                  %348 = vst [vmem:[%s318 + $0x38] sm:$0xf] %v347
                  %v349 = vld [vmem:[%s317 + $0xf0] sm:$0xf]
                  %350 = vst [vmem:[%s318 + $0x3c] sm:$0xf] %v349
                  %v351 = vld [vmem:[%s317 + $0x100] sm:$0xf]
                  %352 = vst [vmem:[%s318 + $0x40] sm:$0xf] %v351
                  %v353 = vld [vmem:[%s317 + $0x110] sm:$0xf]
                  %354 = vst [vmem:[%s318 + $0x44] sm:$0xf] %v353
                  %v355 = vld [vmem:[%s317 + $0x120] sm:$0xf]
                  %356 = vst [vmem:[%s318 + $0x48] sm:$0xf] %v355
                  %v357 = vld [vmem:[%s317 + $0x130] sm:$0xf]
                  %358 = vst [vmem:[%s318 + $0x4c] sm:$0xf] %v357
                  %v359 = vld [vmem:[%s317 + $0x140] sm:$0xf]
                  %360 = vst [vmem:[%s318 + $0x50] sm:$0xf] %v359
                  %v361 = vld [vmem:[%s317 + $0x150] sm:$0xf]
                  %362 = vst [vmem:[%s318 + $0x54] sm:$0xf] %v361
                  %v363 = vld [vmem:[%s317 + $0x160] sm:$0xf]
                  %364 = vst [vmem:[%s318 + $0x58] sm:$0xf] %v363
                  %v365 = vld [vmem:[%s317 + $0x170] sm:$0xf]
                  %366 = vst [vmem:[%s318 + $0x5c] sm:$0xf] %v365
                  %v367 = vld [vmem:[%s317 + $0x180] sm:$0xf]
                  %368 = vst [vmem:[%s318 + $0x60] sm:$0xf] %v367
                  %v369 = vld [vmem:[%s317 + $0x190] sm:$0xf]
                  %370 = vst [vmem:[%s318 + $0x64] sm:$0xf] %v369
                  %v371 = vld [vmem:[%s317 + $0x1a0] sm:$0xf]
                  %372 = vst [vmem:[%s318 + $0x68] sm:$0xf] %v371
                  %v373 = vld [vmem:[%s317 + $0x1b0] sm:$0xf]
                  %374 = vst [vmem:[%s318 + $0x6c] sm:$0xf] %v373
                  %v375 = vld [vmem:[%s317 + $0x1c0] sm:$0xf]
                  %376 = vst [vmem:[%s318 + $0x70] sm:$0xf] %v375
                  %v377 = vld [vmem:[%s317 + $0x1d0] sm:$0xf]
                  %378 = vst [vmem:[%s318 + $0x74] sm:$0xf] %v377
                  %v379 = vld [vmem:[%s317 + $0x1e0] sm:$0xf]
                  %380 = vst [vmem:[%s318 + $0x78] sm:$0xf] %v379
                  %v381 = vld [vmem:[%s317 + $0x1f0] sm:$0xf]
                  %382 = vst [vmem:[%s318 + $0x7c] sm:$0xf] %v381
                  %v383 = vld [vmem:[%s317 + $0x200] sm:$0xf]
                  %384 = vst [vmem:[%s318 + $0x80] sm:$0xf] %v383
                  %v385 = vld [vmem:[%s317 + $0x210] sm:$0xf]
                  %386 = vst [vmem:[%s318 + $0x84] sm:$0xf] %v385
                  %v387 = vld [vmem:[%s317 + $0x220] sm:$0xf]
                  %388 = vst [vmem:[%s318 + $0x88] sm:$0xf] %v387
                  %v389 = vld [vmem:[%s317 + $0x230] sm:$0xf]
                  %390 = vst [vmem:[%s318 + $0x8c] sm:$0xf] %v389
                  %v391 = vld [vmem:[%s317 + $0x240] sm:$0xf]
                  %392 = vst [vmem:[%s318 + $0x90] sm:$0xf] %v391
                  %v393 = vld [vmem:[%s317 + $0x250] sm:$0xf]
                  %394 = vst [vmem:[%s318 + $0x94] sm:$0xf] %v393
                  %v395 = vld [vmem:[%s317 + $0x260] sm:$0xf]
                  %396 = vst [vmem:[%s318 + $0x98] sm:$0xf] %v395
                  %v397 = vld [vmem:[%s317 + $0x270] sm:$0xf]
                  %398 = vst [vmem:[%s318 + $0x9c] sm:$0xf] %v397
                  %v399 = vld [vmem:[%s317 + $0x280] sm:$0xf]
                  %400 = vst [vmem:[%s318 + $0xa0] sm:$0xf] %v399
                  %v401 = vld [vmem:[%s317 + $0x290] sm:$0xf]
                  %402 = vst [vmem:[%s318 + $0xa4] sm:$0xf] %v401
                  %v403 = vld [vmem:[%s317 + $0x2a0] sm:$0xf]
                  %404 = vst [vmem:[%s318 + $0xa8] sm:$0xf] %v403
                  %v405 = vld [vmem:[%s317 + $0x2b0] sm:$0xf]
                  %406 = vst [vmem:[%s318 + $0xac] sm:$0xf] %v405
                  %v407 = vld [vmem:[%s317 + $0x2c0] sm:$0xf]
                  %408 = vst [vmem:[%s318 + $0xb0] sm:$0xf] %v407
                  %v409 = vld [vmem:[%s317 + $0x2d0] sm:$0xf]
                  %410 = vst [vmem:[%s318 + $0xb4] sm:$0xf] %v409
                  %v411 = vld [vmem:[%s317 + $0x2e0] sm:$0xf]
                  %412 = vst [vmem:[%s318 + $0xb8] sm:$0xf] %v411
                  %v413 = vld [vmem:[%s317 + $0x2f0] sm:$0xf]
                  %414 = vst [vmem:[%s318 + $0xbc] sm:$0xf] %v413
                  %v415 = vld [vmem:[%s317 + $0x300] sm:$0xf]
                  %416 = vst [vmem:[%s318 + $0xc0] sm:$0xf] %v415
                  %v417 = vld [vmem:[%s317 + $0x310] sm:$0xf]
                  %418 = vst [vmem:[%s318 + $0xc4] sm:$0xf] %v417
                  %v419 = vld [vmem:[%s317 + $0x320] sm:$0xf]
                  %420 = vst [vmem:[%s318 + $0xc8] sm:$0xf] %v419
                  %v421 = vld [vmem:[%s317 + $0x330] sm:$0xf]
                  %422 = vst [vmem:[%s318 + $0xcc] sm:$0xf] %v421
                  %v423 = vld [vmem:[%s317 + $0x340] sm:$0xf]
                  %424 = vst [vmem:[%s318 + $0xd0] sm:$0xf] %v423
                  %v425 = vld [vmem:[%s317 + $0x350] sm:$0xf]
                  %426 = vst [vmem:[%s318 + $0xd4] sm:$0xf] %v425
                  %v427 = vld [vmem:[%s317 + $0x360] sm:$0xf]
                  %428 = vst [vmem:[%s318 + $0xd8] sm:$0xf] %v427
                  %v429 = vld [vmem:[%s317 + $0x370] sm:$0xf]
                  %430 = vst [vmem:[%s318 + $0xdc] sm:$0xf] %v429
                  %v431 = vld [vmem:[%s317 + $0x380] sm:$0xf]
                  %432 = vst [vmem:[%s318 + $0xe0] sm:$0xf] %v431
                  %v433 = vld [vmem:[%s317 + $0x390] sm:$0xf]
                  %434 = vst [vmem:[%s318 + $0xe4] sm:$0xf] %v433
                  %v435 = vld [vmem:[%s317 + $0x3a0] sm:$0xf]
                  %436 = vst [vmem:[%s318 + $0xe8] sm:$0xf] %v435
                  %v437 = vld [vmem:[%s317 + $0x3b0] sm:$0xf]
                  %438 = vst [vmem:[%s318 + $0xec] sm:$0xf] %v437
                  %v439 = vld [vmem:[%s317 + $0x3c0] sm:$0xf]
                  %440 = vst [vmem:[%s318 + $0xf0] sm:$0xf] %v439
                  %v441 = vld [vmem:[%s317 + $0x3d0] sm:$0xf]
                  %442 = vst [vmem:[%s318 + $0xf4] sm:$0xf] %v441
                  %v443 = vld [vmem:[%s317 + $0x3e0] sm:$0xf]
                  %444 = vst [vmem:[%s318 + $0xf8] sm:$0xf] %v443
                  %v445 = vld [vmem:[%s317 + $0x3f0] sm:$0xf]
                  %446 = vst [vmem:[%s318 + $0xfc] sm:$0xf] %v445
                $region59: #{tgn_forward.11} parent=46 // loop_footer
                  %s316 = sadd.s32 1, %s312
                $region60: #{tgn_forward.11} parent=46 // loop_footer_branch
                  %311 = sbr.rel target = $region56
                $region61: #{tgn_forward.11} parent=46 // loop_exit
                  _
              $region47: #{tgn_forward.11} parent=31 // pred_fallthru
                _
            $region32: #{tgn_forward.11} parent=27 // pred_fallthru
              _
            // Predicated region
            $region33: #{tgn_forward.11} parent=27 // pred_check
              _
            $region34: #{tgn_forward.11} parent=27 // pred_check_branch
              %162 = sbr.rel (0) target = $region36
            $region35: #{tgn_forward.11} parent=27 // pred_region
              loop: start=0, step=1, limit=1
              $region37: #{tgn_forward.11} parent=35 // loop_pre_header
                _
              $region38: #{tgn_forward.11} parent=35 // loop_header
                %s165 = sphi 0, %s169
                %p166 = scmp.ge.s32.totalorder %s165, 1
                %s170 = sphi %s156, %s156
                %s171 = sphi %s151, %s151
              $region39: #{tgn_forward.11} parent=35 // loop_header_branch
                %168 = sbr.rel (%p166) target = $region43
              $region40: #{tgn_forward.11} parent=35 // loop_body
                %v172 = vld [vmem:[%s170] sm:$0xf]
                %173 = vst [vmem:[%s171] sm:$0xf] %v172
                %v174 = vld [vmem:[%s170 + $0x10] sm:$0xf]
                %175 = vst [vmem:[%s171 + $0x4] sm:$0xf] %v174
                %v176 = vld [vmem:[%s170 + $0x20] sm:$0xf]
                %177 = vst [vmem:[%s171 + $0x8] sm:$0xf] %v176
                %v178 = vld [vmem:[%s170 + $0x30] sm:$0xf]
                %179 = vst [vmem:[%s171 + $0xc] sm:$0xf] %v178
                %v180 = vld [vmem:[%s170 + $0x40] sm:$0xf]
                %181 = vst [vmem:[%s171 + $0x10] sm:$0xf] %v180
                %v182 = vld [vmem:[%s170 + $0x50] sm:$0xf]
                %183 = vst [vmem:[%s171 + $0x14] sm:$0xf] %v182
                %v184 = vld [vmem:[%s170 + $0x60] sm:$0xf]
                %185 = vst [vmem:[%s171 + $0x18] sm:$0xf] %v184
                %v186 = vld [vmem:[%s170 + $0x70] sm:$0xf]
                %187 = vst [vmem:[%s171 + $0x1c] sm:$0xf] %v186
                %v188 = vld [vmem:[%s170 + $0x80] sm:$0xf]
                %189 = vst [vmem:[%s171 + $0x20] sm:$0xf] %v188
                %v190 = vld [vmem:[%s170 + $0x90] sm:$0xf]
                %191 = vst [vmem:[%s171 + $0x24] sm:$0xf] %v190
                %v192 = vld [vmem:[%s170 + $0xa0] sm:$0xf]
                %193 = vst [vmem:[%s171 + $0x28] sm:$0xf] %v192
                %v194 = vld [vmem:[%s170 + $0xb0] sm:$0xf]
                %195 = vst [vmem:[%s171 + $0x2c] sm:$0xf] %v194
                %v196 = vld [vmem:[%s170 + $0xc0] sm:$0xf]
                %197 = vst [vmem:[%s171 + $0x30] sm:$0xf] %v196
                %v198 = vld [vmem:[%s170 + $0xd0] sm:$0xf]
                %199 = vst [vmem:[%s171 + $0x34] sm:$0xf] %v198
                %v200 = vld [vmem:[%s170 + $0xe0] sm:$0xf]
                %201 = vst [vmem:[%s171 + $0x38] sm:$0xf] %v200
                %v202 = vld [vmem:[%s170 + $0xf0] sm:$0xf]
                %203 = vst [vmem:[%s171 + $0x3c] sm:$0xf] %v202
                %v204 = vld [vmem:[%s170 + $0x100] sm:$0xf]
                %205 = vst [vmem:[%s171 + $0x40] sm:$0xf] %v204
                %v206 = vld [vmem:[%s170 + $0x110] sm:$0xf]
                %207 = vst [vmem:[%s171 + $0x44] sm:$0xf] %v206
                %v208 = vld [vmem:[%s170 + $0x120] sm:$0xf]
                %209 = vst [vmem:[%s171 + $0x48] sm:$0xf] %v208
                %v210 = vld [vmem:[%s170 + $0x130] sm:$0xf]
                %211 = vst [vmem:[%s171 + $0x4c] sm:$0xf] %v210
                %v212 = vld [vmem:[%s170 + $0x140] sm:$0xf]
                %213 = vst [vmem:[%s171 + $0x50] sm:$0xf] %v212
                %v214 = vld [vmem:[%s170 + $0x150] sm:$0xf]
                %215 = vst [vmem:[%s171 + $0x54] sm:$0xf] %v214
                %v216 = vld [vmem:[%s170 + $0x160] sm:$0xf]
                %217 = vst [vmem:[%s171 + $0x58] sm:$0xf] %v216
                %v218 = vld [vmem:[%s170 + $0x170] sm:$0xf]
                %219 = vst [vmem:[%s171 + $0x5c] sm:$0xf] %v218
                %v220 = vld [vmem:[%s170 + $0x180] sm:$0xf]
                %221 = vst [vmem:[%s171 + $0x60] sm:$0xf] %v220
                %v222 = vld [vmem:[%s170 + $0x190] sm:$0xf]
                %223 = vst [vmem:[%s171 + $0x64] sm:$0xf] %v222
                %v224 = vld [vmem:[%s170 + $0x1a0] sm:$0xf]
                %225 = vst [vmem:[%s171 + $0x68] sm:$0xf] %v224
                %v226 = vld [vmem:[%s170 + $0x1b0] sm:$0xf]
                %227 = vst [vmem:[%s171 + $0x6c] sm:$0xf] %v226
                %v228 = vld [vmem:[%s170 + $0x1c0] sm:$0xf]
                %229 = vst [vmem:[%s171 + $0x70] sm:$0xf] %v228
                %v230 = vld [vmem:[%s170 + $0x1d0] sm:$0xf]
                %231 = vst [vmem:[%s171 + $0x74] sm:$0xf] %v230
                %v232 = vld [vmem:[%s170 + $0x1e0] sm:$0xf]
                %233 = vst [vmem:[%s171 + $0x78] sm:$0xf] %v232
                %v234 = vld [vmem:[%s170 + $0x1f0] sm:$0xf]
                %235 = vst [vmem:[%s171 + $0x7c] sm:$0xf] %v234
                %v236 = vld [vmem:[%s170 + $0x200] sm:$0xf]
                %237 = vst [vmem:[%s171 + $0x80] sm:$0xf] %v236
                %v238 = vld [vmem:[%s170 + $0x210] sm:$0xf]
                %239 = vst [vmem:[%s171 + $0x84] sm:$0xf] %v238
                %v240 = vld [vmem:[%s170 + $0x220] sm:$0xf]
                %241 = vst [vmem:[%s171 + $0x88] sm:$0xf] %v240
                %v242 = vld [vmem:[%s170 + $0x230] sm:$0xf]
                %243 = vst [vmem:[%s171 + $0x8c] sm:$0xf] %v242
                %v244 = vld [vmem:[%s170 + $0x240] sm:$0xf]
                %245 = vst [vmem:[%s171 + $0x90] sm:$0xf] %v244
                %v246 = vld [vmem:[%s170 + $0x250] sm:$0xf]
                %247 = vst [vmem:[%s171 + $0x94] sm:$0xf] %v246
                %v248 = vld [vmem:[%s170 + $0x260] sm:$0xf]
                %249 = vst [vmem:[%s171 + $0x98] sm:$0xf] %v248
                %v250 = vld [vmem:[%s170 + $0x270] sm:$0xf]
                %251 = vst [vmem:[%s171 + $0x9c] sm:$0xf] %v250
                %v252 = vld [vmem:[%s170 + $0x280] sm:$0xf]
                %253 = vst [vmem:[%s171 + $0xa0] sm:$0xf] %v252
                %v254 = vld [vmem:[%s170 + $0x290] sm:$0xf]
                %255 = vst [vmem:[%s171 + $0xa4] sm:$0xf] %v254
                %v256 = vld [vmem:[%s170 + $0x2a0] sm:$0xf]
                %257 = vst [vmem:[%s171 + $0xa8] sm:$0xf] %v256
                %v258 = vld [vmem:[%s170 + $0x2b0] sm:$0xf]
                %259 = vst [vmem:[%s171 + $0xac] sm:$0xf] %v258
                %v260 = vld [vmem:[%s170 + $0x2c0] sm:$0xf]
                %261 = vst [vmem:[%s171 + $0xb0] sm:$0xf] %v260
                %v262 = vld [vmem:[%s170 + $0x2d0] sm:$0xf]
                %263 = vst [vmem:[%s171 + $0xb4] sm:$0xf] %v262
                %v264 = vld [vmem:[%s170 + $0x2e0] sm:$0xf]
                %265 = vst [vmem:[%s171 + $0xb8] sm:$0xf] %v264
                %v266 = vld [vmem:[%s170 + $0x2f0] sm:$0xf]
                %267 = vst [vmem:[%s171 + $0xbc] sm:$0xf] %v266
                %v268 = vld [vmem:[%s170 + $0x300] sm:$0xf]
                %269 = vst [vmem:[%s171 + $0xc0] sm:$0xf] %v268
                %v270 = vld [vmem:[%s170 + $0x310] sm:$0xf]
                %271 = vst [vmem:[%s171 + $0xc4] sm:$0xf] %v270
                %v272 = vld [vmem:[%s170 + $0x320] sm:$0xf]
                %273 = vst [vmem:[%s171 + $0xc8] sm:$0xf] %v272
                %v274 = vld [vmem:[%s170 + $0x330] sm:$0xf]
                %275 = vst [vmem:[%s171 + $0xcc] sm:$0xf] %v274
                %v276 = vld [vmem:[%s170 + $0x340] sm:$0xf]
                %277 = vst [vmem:[%s171 + $0xd0] sm:$0xf] %v276
                %v278 = vld [vmem:[%s170 + $0x350] sm:$0xf]
                %279 = vst [vmem:[%s171 + $0xd4] sm:$0xf] %v278
                %v280 = vld [vmem:[%s170 + $0x360] sm:$0xf]
                %281 = vst [vmem:[%s171 + $0xd8] sm:$0xf] %v280
                %v282 = vld [vmem:[%s170 + $0x370] sm:$0xf]
                %283 = vst [vmem:[%s171 + $0xdc] sm:$0xf] %v282
                %v284 = vld [vmem:[%s170 + $0x380] sm:$0xf]
                %285 = vst [vmem:[%s171 + $0xe0] sm:$0xf] %v284
                %v286 = vld [vmem:[%s170 + $0x390] sm:$0xf]
                %287 = vst [vmem:[%s171 + $0xe4] sm:$0xf] %v286
                %v288 = vld [vmem:[%s170 + $0x3a0] sm:$0xf]
                %289 = vst [vmem:[%s171 + $0xe8] sm:$0xf] %v288
                %v290 = vld [vmem:[%s170 + $0x3b0] sm:$0xf]
                %291 = vst [vmem:[%s171 + $0xec] sm:$0xf] %v290
                %v292 = vld [vmem:[%s170 + $0x3c0] sm:$0xf]
                %293 = vst [vmem:[%s171 + $0xf0] sm:$0xf] %v292
                %v294 = vld [vmem:[%s170 + $0x3d0] sm:$0xf]
                %295 = vst [vmem:[%s171 + $0xf4] sm:$0xf] %v294
                %v296 = vld [vmem:[%s170 + $0x3e0] sm:$0xf]
                %297 = vst [vmem:[%s171 + $0xf8] sm:$0xf] %v296
                %v298 = vld [vmem:[%s170 + $0x3f0] sm:$0xf]
                %299 = vst [vmem:[%s171 + $0xfc] sm:$0xf] %v298
              $region41: #{tgn_forward.11} parent=35 // loop_footer
                %s169 = sadd.s32 1, %s165
              $region42: #{tgn_forward.11} parent=35 // loop_footer_branch
                %164 = sbr.rel target = $region38
              $region43: #{tgn_forward.11} parent=35 // loop_exit
                _
            $region36: #{tgn_forward.11} parent=27 // pred_fallthru
              _
          $region28: #{tgn_forward.11} parent=23 // pred_fallthru
            _
          %447 = vnop
        $region24: #{tgn_forward.11} parent=19 // pred_fallthru
          _
      $region20: #{tgn_forward.11} parent=5 // pred_fallthru
        _
      %p448 = scmp.le.s32.totalorder 1, %s8
      %p449 = scmp.lt.s32.totalorder %s8, 5
      %p450 = pnand %p448, %p449
      %p451 = pneg %p450
      // Predicated region
      $region62: #{tgn_forward.11} parent=5 // pred_check
        _
      $region63: #{tgn_forward.11} parent=5 // pred_check_branch
        %453 = sbr.rel (%p450) target = $region65
      $region64: #{tgn_forward.11} parent=5 // pred_region
        %s454 = ssub.s32 %s8, 1
        %s455 = sand.u32 %s70, 1
        %s456 = sand.u32 %s70, 1
        %s457 = smul.addr %s456, 256
        %s458 = scalar_lea.vmem [#allocation3], %s457
        // Predicated region
        $region66: #{tgn_forward.11} parent=64 // pred_check
          %p459 = pneg %p83
        $region67: #{tgn_forward.11} parent=64 // pred_check_branch
          %461 = sbr.rel (%p459) target = $region69
        $region68: #{tgn_forward.11} parent=64 // pred_region
          _
        $region69: #{tgn_forward.11} parent=64 // pred_fallthru
          _
        %s462 = smul.u32 2, %s18
        %s463 = smul.u32 4, %s20
        %p464 = scmp.lt.s32.totalorder %s462, 1
        %s465 = scalar_select %p464, %s462, 1
        %p466 = scmp.lt.s32.totalorder %s463, 3
        %s467 = scalar_select %p466, %s463, 3
        %s468 = smul.addr %s465, 4
        %s469 = sadd.s32 %s467, %s468
        %s470 = smul.addr %s469, 4
        %s471 = scalar_lea.vmem %s0, %s470
        %p472 = pneg %p55
        %p473 = pneg %p52
        %s474 = sand.u32 %s70, 1
        %s475 = sand.u32 %s70, 1
        %s476 = smul.addr %s475, 256
        %s477 = scalar_lea.vmem [#allocation3], %s476
        %p478 = pneg %p83
        %p479 = pneg %p80
        %p480 = pneg %p111
        %p481 = pneg %p108
        %s482 = smul.u32 2, %s18
        %p483 = scmp.lt.s32.totalorder %s19, 3
        %s484 = scalar_select %p483, %s19, 3
        %p485 = scmp.lt.s32.totalorder %s482, 1
        %s486 = scalar_select %p485, %s482, 1
        %s487 = smul.addr %s484, 2
        %s488 = sadd.s32 %s486, %s487
        %s489 = smul.addr %s488, 4
        %s490 = scalar_lea.vmem %s2, %s489
        %s491 = smul.u32 2, %s18
        %s492 = smul.u32 4, %s20
        %p493 = scmp.lt.s32.totalorder %s491, 1
        %s494 = scalar_select %p493, %s491, 1
        %p495 = scmp.lt.s32.totalorder %s492, 3
        %s496 = scalar_select %p495, %s492, 3
        %s497 = smul.addr %s494, 4
        %s498 = sadd.s32 %s496, %s497
        %s499 = smul.addr %s498, 4
        %s500 = scalar_lea.vmem %s0, %s499
        %s501 = smul.u32 2, %s18
        %s502 = smul.u32 4, %s20
        %s503 = smul.u32 64, %s20
        %s504 = smul.u32 2, %s18
        %p505 = scmp.lt.s32.totalorder %s19, 3
        %s506 = scalar_select %p505, %s19, 3
        %p507 = scmp.lt.s32.totalorder %s504, 1
        %s508 = scalar_select %p507, %s504, 1
        %s509 = smul.addr %s506, 2
        %s510 = sadd.s32 %s508, %s509
        %s511 = smul.addr %s510, 4
        %s512 = scalar_lea.vmem %s2, %s511
        %s513 = smul.u32 2, %s18
        %p515 = scmp.eq.s32.totalorder %s20, 0
        // Predicated region
        $region70: #{tgn_forward.11} parent=64 // pred_check
          %p516 = pneg %p515
        $region71: #{tgn_forward.11} parent=64 // pred_check_branch
          %518 = sbr.rel (%p516) target = $region73
        $region72: #{tgn_forward.11} parent=64 // pred_region
          %519 = vst [vmem:[#allocation2] sm:$0xff] 0.0
          %520 = vst [vmem:[#allocation2 + $0x8] sm:$0xf] 0.0
        $region73: #{tgn_forward.11} parent=64 // pred_fallthru
          _
        %v521 = vld [vmem:[#allocation2] sm:$0xff]
        %v522 = vld [vmem:[#allocation2 + $0x8] sm:$0xf]
        %v523 = vld [vmem:[%s500] sm:$0xff]
        %v524 = vld [vmem:[%s500 + $0x8] sm:$0xff]
        %v525 = vld [vmem:[%s500 + $0x10] sm:$0x33]
        %v526 = vld [vmem:[%s500 + $0x18] sm:$0x33]
        %v527 = vld [vmem:[%s458] sm:$0xf]
        %v528 = vld [vmem:[%s458 + $0x4] sm:$0xf]
        %v529 = vld [vmem:[%s458 + $0x8] sm:$0xf]
        %v530 = vld [vmem:[%s458 + $0xc] sm:$0xf]
        %v531 = vld [vmem:[%s458 + $0x10] sm:$0xf]
        %v532 = vld [vmem:[%s458 + $0x14] sm:$0xf]
        %v533 = vld [vmem:[%s458 + $0x18] sm:$0xf]
        %v534 = vld [vmem:[%s458 + $0x1c] sm:$0xf]
        %v535 = vld [vmem:[%s458 + $0x20] sm:$0xf]
        %v536 = vld [vmem:[%s458 + $0x24] sm:$0xf]
        %v537 = vld [vmem:[%s458 + $0x28] sm:$0xf]
        %v538 = vld [vmem:[%s458 + $0x2c] sm:$0xf]
        %v539 = vld [vmem:[%s458 + $0x30] sm:$0xf]
        %v540 = vld [vmem:[%s458 + $0x34] sm:$0xf]
        %v541 = vld [vmem:[%s458 + $0x38] sm:$0xf]
        %v542 = vld [vmem:[%s458 + $0x3c] sm:$0xf]
        %v543 = vld [vmem:[%s458 + $0x40] sm:$0xf]
        %v544 = vld [vmem:[%s458 + $0x44] sm:$0xf]
        %v545 = vld [vmem:[%s458 + $0x48] sm:$0xf]
        %v546 = vld [vmem:[%s458 + $0x4c] sm:$0xf]
        %v547 = vld [vmem:[%s458 + $0x50] sm:$0xf]
        %v548 = vld [vmem:[%s458 + $0x54] sm:$0xf]
        %v549 = vld [vmem:[%s458 + $0x58] sm:$0xf]
        %v550 = vld [vmem:[%s458 + $0x5c] sm:$0xf]
        %v551 = vld [vmem:[%s458 + $0x60] sm:$0xf]
        %v552 = vld [vmem:[%s458 + $0x64] sm:$0xf]
        %v553 = vld [vmem:[%s458 + $0x68] sm:$0xf]
        %v554 = vld [vmem:[%s458 + $0x6c] sm:$0xf]
        %v555 = vld [vmem:[%s458 + $0x70] sm:$0xf]
        %v556 = vld [vmem:[%s458 + $0x74] sm:$0xf]
        %v557 = vld [vmem:[%s458 + $0x78] sm:$0xf]
        %v558 = vld [vmem:[%s458 + $0x7c] sm:$0xf]
        %v559 = vld [vmem:[%s458 + $0x80] sm:$0xf]
        %v560 = vld [vmem:[%s458 + $0x84] sm:$0xf]
        %v561 = vld [vmem:[%s458 + $0x88] sm:$0xf]
        %v562 = vld [vmem:[%s458 + $0x8c] sm:$0xf]
        %v563 = vld [vmem:[%s458 + $0x90] sm:$0xf]
        %v564 = vld [vmem:[%s458 + $0x94] sm:$0xf]
        %v565 = vld [vmem:[%s458 + $0x98] sm:$0xf]
        %v566 = vld [vmem:[%s458 + $0x9c] sm:$0xf]
        %v567 = vld [vmem:[%s458 + $0xa0] sm:$0xf]
        %v568 = vld [vmem:[%s458 + $0xa4] sm:$0xf]
        %v569 = vld [vmem:[%s458 + $0xa8] sm:$0xf]
        %v570 = vld [vmem:[%s458 + $0xac] sm:$0xf]
        %v571 = vld [vmem:[%s458 + $0xb0] sm:$0xf]
        %v572 = vld [vmem:[%s458 + $0xb4] sm:$0xf]
        %v573 = vld [vmem:[%s458 + $0xb8] sm:$0xf]
        %v574 = vld [vmem:[%s458 + $0xbc] sm:$0xf]
        %v575 = vld [vmem:[%s458 + $0xc0] sm:$0xf]
        %v576 = vld [vmem:[%s458 + $0xc4] sm:$0xf]
        %v577 = vld [vmem:[%s458 + $0xc8] sm:$0xf]
        %v578 = vld [vmem:[%s458 + $0xcc] sm:$0xf]
        %v579 = vld [vmem:[%s458 + $0xd0] sm:$0xf]
        %v580 = vld [vmem:[%s458 + $0xd4] sm:$0xf]
        %v581 = vld [vmem:[%s458 + $0xd8] sm:$0xf]
        %v582 = vld [vmem:[%s458 + $0xdc] sm:$0xf]
        %v583 = vld [vmem:[%s458 + $0xe0] sm:$0xf]
        %v584 = vld [vmem:[%s458 + $0xe4] sm:$0xf]
        %v585 = vld [vmem:[%s458 + $0xe8] sm:$0xf]
        %v586 = vld [vmem:[%s458 + $0xec] sm:$0xf]
        %v587 = vld [vmem:[%s458 + $0xf0] sm:$0xf]
        %v588 = vld [vmem:[%s458 + $0xf4] sm:$0xf]
        %v589 = vld [vmem:[%s458 + $0xf8] sm:$0xf]
        %v590 = vld [vmem:[%s458 + $0xfc] sm:$0xf]
        %v595 = vunpack.c.l.b16 %v523
        %v596 = vunpack.c.h.b16 %v523
        %v597 = vunpack.c.l.b16 %v524
        %v598 = vunpack.c.h.b16 %v524
        %v599 = vunpack.c.l.b16 %v525
        %v600 = vunpack.c.h.b16 %v525
        %v601 = vunpack.c.l.b16 %v526
        %v602 = vunpack.c.h.b16 %v526
        %v603 = vpack.c.b16 %v599, %v595
        %v604 = vpack.c.b16 %v600, %v596
        %v605 = vpack.c.b16 %v601, %v597
        %v606 = vpack.c.b16 %v602, %v598
        %v675 = vunpack.c.l.b16 %v527
        %v676 = vunpack.c.l.b16 %v528
        %v677 = vunpack.c.l.b16 %v529
        %v678 = vunpack.c.l.b16 %v530
        %v679 = vunpack.c.l.b16 %v531
        %v680 = vunpack.c.l.b16 %v532
        %v681 = vunpack.c.l.b16 %v533
        %v682 = vunpack.c.l.b16 %v534
        %v683 = vunpack.c.l.b16 %v535
        %v684 = vunpack.c.l.b16 %v536
        %v685 = vunpack.c.l.b16 %v537
        %v686 = vunpack.c.l.b16 %v538
        %v687 = vunpack.c.l.b16 %v539
        %v688 = vunpack.c.l.b16 %v540
        %v689 = vunpack.c.l.b16 %v541
        %v690 = vunpack.c.l.b16 %v542
        %v691 = vunpack.c.l.b16 %v543
        %v692 = vunpack.c.l.b16 %v544
        %v693 = vunpack.c.l.b16 %v545
        %v694 = vunpack.c.l.b16 %v546
        %v695 = vunpack.c.l.b16 %v547
        %v696 = vunpack.c.l.b16 %v548
        %v697 = vunpack.c.l.b16 %v549
        %v698 = vunpack.c.l.b16 %v550
        %v699 = vunpack.c.l.b16 %v551
        %v700 = vunpack.c.l.b16 %v552
        %v701 = vunpack.c.l.b16 %v553
        %v702 = vunpack.c.l.b16 %v554
        %v703 = vunpack.c.l.b16 %v555
        %v704 = vunpack.c.l.b16 %v556
        %v705 = vunpack.c.l.b16 %v557
        %v706 = vunpack.c.l.b16 %v558
        %v707 = vunpack.c.l.b16 %v559
        %v708 = vunpack.c.l.b16 %v560
        %v709 = vunpack.c.l.b16 %v561
        %v710 = vunpack.c.l.b16 %v562
        %v711 = vunpack.c.l.b16 %v563
        %v712 = vunpack.c.l.b16 %v564
        %v713 = vunpack.c.l.b16 %v565
        %v714 = vunpack.c.l.b16 %v566
        %v715 = vunpack.c.l.b16 %v567
        %v716 = vunpack.c.l.b16 %v568
        %v717 = vunpack.c.l.b16 %v569
        %v718 = vunpack.c.l.b16 %v570
        %v719 = vunpack.c.l.b16 %v571
        %v720 = vunpack.c.l.b16 %v572
        %v721 = vunpack.c.l.b16 %v573
        %v722 = vunpack.c.l.b16 %v574
        %v723 = vunpack.c.l.b16 %v575
        %v724 = vunpack.c.l.b16 %v576
        %v725 = vunpack.c.l.b16 %v577
        %v726 = vunpack.c.l.b16 %v578
        %v727 = vunpack.c.l.b16 %v579
        %v728 = vunpack.c.l.b16 %v580
        %v729 = vunpack.c.l.b16 %v581
        %v730 = vunpack.c.l.b16 %v582
        %v731 = vunpack.c.l.b16 %v583
        %v732 = vunpack.c.l.b16 %v584
        %v733 = vunpack.c.l.b16 %v585
        %v734 = vunpack.c.l.b16 %v586
        %v735 = vunpack.c.l.b16 %v587
        %v736 = vunpack.c.l.b16 %v588
        %v737 = vunpack.c.l.b16 %v589
        %v738 = vunpack.c.l.b16 %v590
        %v739 = vpack.c.b16 %v676, %v675
        %v740 = vpack.c.b16 %v678, %v677
        %v741 = vpack.c.b16 %v680, %v679
        %v742 = vpack.c.b16 %v682, %v681
        %v743 = vpack.c.b16 %v684, %v683
        %v744 = vpack.c.b16 %v686, %v685
        %v745 = vpack.c.b16 %v688, %v687
        %v746 = vpack.c.b16 %v690, %v689
        %v747 = vpack.c.b16 %v692, %v691
        %v748 = vpack.c.b16 %v694, %v693
        %v749 = vpack.c.b16 %v696, %v695
        %v750 = vpack.c.b16 %v698, %v697
        %v751 = vpack.c.b16 %v700, %v699
        %v752 = vpack.c.b16 %v702, %v701
        %v753 = vpack.c.b16 %v704, %v703
        %v754 = vpack.c.b16 %v706, %v705
        %v755 = vpack.c.b16 %v708, %v707
        %v756 = vpack.c.b16 %v710, %v709
        %v757 = vpack.c.b16 %v712, %v711
        %v758 = vpack.c.b16 %v714, %v713
        %v759 = vpack.c.b16 %v716, %v715
        %v760 = vpack.c.b16 %v718, %v717
        %v761 = vpack.c.b16 %v720, %v719
        %v762 = vpack.c.b16 %v722, %v721
        %v763 = vpack.c.b16 %v724, %v723
        %v764 = vpack.c.b16 %v726, %v725
        %v765 = vpack.c.b16 %v728, %v727
        %v766 = vpack.c.b16 %v730, %v729
        %v767 = vpack.c.b16 %v732, %v731
        %v768 = vpack.c.b16 %v734, %v733
        %v769 = vpack.c.b16 %v736, %v735
        %v770 = vpack.c.b16 %v738, %v737
        %803 = vmatprep.subr.bf16.mxu0 0
        %804 = vmatpush1.bf16.msra.mxu0 %v739
        %805 = vmatprep.subr.bf16.mxu0 0
        %806 = vmatpush1.bf16.msra.mxu0 %v740
        %807 = vmatprep.subr.bf16.mxu0 0
        %808 = vmatpush1.bf16.msra.mxu0 %v741
        %809 = vmatprep.subr.bf16.mxu0 0
        %810 = vmatpush1.bf16.msra.mxu0 %v742
        %811 = vmatprep.subr.bf16.mxu0 0
        %812 = vmatpush1.bf16.msra.mxu0 %v743
        %813 = vmatprep.subr.bf16.mxu0 0
        %814 = vmatpush1.bf16.msra.mxu0 %v744
        %815 = vmatprep.subr.bf16.mxu0 0
        %816 = vmatpush1.bf16.msra.mxu0 %v745
        %817 = vmatprep.subr.bf16.mxu0 0
        %818 = vmatpush1.bf16.msra.mxu0 %v746
        %819 = vmatprep.subr.bf16.mxu0 0
        %820 = vmatpush1.bf16.msra.mxu0 %v747
        %821 = vmatprep.subr.bf16.mxu0 0
        %822 = vmatpush1.bf16.msra.mxu0 %v748
        %823 = vmatprep.subr.bf16.mxu0 0
        %824 = vmatpush1.bf16.msra.mxu0 %v749
        %825 = vmatprep.subr.bf16.mxu0 0
        %826 = vmatpush1.bf16.msra.mxu0 %v750
        %827 = vmatprep.subr.bf16.mxu0 0
        %828 = vmatpush1.bf16.msra.mxu0 %v751
        %829 = vmatprep.subr.bf16.mxu0 0
        %830 = vmatpush1.bf16.msra.mxu0 %v752
        %831 = vmatprep.subr.bf16.mxu0 0
        %832 = vmatpush1.bf16.msra.mxu0 %v753
        %833 = vmatprep.subr.bf16.mxu0 0
        %834 = vmatpush1.bf16.msra.mxu0 %v754
        %835 = vmatprep.mubr.bf16.mxu0 %v604
        %836 = vmatmul.mubr.bf16.gmra.mrb[0].mxu0 %v603
        %v837 = vpop.f32.mrb[0].mxu0
        %v838 = vadd.f32 0.0, %v837
        %v839 = vpop.f32.mrb[0].mxu0
        %v840 = vpop.f32.mrb[0].mxu0
        %v841 = vadd.f32 0.0, %v840
        %v842 = vpop.f32.mrb[0].mxu0
        %843 = vdwg.mxu0
        %844 = vmatprep.subr.bf16.mxu0 0
        %845 = vmatpush1.bf16.msra.mxu0 %v755
        %846 = vmatprep.subr.bf16.mxu0 0
        %847 = vmatpush1.bf16.msra.mxu0 %v756
        %848 = vmatprep.subr.bf16.mxu0 0
        %849 = vmatpush1.bf16.msra.mxu0 %v757
        %850 = vmatprep.subr.bf16.mxu0 0
        %851 = vmatpush1.bf16.msra.mxu0 %v758
        %852 = vmatprep.subr.bf16.mxu0 0
        %853 = vmatpush1.bf16.msra.mxu0 %v759
        %854 = vmatprep.subr.bf16.mxu0 0
        %855 = vmatpush1.bf16.msra.mxu0 %v760
        %856 = vmatprep.subr.bf16.mxu0 0
        %857 = vmatpush1.bf16.msra.mxu0 %v761
        %858 = vmatprep.subr.bf16.mxu0 0
        %859 = vmatpush1.bf16.msra.mxu0 %v762
        %860 = vmatprep.subr.bf16.mxu0 0
        %861 = vmatpush1.bf16.msra.mxu0 %v763
        %862 = vmatprep.subr.bf16.mxu0 0
        %863 = vmatpush1.bf16.msra.mxu0 %v764
        %864 = vmatprep.subr.bf16.mxu0 0
        %865 = vmatpush1.bf16.msra.mxu0 %v765
        %866 = vmatprep.subr.bf16.mxu0 0
        %867 = vmatpush1.bf16.msra.mxu0 %v766
        %868 = vmatprep.subr.bf16.mxu0 0
        %869 = vmatpush1.bf16.msra.mxu0 %v767
        %870 = vmatprep.subr.bf16.mxu0 0
        %871 = vmatpush1.bf16.msra.mxu0 %v768
        %872 = vmatprep.subr.bf16.mxu0 0
        %873 = vmatpush1.bf16.msra.mxu0 %v769
        %874 = vmatprep.subr.bf16.mxu0 0
        %875 = vmatpush1.bf16.msra.mxu0 %v770
        %876 = vmatprep.mubr.bf16.mxu0 %v606
        %877 = vmatmul.mubr.bf16.gmra.mrb[0].mxu0 %v605
        %v878 = vpop.f32.mrb[0].mxu0
        %v879 = vadd.f32 %v838, %v878
        %v880 = vpop.f32.mrb[0].mxu0
        %v881 = vpop.f32.mrb[0].mxu0
        %v882 = vadd.f32 %v841, %v881
        %v883 = vpop.f32.mrb[0].mxu0
        %884 = vdwg.mxu0
        %v885 = vadd.f32 %v521, %v879
        %v886 = vadd.f32 %v522, %v882
        %887 = vst [vmem:[#allocation2] sm:$0xff] %v885
        %888 = vst [vmem:[#allocation2 + $0x8] sm:$0xf] %v886
        // Predicated region
        $region74: #{tgn_forward.11} parent=64 // pred_check
          %p889 = pneg %p515
        $region75: #{tgn_forward.11} parent=64 // pred_check_branch
          %891 = sbr.rel (%p889) target = $region77
        $region76: #{tgn_forward.11} parent=64 // pred_region
          %v892 = vld [vmem:[#allocation2] sm:$0xff]
          %v893 = vld [vmem:[#allocation2 + $0x8] sm:$0xf]
          %v894 = vpack.c.bf16 %v893, %v892
          %v896 = vunpack.c.l.b16 %v894
          %v897 = vunpack.c.h.b16 %v894
          %v898 = vpack.c.b16 %v896, %v896
          %v899 = vpack.c.b16 %v897, %v897
          %902 = vst [vmem:[%s512] sm:$0xf] %v898
          %903 = vst [vmem:[%s512 + $0x4] sm:$0x3] %v899
        $region77: #{tgn_forward.11} parent=64 // pred_fallthru
          _
        %s904 = smul.u32 2, %s18
        %p905 = scmp.lt.s32.totalorder %s19, 3
        %s906 = scalar_select %p905, %s19, 3
        %p907 = scmp.lt.s32.totalorder %s904, 1
        %s908 = scalar_select %p907, %s904, 1
        %s909 = smul.addr %s906, 2
        %s910 = sadd.s32 %s908, %s909
        %s911 = smul.addr %s910, 4
        %s912 = scalar_lea.vmem %s2, %s911
        // Predicated region
        $region78: #{tgn_forward.11} parent=64 // pred_check
          %p913 = pneg %p108
        $region79: #{tgn_forward.11} parent=64 // pred_check_branch
          %915 = sbr.rel (%p913) target = $region81
        $region80: #{tgn_forward.11} parent=64 // pred_region
          %s916 = smul.u32 2, %s18
        $region81: #{tgn_forward.11} parent=64 // pred_fallthru
          _
      $region65: #{tgn_forward.11} parent=5 // pred_fallthru
        _
      %p917 = scmp.le.s32.totalorder 2, %s8
      // Predicated region
      $region82: #{tgn_forward.11} parent=5 // pred_check
        %p918 = pneg %p917
      $region83: #{tgn_forward.11} parent=5 // pred_check_branch
        %920 = sbr.rel (%p918) target = $region85
      $region84: #{tgn_forward.11} parent=5 // pred_region
        %s921 = ssub.s32 %s8, 2
        // Predicated region
        $region86: #{tgn_forward.11} parent=84 // pred_check
          %p922 = pneg %p114
        $region87: #{tgn_forward.11} parent=84 // pred_check_branch
          %924 = sbr.rel (%p922) target = $region89
        $region88: #{tgn_forward.11} parent=84 // pred_region
          %s925 = smul.u32 2, %s21
          %p926 = scmp.lt.s32.totalorder %s22, 3
          %s927 = scalar_select %p926, %s22, 3
          %p928 = scmp.lt.s32.totalorder %s925, 1
          %s929 = scalar_select %p928, %s925, 1
          %s930 = smul.addr %s927, 2
          %s931 = sadd.s32 %s929, %s930
          %s932 = smul.addr %s931, 4
          %s933 = scalar_lea.vmem %s2, %s932
        $region89: #{tgn_forward.11} parent=84 // pred_fallthru
          _
      $region85: #{tgn_forward.11} parent=5 // pred_fallthru
        _
    $region6: #{tgn_forward.11} parent=1 // loop_footer
      %s12 = sadd.s32 1, %s8
    $region7: #{tgn_forward.11} parent=1 // loop_footer_branch
      %7 = sbr.rel target = $region3
    $region8: #{tgn_forward.11} parent=1 // loop_exit
      _

// kernel: tgn_forward.13
$region0: #{tgn_forward.13}
  #allocation0 [shape = 'u32[]', space=smem, size = 0x4, offset = 0x4, fixed_abs, tag = 'smem constant byte address 0x4 - core index']
  #allocation1 [shape = 'u32[144,128]{1,0:T(1,128)}', space=vmem, size = 0x12000, scoped, tag = 'internal scratch']
  #allocation2 [shape = 'f32[12,128]{1,0:T(8,128)}', space=vmem, size = 0x2000, scoped, tag = 'scratch operand']
  %s0 = inlined_call_operand.vmem [shape: bf16[12,512], index: 0, kind: input, shape index: {}]
  %s1 = inlined_call_operand.vmem [shape: bf16[512,128], index: 1, kind: input, shape index: {}]
  %s2 = inlined_call_operand.vmem [shape: bf16[1,12,128], index: 2, kind: output, shape index: {}]
  %s3 = sld [smem:[#allocation0]]
  $region26: #{tgn_forward.13} parent=0
    _
  %s5 = ssub.s32 1, %s3
  %s6 = scalar_select 0, %s5, %s3
  // Predicated region
  $region2: #{tgn_forward.13} parent=0 // pred_check
    _
  $region3: #{tgn_forward.13} parent=0 // pred_check_branch
    %8 = sbr.rel (0) target = $region5
  $region4: #{tgn_forward.13} parent=0 // pred_region
    _
  $region5: #{tgn_forward.13} parent=0 // pred_fallthru
    _
  // Predicated region
  $region6: #{tgn_forward.13} parent=0 // pred_check
    _
  $region7: #{tgn_forward.13} parent=0 // pred_check_branch
    %10 = sbr.rel (0) target = $region9
  $region8: #{tgn_forward.13} parent=0 // pred_region
    _
  $region9: #{tgn_forward.13} parent=0 // pred_fallthru
    _
  %p12 = scmp.eq.s32.totalorder 0, 0
  // Predicated region
  $region10: #{tgn_forward.13} parent=0 // pred_check
    %p13 = pneg %p12
  $region11: #{tgn_forward.13} parent=0 // pred_check_branch
    %15 = sbr.rel (%p13) target = $region13
  $region12: #{tgn_forward.13} parent=0 // pred_region
    %16 = vst [vmem:[#allocation2] sm:$0xff] 0.0
    %17 = vst [vmem:[#allocation2 + $0x8] sm:$0xf] 0.0
  $region13: #{tgn_forward.13} parent=0 // pred_fallthru
    _
  %v18 = vld [vmem:[#allocation2] sm:$0xff]
  %v19 = vld [vmem:[#allocation2 + $0x8] sm:$0xf]
  %v20 = vld [vmem:[%s0] sm:$0xff]
  %v21 = vld [vmem:[%s0 + $0x8] sm:$0xff]
  %v22 = vld [vmem:[%s0 + $0x10] sm:$0x33]
  %v23 = vld [vmem:[%s0 + $0x18] sm:$0x33]
  %v24 = vld [vmem:[%s1] sm:$0xf]
  %v25 = vld [vmem:[%s1 + $0x4] sm:$0xf]
  %v26 = vld [vmem:[%s1 + $0x8] sm:$0xf]
  %v27 = vld [vmem:[%s1 + $0xc] sm:$0xf]
  %v28 = vld [vmem:[%s1 + $0x10] sm:$0xf]
  %v29 = vld [vmem:[%s1 + $0x14] sm:$0xf]
  %v30 = vld [vmem:[%s1 + $0x18] sm:$0xf]
  %v31 = vld [vmem:[%s1 + $0x1c] sm:$0xf]
  %v32 = vld [vmem:[%s1 + $0x20] sm:$0xf]
  %v33 = vld [vmem:[%s1 + $0x24] sm:$0xf]
  %v34 = vld [vmem:[%s1 + $0x28] sm:$0xf]
  %v35 = vld [vmem:[%s1 + $0x2c] sm:$0xf]
  %v36 = vld [vmem:[%s1 + $0x30] sm:$0xf]
  %v37 = vld [vmem:[%s1 + $0x34] sm:$0xf]
  %v38 = vld [vmem:[%s1 + $0x38] sm:$0xf]
  %v39 = vld [vmem:[%s1 + $0x3c] sm:$0xf]
  %v40 = vld [vmem:[%s1 + $0x40] sm:$0xf]
  %v41 = vld [vmem:[%s1 + $0x44] sm:$0xf]
  %v42 = vld [vmem:[%s1 + $0x48] sm:$0xf]
  %v43 = vld [vmem:[%s1 + $0x4c] sm:$0xf]
  %v44 = vld [vmem:[%s1 + $0x50] sm:$0xf]
  %v45 = vld [vmem:[%s1 + $0x54] sm:$0xf]
  %v46 = vld [vmem:[%s1 + $0x58] sm:$0xf]
  %v47 = vld [vmem:[%s1 + $0x5c] sm:$0xf]
  %v48 = vld [vmem:[%s1 + $0x60] sm:$0xf]
  %v49 = vld [vmem:[%s1 + $0x64] sm:$0xf]
  %v50 = vld [vmem:[%s1 + $0x68] sm:$0xf]
  %v51 = vld [vmem:[%s1 + $0x6c] sm:$0xf]
  %v52 = vld [vmem:[%s1 + $0x70] sm:$0xf]
  %v53 = vld [vmem:[%s1 + $0x74] sm:$0xf]
  %v54 = vld [vmem:[%s1 + $0x78] sm:$0xf]
  %v55 = vld [vmem:[%s1 + $0x7c] sm:$0xf]
  %v56 = vld [vmem:[%s1 + $0x80] sm:$0xf]
  %v57 = vld [vmem:[%s1 + $0x84] sm:$0xf]
  %v58 = vld [vmem:[%s1 + $0x88] sm:$0xf]
  %v59 = vld [vmem:[%s1 + $0x8c] sm:$0xf]
  %v60 = vld [vmem:[%s1 + $0x90] sm:$0xf]
  %v61 = vld [vmem:[%s1 + $0x94] sm:$0xf]
  %v62 = vld [vmem:[%s1 + $0x98] sm:$0xf]
  %v63 = vld [vmem:[%s1 + $0x9c] sm:$0xf]
  %v64 = vld [vmem:[%s1 + $0xa0] sm:$0xf]
  %v65 = vld [vmem:[%s1 + $0xa4] sm:$0xf]
  %v66 = vld [vmem:[%s1 + $0xa8] sm:$0xf]
  %v67 = vld [vmem:[%s1 + $0xac] sm:$0xf]
  %v68 = vld [vmem:[%s1 + $0xb0] sm:$0xf]
  %v69 = vld [vmem:[%s1 + $0xb4] sm:$0xf]
  %v70 = vld [vmem:[%s1 + $0xb8] sm:$0xf]
  %v71 = vld [vmem:[%s1 + $0xbc] sm:$0xf]
  %v72 = vld [vmem:[%s1 + $0xc0] sm:$0xf]
  %v73 = vld [vmem:[%s1 + $0xc4] sm:$0xf]
  %v74 = vld [vmem:[%s1 + $0xc8] sm:$0xf]
  %v75 = vld [vmem:[%s1 + $0xcc] sm:$0xf]
  %v76 = vld [vmem:[%s1 + $0xd0] sm:$0xf]
  %v77 = vld [vmem:[%s1 + $0xd4] sm:$0xf]
  %v78 = vld [vmem:[%s1 + $0xd8] sm:$0xf]
  %v79 = vld [vmem:[%s1 + $0xdc] sm:$0xf]
  %v80 = vld [vmem:[%s1 + $0xe0] sm:$0xf]
  %v81 = vld [vmem:[%s1 + $0xe4] sm:$0xf]
  %v82 = vld [vmem:[%s1 + $0xe8] sm:$0xf]
  %v83 = vld [vmem:[%s1 + $0xec] sm:$0xf]
  %v84 = vld [vmem:[%s1 + $0xf0] sm:$0xf]
  %v85 = vld [vmem:[%s1 + $0xf4] sm:$0xf]
  %v86 = vld [vmem:[%s1 + $0xf8] sm:$0xf]
  %v87 = vld [vmem:[%s1 + $0xfc] sm:$0xf]
  %v92 = vunpack.c.l.b16 %v20
  %v93 = vunpack.c.h.b16 %v20
  %v94 = vunpack.c.l.b16 %v21
  %v95 = vunpack.c.h.b16 %v21
  %v96 = vunpack.c.l.b16 %v22
  %v97 = vunpack.c.h.b16 %v22
  %v98 = vunpack.c.l.b16 %v23
  %v99 = vunpack.c.h.b16 %v23
  %v100 = vpack.c.b16 %v96, %v92
  %v101 = vpack.c.b16 %v97, %v93
  %v102 = vpack.c.b16 %v98, %v94
  %v103 = vpack.c.b16 %v99, %v95
  %v172 = vunpack.c.l.b16 %v24
  %v173 = vunpack.c.l.b16 %v25
  %v174 = vunpack.c.l.b16 %v26
  %v175 = vunpack.c.l.b16 %v27
  %v176 = vunpack.c.l.b16 %v28
  %v177 = vunpack.c.l.b16 %v29
  %v178 = vunpack.c.l.b16 %v30
  %v179 = vunpack.c.l.b16 %v31
  %v180 = vunpack.c.l.b16 %v32
  %v181 = vunpack.c.l.b16 %v33
  %v182 = vunpack.c.l.b16 %v34
  %v183 = vunpack.c.l.b16 %v35
  %v184 = vunpack.c.l.b16 %v36
  %v185 = vunpack.c.l.b16 %v37
  %v186 = vunpack.c.l.b16 %v38
  %v187 = vunpack.c.l.b16 %v39
  %v188 = vunpack.c.l.b16 %v40
  %v189 = vunpack.c.l.b16 %v41
  %v190 = vunpack.c.l.b16 %v42
  %v191 = vunpack.c.l.b16 %v43
  %v192 = vunpack.c.l.b16 %v44
  %v193 = vunpack.c.l.b16 %v45
  %v194 = vunpack.c.l.b16 %v46
  %v195 = vunpack.c.l.b16 %v47
  %v196 = vunpack.c.l.b16 %v48
  %v197 = vunpack.c.l.b16 %v49
  %v198 = vunpack.c.l.b16 %v50
  %v199 = vunpack.c.l.b16 %v51
  %v200 = vunpack.c.l.b16 %v52
  %v201 = vunpack.c.l.b16 %v53
  %v202 = vunpack.c.l.b16 %v54
  %v203 = vunpack.c.l.b16 %v55
  %v204 = vunpack.c.l.b16 %v56
  %v205 = vunpack.c.l.b16 %v57
  %v206 = vunpack.c.l.b16 %v58
  %v207 = vunpack.c.l.b16 %v59
  %v208 = vunpack.c.l.b16 %v60
  %v209 = vunpack.c.l.b16 %v61
  %v210 = vunpack.c.l.b16 %v62
  %v211 = vunpack.c.l.b16 %v63
  %v212 = vunpack.c.l.b16 %v64
  %v213 = vunpack.c.l.b16 %v65
  %v214 = vunpack.c.l.b16 %v66
  %v215 = vunpack.c.l.b16 %v67
  %v216 = vunpack.c.l.b16 %v68
  %v217 = vunpack.c.l.b16 %v69
  %v218 = vunpack.c.l.b16 %v70
  %v219 = vunpack.c.l.b16 %v71
  %v220 = vunpack.c.l.b16 %v72
  %v221 = vunpack.c.l.b16 %v73
  %v222 = vunpack.c.l.b16 %v74
  %v223 = vunpack.c.l.b16 %v75
  %v224 = vunpack.c.l.b16 %v76
  %v225 = vunpack.c.l.b16 %v77
  %v226 = vunpack.c.l.b16 %v78
  %v227 = vunpack.c.l.b16 %v79
  %v228 = vunpack.c.l.b16 %v80
  %v229 = vunpack.c.l.b16 %v81
  %v230 = vunpack.c.l.b16 %v82
  %v231 = vunpack.c.l.b16 %v83
  %v232 = vunpack.c.l.b16 %v84
  %v233 = vunpack.c.l.b16 %v85
  %v234 = vunpack.c.l.b16 %v86
  %v235 = vunpack.c.l.b16 %v87
  %v236 = vpack.c.b16 %v173, %v172
  %v237 = vpack.c.b16 %v175, %v174
  %v238 = vpack.c.b16 %v177, %v176
  %v239 = vpack.c.b16 %v179, %v178
  %v240 = vpack.c.b16 %v181, %v180
  %v241 = vpack.c.b16 %v183, %v182
  %v242 = vpack.c.b16 %v185, %v184
  %v243 = vpack.c.b16 %v187, %v186
  %v244 = vpack.c.b16 %v189, %v188
  %v245 = vpack.c.b16 %v191, %v190
  %v246 = vpack.c.b16 %v193, %v192
  %v247 = vpack.c.b16 %v195, %v194
  %v248 = vpack.c.b16 %v197, %v196
  %v249 = vpack.c.b16 %v199, %v198
  %v250 = vpack.c.b16 %v201, %v200
  %v251 = vpack.c.b16 %v203, %v202
  %v252 = vpack.c.b16 %v205, %v204
  %v253 = vpack.c.b16 %v207, %v206
  %v254 = vpack.c.b16 %v209, %v208
  %v255 = vpack.c.b16 %v211, %v210
  %v256 = vpack.c.b16 %v213, %v212
  %v257 = vpack.c.b16 %v215, %v214
  %v258 = vpack.c.b16 %v217, %v216
  %v259 = vpack.c.b16 %v219, %v218
  %v260 = vpack.c.b16 %v221, %v220
  %v261 = vpack.c.b16 %v223, %v222
  %v262 = vpack.c.b16 %v225, %v224
  %v263 = vpack.c.b16 %v227, %v226
  %v264 = vpack.c.b16 %v229, %v228
  %v265 = vpack.c.b16 %v231, %v230
  %v266 = vpack.c.b16 %v233, %v232
  %v267 = vpack.c.b16 %v235, %v234
  %300 = vmatprep.subr.bf16.mxu0 0
  %301 = vmatpush1.bf16.msra.mxu0 %v236
  %302 = vmatprep.subr.bf16.mxu0 0
  %303 = vmatpush1.bf16.msra.mxu0 %v237
  %304 = vmatprep.subr.bf16.mxu0 0
  %305 = vmatpush1.bf16.msra.mxu0 %v238
  %306 = vmatprep.subr.bf16.mxu0 0
  %307 = vmatpush1.bf16.msra.mxu0 %v239
  %308 = vmatprep.subr.bf16.mxu0 0
  %309 = vmatpush1.bf16.msra.mxu0 %v240
  %310 = vmatprep.subr.bf16.mxu0 0
  %311 = vmatpush1.bf16.msra.mxu0 %v241
  %312 = vmatprep.subr.bf16.mxu0 0
  %313 = vmatpush1.bf16.msra.mxu0 %v242
  %314 = vmatprep.subr.bf16.mxu0 0
  %315 = vmatpush1.bf16.msra.mxu0 %v243
  %316 = vmatprep.subr.bf16.mxu0 0
  %317 = vmatpush1.bf16.msra.mxu0 %v244
  %318 = vmatprep.subr.bf16.mxu0 0
  %319 = vmatpush1.bf16.msra.mxu0 %v245
  %320 = vmatprep.subr.bf16.mxu0 0
  %321 = vmatpush1.bf16.msra.mxu0 %v246
  %322 = vmatprep.subr.bf16.mxu0 0
  %323 = vmatpush1.bf16.msra.mxu0 %v247
  %324 = vmatprep.subr.bf16.mxu0 0
  %325 = vmatpush1.bf16.msra.mxu0 %v248
  %326 = vmatprep.subr.bf16.mxu0 0
  %327 = vmatpush1.bf16.msra.mxu0 %v249
  %328 = vmatprep.subr.bf16.mxu0 0
  %329 = vmatpush1.bf16.msra.mxu0 %v250
  %330 = vmatprep.subr.bf16.mxu0 0
  %331 = vmatpush1.bf16.msra.mxu0 %v251
  %332 = vmatprep.mubr.bf16.mxu0 %v101
  %333 = vmatmul.mubr.bf16.gmra.mrb[0].mxu0 %v100
  %v334 = vpop.f32.mrb[0].mxu0
  %v335 = vadd.f32 0.0, %v334
  %v336 = vpop.f32.mrb[0].mxu0
  %v337 = vpop.f32.mrb[0].mxu0
  %v338 = vadd.f32 0.0, %v337
  %v339 = vpop.f32.mrb[0].mxu0
  %340 = vdwg.mxu0
  %341 = vmatprep.subr.bf16.mxu0 0
  %342 = vmatpush1.bf16.msra.mxu0 %v252
  %343 = vmatprep.subr.bf16.mxu0 0
  %344 = vmatpush1.bf16.msra.mxu0 %v253
  %345 = vmatprep.subr.bf16.mxu0 0
  %346 = vmatpush1.bf16.msra.mxu0 %v254
  %347 = vmatprep.subr.bf16.mxu0 0
  %348 = vmatpush1.bf16.msra.mxu0 %v255
  %349 = vmatprep.subr.bf16.mxu0 0
  %350 = vmatpush1.bf16.msra.mxu0 %v256
  %351 = vmatprep.subr.bf16.mxu0 0
  %352 = vmatpush1.bf16.msra.mxu0 %v257
  %353 = vmatprep.subr.bf16.mxu0 0
  %354 = vmatpush1.bf16.msra.mxu0 %v258
  %355 = vmatprep.subr.bf16.mxu0 0
  %356 = vmatpush1.bf16.msra.mxu0 %v259
  %357 = vmatprep.subr.bf16.mxu0 0
  %358 = vmatpush1.bf16.msra.mxu0 %v260
  %359 = vmatprep.subr.bf16.mxu0 0
  %360 = vmatpush1.bf16.msra.mxu0 %v261
  %361 = vmatprep.subr.bf16.mxu0 0
  %362 = vmatpush1.bf16.msra.mxu0 %v262
  %363 = vmatprep.subr.bf16.mxu0 0
  %364 = vmatpush1.bf16.msra.mxu0 %v263
  %365 = vmatprep.subr.bf16.mxu0 0
  %366 = vmatpush1.bf16.msra.mxu0 %v264
  %367 = vmatprep.subr.bf16.mxu0 0
  %368 = vmatpush1.bf16.msra.mxu0 %v265
  %369 = vmatprep.subr.bf16.mxu0 0
  %370 = vmatpush1.bf16.msra.mxu0 %v266
  %371 = vmatprep.subr.bf16.mxu0 0
  %372 = vmatpush1.bf16.msra.mxu0 %v267
  %373 = vmatprep.mubr.bf16.mxu0 %v103
  %374 = vmatmul.mubr.bf16.gmra.mrb[0].mxu0 %v102
  %v375 = vpop.f32.mrb[0].mxu0
  %v376 = vadd.f32 %v335, %v375
  %v377 = vpop.f32.mrb[0].mxu0
  %v378 = vpop.f32.mrb[0].mxu0
  %v379 = vadd.f32 %v338, %v378
  %v380 = vpop.f32.mrb[0].mxu0
  %381 = vdwg.mxu0
  %v382 = vadd.f32 %v18, %v376
  %v383 = vadd.f32 %v19, %v379
  %384 = vst [vmem:[#allocation2] sm:$0xff] %v382
  %385 = vst [vmem:[#allocation2 + $0x8] sm:$0xf] %v383
  // Predicated region
  $region14: #{tgn_forward.13} parent=0 // pred_check
    %p386 = pneg %p12
  $region15: #{tgn_forward.13} parent=0 // pred_check_branch
    %388 = sbr.rel (%p386) target = $region17
  $region16: #{tgn_forward.13} parent=0 // pred_region
    %v389 = vld [vmem:[#allocation2] sm:$0xff]
    %v390 = vld [vmem:[#allocation2 + $0x8] sm:$0xf]
    %v391 = vpack.c.bf16 %v390, %v389
    %v393 = vunpack.c.l.b16 %v391
    %v394 = vunpack.c.h.b16 %v391
    %v395 = vpack.c.b16 %v393, %v393
    %v396 = vpack.c.b16 %v394, %v394
    %399 = vst [vmem:[%s2] sm:$0xf] %v395
    %400 = vst [vmem:[%s2 + $0x4] sm:$0x3] %v396
  $region17: #{tgn_forward.13} parent=0 // pred_fallthru
    _
  // Predicated region
  $region18: #{tgn_forward.13} parent=0 // pred_check
    _
  $region19: #{tgn_forward.13} parent=0 // pred_check_branch
    %402 = sbr.rel (0) target = $region21
  $region20: #{tgn_forward.13} parent=0 // pred_region
    _
  $region21: #{tgn_forward.13} parent=0 // pred_fallthru
    _
  // Predicated region
  $region22: #{tgn_forward.13} parent=0 // pred_check
    _
  $region23: #{tgn_forward.13} parent=0 // pred_check_branch
    %404 = sbr.rel (0) target = $region25
  $region24: #{tgn_forward.13} parent=0 // pred_region
    _
  $region25: #{tgn_forward.13} parent=0 // pred_fallthru
    _

// kernel: tgn_forward.14
$region0: #{tgn_forward.14}
  #allocation0 [shape = 'u32[]', space=smem, size = 0x4, offset = 0x4, fixed_abs, tag = 'smem constant byte address 0x4 - core index']
  #allocation1 [shape = 'u32[144,128]{1,0:T(1,128)}', space=vmem, size = 0x12000, scoped, tag = 'internal scratch']
  #allocation2 [shape = 'f32[12,32]{1,0:T(8,128)}', space=vmem, size = 0x2000, scoped, tag = 'scratch operand']
  %s0 = inlined_call_operand.vmem [shape: bf16[4,12,32], index: 0, kind: input, shape index: {}, may-alias: {0,1}]
  %s1 = inlined_call_operand.vmem [shape: bf16[4,12,32], index: 1, kind: input, shape index: {}, may-alias: {0,1}]
  %s2 = inlined_call_operand.vmem [shape: f32[4,1,32], index: 2, kind: input, shape index: {}]
  %s3 = inlined_call_operand.vmem [shape: f32[4,1,32], index: 3, kind: input, shape index: {}]
  %s4 = inlined_call_operand.vmem [shape: bf16[12,12], index: 4, kind: input, shape index: {}]
  %s5 = inlined_call_operand.vmem [shape: f32[1,32], index: 5, kind: input, shape index: {}]
  %s6 = inlined_call_operand.vmem [shape: f32[12,32], index: 6, kind: output, shape index: {}]
  %s7 = sld [smem:[#allocation0]]
  $region65: #{tgn_forward.14} parent=0
    _
  %s9 = ssub.s32 1, %s7
  %s10 = scalar_select 0, %s9, %s7
  loop: start=0, step=1, limit=6
  $region2: #{tgn_forward.14} parent=0 // loop_pre_header
    _
  $region3: #{tgn_forward.14} parent=0 // loop_header
    %s12 = sphi 0, %s16
    %p13 = scmp.ge.s32.totalorder %s12, 6
    %s19 = sphi 0, %s31
    %s20 = sphi 0, %s27
    %s21 = sphi 0, %s19
    %s22 = sphi 0, %s20
    %s23 = sphi 0, %s21
    %s24 = sphi 0, %s22
    %s32 = sphi 0, %s32
    %s34 = sphi 0, %s32
    %s35 = sphi 0, %s34
    %s49 = sphi 0, %s35
    %s57 = sphi 0, %s59
    %s60 = sphi 0, %s57
    %s61 = sphi 0, %s60
    %s77 = sphi 0, %s61
    %s83 = sphi 0, %s85
    %s86 = sphi 0, %s83
    %s87 = sphi 0, %s86
    %s103 = sphi 0, %s87
    %s109 = sphi 0, %s111
    %s112 = sphi 0, %s109
    %s113 = sphi 0, %s112
    %s129 = sphi 0, %s113
    %s135 = sphi 0, %s137
    %s138 = sphi 0, %s135
    %s139 = sphi 0, %s138
    %s155 = sphi 0, %s139
    %s159 = sphi 0, %s159
    %s161 = sphi 0, %s159
    %s162 = sphi 0, %s161
    %s176 = sphi 0, %s162
    %s182 = sphi 0, %s184
    %s185 = sphi 0, %s182
    %s186 = sphi 0, %s185
    %s202 = sphi 0, %s186
  $region4: #{tgn_forward.14} parent=0 // loop_header_branch
    %15 = sbr.rel (%p13) target = $region8
  $region5: #{tgn_forward.14} parent=0 // loop_body
    %s17 = ssub.s32 %s12, 1
    %s18 = ssub.s32 %s12, 2
    %s25 = sadd.s32 1, %s20
    %p26 = scmp.ge.s32.totalorder %s25, 4
    %s27 = scalar_select %p26, 0, %s25
    %s28 = sadd.s32 1, %s19
    %s29 = scalar_select %p26, %s28, %s19
    %p30 = scmp.ge.s32.totalorder %s29, 1
    %s31 = scalar_select %p30, 0, %s29
    %s33 = sadd.s32 %s32, 1
    %p36 = scmp.eq.s32.totalorder %s12, 3
    %p37 = scmp.ne.s32.totalorder %s32, %s34
    %p38 = scmp.eq.s32.totalorder %s12, 0
    %p39 = por %p37, %p38
    %p40 = scmp.ne.s32.totalorder %s32, %s34
    %p41 = scmp.eq.s32.totalorder %s17, 3
    %p42 = por %p40, %p41
    %p43 = scmp.ne.s32.totalorder %s34, %s35
    %p44 = scmp.eq.s32.totalorder %s17, 0
    %p45 = por %p43, %p44
    %p46 = scmp.ne.s32.totalorder %s34, %s35
    %p47 = scmp.eq.s32.totalorder %s18, 3
    %p48 = por %p46, %p47
    %p50 = scmp.ne.s32.totalorder %s35, %s49
    %p51 = scmp.eq.s32.totalorder %s18, 0
    %p52 = por %p50, %p51
    %s53 = ssub.s32 %s20, %s27
    %s54 = ssub.s32 %s19, %s31
    %s55 = sor.u32 %s53, %s54
    %p56 = scmp.eq.s32.totalorder %s55, 0
    %s58 = sadd.s32 %s57, 1
    %s59 = scalar_select %p56, %s57, %s58
    %p62 = pneg %p56
    %p63 = scmp.eq.s32.totalorder %s12, 3
    %p64 = por %p62, %p63
    %p65 = scmp.ne.s32.totalorder %s57, %s60
    %p66 = scmp.eq.s32.totalorder %s12, 0
    %p67 = por %p65, %p66
    %p68 = scmp.ne.s32.totalorder %s57, %s60
    %p69 = scmp.eq.s32.totalorder %s17, 3
    %p70 = por %p68, %p69
    %p71 = scmp.ne.s32.totalorder %s60, %s61
    %p72 = scmp.eq.s32.totalorder %s17, 0
    %p73 = por %p71, %p72
    %p74 = scmp.ne.s32.totalorder %s60, %s61
    %p75 = scmp.eq.s32.totalorder %s18, 3
    %p76 = por %p74, %p75
    %p78 = scmp.ne.s32.totalorder %s61, %s77
    %p79 = scmp.eq.s32.totalorder %s18, 0
    %p80 = por %p78, %p79
    %s81 = ssub.s32 %s20, %s27
    %p82 = scmp.eq.s32.totalorder %s81, 0
    %s84 = sadd.s32 %s83, 1
    %s85 = scalar_select %p82, %s83, %s84
    %p88 = pneg %p82
    %p89 = scmp.eq.s32.totalorder %s12, 3
    %p90 = por %p88, %p89
    %p91 = scmp.ne.s32.totalorder %s83, %s86
    %p92 = scmp.eq.s32.totalorder %s12, 0
    %p93 = por %p91, %p92
    %p94 = scmp.ne.s32.totalorder %s83, %s86
    %p95 = scmp.eq.s32.totalorder %s17, 3
    %p96 = por %p94, %p95
    %p97 = scmp.ne.s32.totalorder %s86, %s87
    %p98 = scmp.eq.s32.totalorder %s17, 0
    %p99 = por %p97, %p98
    %p100 = scmp.ne.s32.totalorder %s86, %s87
    %p101 = scmp.eq.s32.totalorder %s18, 3
    %p102 = por %p100, %p101
    %p104 = scmp.ne.s32.totalorder %s87, %s103
    %p105 = scmp.eq.s32.totalorder %s18, 0
    %p106 = por %p104, %p105
    %s107 = ssub.s32 %s20, %s27
    %p108 = scmp.eq.s32.totalorder %s107, 0
    %s110 = sadd.s32 %s109, 1
    %s111 = scalar_select %p108, %s109, %s110
    %p114 = pneg %p108
    %p115 = scmp.eq.s32.totalorder %s12, 3
    %p116 = por %p114, %p115
    %p117 = scmp.ne.s32.totalorder %s109, %s112
    %p118 = scmp.eq.s32.totalorder %s12, 0
    %p119 = por %p117, %p118
    %p120 = scmp.ne.s32.totalorder %s109, %s112
    %p121 = scmp.eq.s32.totalorder %s17, 3
    %p122 = por %p120, %p121
    %p123 = scmp.ne.s32.totalorder %s112, %s113
    %p124 = scmp.eq.s32.totalorder %s17, 0
    %p125 = por %p123, %p124
    %p126 = scmp.ne.s32.totalorder %s112, %s113
    %p127 = scmp.eq.s32.totalorder %s18, 3
    %p128 = por %p126, %p127
    %p130 = scmp.ne.s32.totalorder %s113, %s129
    %p131 = scmp.eq.s32.totalorder %s18, 0
    %p132 = por %p130, %p131
    %s133 = ssub.s32 %s19, %s31
    %p134 = scmp.eq.s32.totalorder %s133, 0
    %s136 = sadd.s32 %s135, 1
    %s137 = scalar_select %p134, %s135, %s136
    %p140 = pneg %p134
    %p141 = scmp.eq.s32.totalorder %s12, 3
    %p142 = por %p140, %p141
    %p143 = scmp.ne.s32.totalorder %s135, %s138
    %p144 = scmp.eq.s32.totalorder %s12, 0
    %p145 = por %p143, %p144
    %p146 = scmp.ne.s32.totalorder %s135, %s138
    %p147 = scmp.eq.s32.totalorder %s17, 3
    %p148 = por %p146, %p147
    %p149 = scmp.ne.s32.totalorder %s138, %s139
    %p150 = scmp.eq.s32.totalorder %s17, 0
    %p151 = por %p149, %p150
    %p152 = scmp.ne.s32.totalorder %s138, %s139
    %p153 = scmp.eq.s32.totalorder %s18, 3
    %p154 = por %p152, %p153
    %p156 = scmp.ne.s32.totalorder %s139, %s155
    %p157 = scmp.eq.s32.totalorder %s18, 0
    %p158 = por %p156, %p157
    %s160 = sadd.s32 %s159, 1
    %p163 = scmp.eq.s32.totalorder %s12, 3
    %p164 = scmp.ne.s32.totalorder %s159, %s161
    %p165 = scmp.eq.s32.totalorder %s12, 0
    %p166 = por %p164, %p165
    %p167 = scmp.ne.s32.totalorder %s159, %s161
    %p168 = scmp.eq.s32.totalorder %s17, 3
    %p169 = por %p167, %p168
    %p170 = scmp.ne.s32.totalorder %s161, %s162
    %p171 = scmp.eq.s32.totalorder %s17, 0
    %p172 = por %p170, %p171
    %p173 = scmp.ne.s32.totalorder %s161, %s162
    %p174 = scmp.eq.s32.totalorder %s18, 3
    %p175 = por %p173, %p174
    %p177 = scmp.ne.s32.totalorder %s162, %s176
    %p178 = scmp.eq.s32.totalorder %s18, 0
    %p179 = por %p177, %p178
    %s180 = ssub.s32 %s19, %s31
    %p181 = scmp.eq.s32.totalorder %s180, 0
    %s183 = sadd.s32 %s182, 1
    %s184 = scalar_select %p181, %s182, %s183
    %p187 = pneg %p181
    %p188 = scmp.eq.s32.totalorder %s12, 3
    %p189 = por %p187, %p188
    %p190 = scmp.ne.s32.totalorder %s182, %s185
    %p191 = scmp.eq.s32.totalorder %s12, 0
    %p192 = por %p190, %p191
    %p193 = scmp.ne.s32.totalorder %s182, %s185
    %p194 = scmp.eq.s32.totalorder %s17, 3
    %p195 = por %p193, %p194
    %p196 = scmp.ne.s32.totalorder %s185, %s186
    %p197 = scmp.eq.s32.totalorder %s17, 0
    %p198 = por %p196, %p197
    %p199 = scmp.ne.s32.totalorder %s185, %s186
    %p200 = scmp.eq.s32.totalorder %s18, 3
    %p201 = por %p199, %p200
    %p203 = scmp.ne.s32.totalorder %s186, %s202
    %p204 = scmp.eq.s32.totalorder %s18, 0
    %p205 = por %p203, %p204
    %p206 = scmp.le.s32.totalorder 1, %s12
    %p207 = scmp.lt.s32.totalorder %s12, 5
    %p208 = pnand %p206, %p207
    %p209 = pneg %p208
    // Predicated region
    $region9: #{tgn_forward.14} parent=5 // pred_check
      _
    $region10: #{tgn_forward.14} parent=5 // pred_check_branch
      %211 = sbr.rel (%p208) target = $region12
    $region11: #{tgn_forward.14} parent=5 // pred_region
      %s212 = ssub.s32 %s12, 1
      // Predicated region
      $region13: #{tgn_forward.14} parent=11 // pred_check
        %p213 = pneg %p45
      $region14: #{tgn_forward.14} parent=11 // pred_check_branch
        %215 = sbr.rel (%p213) target = $region16
      $region15: #{tgn_forward.14} parent=11 // pred_region
        _
      $region16: #{tgn_forward.14} parent=11 // pred_fallthru
        _
      // Predicated region
      $region17: #{tgn_forward.14} parent=11 // pred_check
        %p216 = pneg %p151
      $region18: #{tgn_forward.14} parent=11 // pred_check_branch
        %218 = sbr.rel (%p216) target = $region20
      $region19: #{tgn_forward.14} parent=11 // pred_region
        %s219 = smul.u32 2, %s21
        %p220 = scmp.lt.s32.totalorder %s219, 1
        %s221 = scalar_select %p220, %s219, 1
        %s222 = smul.addr %s221, 4
        %s223 = scalar_lea.vmem %s4, %s222
        %s224 = smul.u32 2, %s21
      $region20: #{tgn_forward.14} parent=11 // pred_fallthru
        _
      // Predicated region
      $region21: #{tgn_forward.14} parent=11 // pred_check
        %p225 = pneg %p172
      $region22: #{tgn_forward.14} parent=11 // pred_check_branch
        %227 = sbr.rel (%p225) target = $region24
      $region23: #{tgn_forward.14} parent=11 // pred_region
        _
      $region24: #{tgn_forward.14} parent=11 // pred_fallthru
        _
    $region12: #{tgn_forward.14} parent=5 // pred_fallthru
      _
    %p228 = scmp.lt.s32.totalorder %s12, 4
    // Predicated region
    $region25: #{tgn_forward.14} parent=5 // pred_check
      %p229 = pneg %p228
    $region26: #{tgn_forward.14} parent=5 // pred_check_branch
      %231 = sbr.rel (%p229) target = $region28
    $region27: #{tgn_forward.14} parent=5 // pred_region
      // Predicated region
      $region29: #{tgn_forward.14} parent=27 // pred_check
        %p232 = pneg %p67
      $region30: #{tgn_forward.14} parent=27 // pred_check_branch
        %234 = sbr.rel (%p232) target = $region32
      $region31: #{tgn_forward.14} parent=27 // pred_region
        %s235 = smul.u32 2, %s19
        %p236 = scmp.lt.s32.totalorder %s20, 3
        %s237 = scalar_select %p236, %s20, 3
        %p238 = scmp.lt.s32.totalorder %s235, 1
        %s239 = scalar_select %p238, %s235, 1
        %s240 = smul.addr %s237, 2
        %s241 = sadd.s32 %s239, %s240
        %s242 = smul.addr %s241, 4
        %s243 = scalar_lea.vmem %s1, %s242
        %s244 = smul.u32 2, %s19
      $region32: #{tgn_forward.14} parent=27 // pred_fallthru
        _
      // Predicated region
      $region33: #{tgn_forward.14} parent=27 // pred_check
        %p245 = pneg %p93
      $region34: #{tgn_forward.14} parent=27 // pred_check_branch
        %247 = sbr.rel (%p245) target = $region36
      $region35: #{tgn_forward.14} parent=27 // pred_region
        %p248 = scmp.lt.s32.totalorder %s20, 3
        %s249 = scalar_select %p248, %s20, 3
        %s250 = scalar_lea.vmem %s2, %s249
      $region36: #{tgn_forward.14} parent=27 // pred_fallthru
        _
      // Predicated region
      $region37: #{tgn_forward.14} parent=27 // pred_check
        %p251 = pneg %p119
      $region38: #{tgn_forward.14} parent=27 // pred_check_branch
        %253 = sbr.rel (%p251) target = $region40
      $region39: #{tgn_forward.14} parent=27 // pred_region
        %p254 = scmp.lt.s32.totalorder %s20, 3
        %s255 = scalar_select %p254, %s20, 3
        %s256 = scalar_lea.vmem %s3, %s255
      $region40: #{tgn_forward.14} parent=27 // pred_fallthru
        _
    $region28: #{tgn_forward.14} parent=5 // pred_fallthru
      _
    %p257 = scmp.le.s32.totalorder 1, %s12
    %p258 = scmp.lt.s32.totalorder %s12, 5
    %p259 = pnand %p257, %p258
    %p260 = pneg %p259
    // Predicated region
    $region41: #{tgn_forward.14} parent=5 // pred_check
      _
    $region42: #{tgn_forward.14} parent=5 // pred_check_branch
      %262 = sbr.rel (%p259) target = $region44
    $region43: #{tgn_forward.14} parent=5 // pred_region
      %s263 = ssub.s32 %s12, 1
      %p264 = pneg %p45
      %p265 = pneg %p42
      %s266 = smul.u32 2, %s21
      %p267 = scmp.lt.s32.totalorder %s22, 3
      %s268 = scalar_select %p267, %s22, 3
      %p269 = scmp.lt.s32.totalorder %s266, 1
      %s270 = scalar_select %p269, %s266, 1
      %s271 = smul.addr %s268, 2
      %s272 = sadd.s32 %s270, %s271
      %s273 = smul.addr %s272, 4
      %s274 = scalar_lea.vmem %s1, %s273
      %p275 = pneg %p73
      %p276 = pneg %p70
      %p277 = scmp.lt.s32.totalorder %s22, 3
      %s278 = scalar_select %p277, %s22, 3
      %s279 = scalar_lea.vmem %s2, %s278
      %p280 = pneg %p99
      %p281 = pneg %p96
      %p282 = scmp.lt.s32.totalorder %s22, 3
      %s283 = scalar_select %p282, %s22, 3
      %s284 = scalar_lea.vmem %s3, %s283
      %p285 = pneg %p125
      %p286 = pneg %p122
      %s287 = smul.u32 2, %s21
      %p288 = scmp.lt.s32.totalorder %s287, 1
      %s289 = scalar_select %p288, %s287, 1
      %s290 = smul.addr %s289, 4
      %s291 = scalar_lea.vmem %s4, %s290
      %p292 = pneg %p151
      %p293 = pneg %p148
      %p294 = pneg %p172
      %p295 = pneg %p169
      %p296 = pneg %p198
      %p297 = pneg %p195
      %s298 = smul.u32 2, %s21
      %p299 = scmp.lt.s32.totalorder %s298, 1
      %s300 = scalar_select %p299, %s298, 1
      %s301 = smul.addr %s300, 8
      %s302 = scalar_lea.vmem %s6, %s301
      %s303 = smul.u32 2, %s21
      %p304 = scmp.lt.s32.totalorder %s22, 3
      %s305 = scalar_select %p304, %s22, 3
      %p306 = scmp.lt.s32.totalorder %s303, 1
      %s307 = scalar_select %p306, %s303, 1
      %s308 = smul.addr %s305, 2
      %s309 = sadd.s32 %s307, %s308
      %s310 = smul.addr %s309, 4
      %s311 = scalar_lea.vmem %s1, %s310
      %s312 = smul.u32 2, %s21
      %p313 = scmp.lt.s32.totalorder %s22, 3
      %s314 = scalar_select %p313, %s22, 3
      %s315 = scalar_lea.vmem %s2, %s314
      %p316 = scmp.lt.s32.totalorder %s22, 3
      %s317 = scalar_select %p316, %s22, 3
      %s318 = scalar_lea.vmem %s3, %s317
      %s319 = smul.u32 2, %s21
      %p320 = scmp.lt.s32.totalorder %s319, 1
      %s321 = scalar_select %p320, %s319, 1
      %s322 = smul.addr %s321, 4
      %s323 = scalar_lea.vmem %s4, %s322
      %s324 = smul.u32 2, %s21
      %s325 = smul.u32 2, %s21
      %p326 = scmp.lt.s32.totalorder %s325, 1
      %s327 = scalar_select %p326, %s325, 1
      %s328 = smul.addr %s327, 8
      %s329 = scalar_lea.vmem %s6, %s328
      %s330 = smul.u32 2, %s21
      %p332 = scmp.eq.s32.totalorder %s22, 0
      // Predicated region
      $region45: #{tgn_forward.14} parent=43 // pred_check
        %p333 = pneg %p332
      $region46: #{tgn_forward.14} parent=43 // pred_check_branch
        %335 = sbr.rel (%p333) target = $region48
      $region47: #{tgn_forward.14} parent=43 // pred_region
        %vm336 = vcmask 261120
        %337 = vst.msk [vmem:[#allocation2] sm:$0xff] %vm336, 0.0
        %vm338 = vcmask 257024
        %339 = vst.msk [vmem:[#allocation2 + $0x8] sm:$0xf] %vm338, 0.0
      $region48: #{tgn_forward.14} parent=43 // pred_fallthru
        _
      %v340 = vld [vmem:[#allocation2] sm:$0xff]
      %v341 = vld [vmem:[#allocation2 + $0x8] sm:$0xf]
      %s342 = smul.u32 %s22, 2
      %s343 = smul.addr %s342, 4
      %s344 = scalar_lea.vmem %s0, %s343
      %v345 = vld [vmem:[%s344] sm:$0xf]
      %v346 = vld [vmem:[%s344 + $0x4] sm:$0x3]
      %v347 = vld [vmem:[%s311] sm:$0xf]
      %v348 = vld [vmem:[%s311 + $0x4] sm:$0x3]
      %v349 = vld [vmem:[%s315] sm:$0x1]
      %v350 = vld [vmem:[%s318] sm:$0x1]
      %v351 = vld [vmem:[%s323] sm:$0xf]
      %v352 = vld [vmem:[%s323 + $0x4] sm:$0x3]
      %v353 = vunpack.c.l.bf16 %v347
      %v354 = vunpack.c.l.bf16 %v348
      %v356 = vlaneseq
      %v357 = vshrl.u32 %v356, 7
      %v358 = vsub.s32 0, %v357
      %v359 = vrot.slane %v350, %v358
      %v361 = vmul.f32 %v353, %v359
      %v362 = vmul.f32 %v354, %v359
      %vm363 = vcmask 261120
      %v364 = vsel %vm363, %v361, 0.0
      %365 = vadd.xlane.f32.xlu0 %v364
      %v366 = vpop.xlane.xlu0 %365
      %vm367 = vcmask 257024
      %v368 = vsel %vm367, %v362, 0.0
      %369 = vadd.xlane.f32.xlu0 %v368
      %v370 = vpop.xlane.xlu0 %369
      %v371 = vpack.c.bf16 %v349, %v349
      %v374 = vunpack.c.l.b16 %v345
      %v375 = vunpack.c.l.b16 %v346
      %v376 = vpack.c.b16 %v375, %v374
      %v378 = vsel %vm363, %v371, 0
      %v381 = vsel %vm363, %v376, 0
      %383 = vmatprep.subr.bf16.mxu0 0
      %384 = vmatpush1.bf16.xpose.msra.mxu0 %v381
      %385 = vmatprep.subr.bf16.mxu0 0
      %386 = vmatpush1.bf16.xpose.msra.mxu0 0
      %387 = vmatprep.subr.bf16.mxu0 0
      %388 = vmatpush1.bf16.xpose.msra.mxu0 0
      %389 = vmatprep.subr.bf16.mxu0 0
      %390 = vmatpush1.bf16.xpose.msra.mxu0 0
      %391 = vmatprep.subr.bf16.mxu0 0
      %392 = vmatpush1.bf16.xpose.msra.mxu0 0
      %393 = vmatprep.subr.bf16.mxu0 0
      %394 = vmatpush1.bf16.xpose.msra.mxu0 0
      %395 = vmatprep.subr.bf16.mxu0 0
      %396 = vmatpush1.bf16.xpose.msra.mxu0 0
      %397 = vmatprep.subr.bf16.mxu0 0
      %398 = vmatpush1.bf16.xpose.msra.mxu0 0
      %399 = vmatprep.subr.bf16.mxu0 0
      %400 = vmatpush1.bf16.xpose.msra.mxu0 0
      %401 = vmatprep.subr.bf16.mxu0 0
      %402 = vmatpush1.bf16.xpose.msra.mxu0 0
      %403 = vmatprep.subr.bf16.mxu0 0
      %404 = vmatpush1.bf16.xpose.msra.mxu0 0
      %405 = vmatprep.subr.bf16.mxu0 0
      %406 = vmatpush1.bf16.xpose.msra.mxu0 0
      %407 = vmatprep.subr.bf16.mxu0 0
      %408 = vmatpush1.bf16.xpose.msra.mxu0 0
      %409 = vmatprep.subr.bf16.mxu0 0
      %410 = vmatpush1.bf16.xpose.msra.mxu0 0
      %411 = vmatprep.subr.bf16.mxu0 0
      %412 = vmatpush1.bf16.xpose.msra.mxu0 0
      %413 = vmatprep.subr.bf16.mxu0 0
      %414 = vmatpush1.bf16.xpose.msra.mxu0 0
      %415 = vmatprep.mubr.bf16.mxu0 0
      %416 = vmatmul.mubr.bf16.gmra.mrb[0].mxu0 %v378
      %v417 = vpop.f32.mrb[0].mxu0
      %v418 = vadd.f32 0.0, %v417
      %v419 = vpop.f32.mrb[0].mxu0
      %v420 = vpop.f32.mrb[0].mxu0
      %v421 = vpop.f32.mrb[0].mxu0
      %422 = vdwg.mxu0
      %v423 = vlaneseq
      %v424 = vshrl.u32 %v423, 7
      %v425 = vsub.s32 0, %v424
      %v426 = vrot.slane %v418, %v425
      %v427 = vadd.f32 %v366, %v426
      %v428 = vadd.f32 %v370, %v426
      %vm429 = vcmp.gt.f32.partialorder %v427, 0.0
      %vm430 = vcmp.gt.f32.partialorder %v428, 0.0
      %v431 = vmul.f32 %v427, 0.2
      %v432 = vmul.f32 %v428, 0.2
      %v433 = vsel %vm429, %v427, %v431
      %v434 = vsel %vm430, %v428, %v432
      %vm435 = vcmask 97280
      %v436 = vsel %vm435, %v433, -inf
      %437 = vmax.xlane.f32.xlu0 %v436
      %v438 = vpop.xlane.xlu0 %437
      %vm439 = vcmask 93184
      %v440 = vsel %vm439, %v434, -inf
      %441 = vmax.xlane.f32.xlu0 %v440
      %v442 = vpop.xlane.xlu0 %441
      %v443 = vunpack.c.l.bf16 %v351
      %v444 = vunpack.c.l.bf16 %v352
      %v445 = vsub.f32 %v433, %v438
      %v446 = vsub.f32 %v434, %v442
      %v447 = vmul.f32 %v445, 1.442695
      %v448 = vpow.pop %v447
      %v449 = vmul.f32 %v446, 1.442695
      %v450 = vpow.pop %v449
      %v451 = vmul.f32 %v443, %v448
      %v452 = vmul.f32 %v444, %v450
      %v453 = vsel %vm435, %v451, 0.0
      %454 = vadd.xlane.f32.xlu0 %v453
      %v455 = vpop.xlane.xlu0 %454
      %v456 = vsel %vm439, %v452, 0.0
      %457 = vadd.xlane.f32.xlu0 %v456
      %v458 = vpop.xlane.xlu0 %457
      %v459 = vpack.c.bf16 %v452, %v451
      %v461 = vsel %vm435, %v459, 0
      %vm463 = vcmask 1045504
      %v464 = vsel %vm463, %v376, 0
      %466 = vmatprep.subr.bf16.mxu0 0
      %467 = vmatpush1.bf16.msra.mxu0 %v464
      %468 = vmatprep.subr.bf16.mxu0 0
      %469 = vmatpush1.bf16.msra.mxu0 0
      %470 = vmatprep.subr.bf16.mxu0 0
      %471 = vmatpush1.bf16.msra.mxu0 0
      %472 = vmatprep.subr.bf16.mxu0 0
      %473 = vmatpush1.bf16.msra.mxu0 0
      %474 = vmatprep.subr.bf16.mxu0 0
      %475 = vmatpush1.bf16.msra.mxu0 0
      %476 = vmatprep.subr.bf16.mxu0 0
      %477 = vmatpush1.bf16.msra.mxu0 0
      %478 = vmatprep.subr.bf16.mxu0 0
      %479 = vmatpush1.bf16.msra.mxu0 0
      %480 = vmatprep.subr.bf16.mxu0 0
      %481 = vmatpush1.bf16.msra.mxu0 0
      %482 = vmatprep.subr.bf16.mxu0 0
      %483 = vmatpush1.bf16.msra.mxu0 0
      %484 = vmatprep.subr.bf16.mxu0 0
      %485 = vmatpush1.bf16.msra.mxu0 0
      %486 = vmatprep.subr.bf16.mxu0 0
      %487 = vmatpush1.bf16.msra.mxu0 0
      %488 = vmatprep.subr.bf16.mxu0 0
      %489 = vmatpush1.bf16.msra.mxu0 0
      %490 = vmatprep.subr.bf16.mxu0 0
      %491 = vmatpush1.bf16.msra.mxu0 0
      %492 = vmatprep.subr.bf16.mxu0 0
      %493 = vmatpush1.bf16.msra.mxu0 0
      %494 = vmatprep.subr.bf16.mxu0 0
      %495 = vmatpush1.bf16.msra.mxu0 0
      %496 = vmatprep.subr.bf16.mxu0 0
      %497 = vmatpush1.bf16.msra.mxu0 0
      %498 = vmatprep.mubr.bf16.mxu0 0
      %499 = vmatmul.mubr.bf16.gmra.mrb[0].mxu0 %v461
      %v500 = vpop.f32.mrb[0].mxu0
      %v501 = vadd.f32 0.0, %v500
      %v502 = vpop.f32.mrb[0].mxu0
      %v503 = vpop.f32.mrb[0].mxu0
      %v504 = vadd.f32 0.0, %v503
      %v505 = vpop.f32.mrb[0].mxu0
      %506 = vdwg.mxu0
      %v507 = vrcp.pop %v455
      %v508 = vrcp.pop %v458
      %v509 = vmul.f32 %v501, %v507
      %v510 = vmul.f32 %v504, %v508
      %v511 = vadd.f32 %v340, %v509
      %v512 = vadd.f32 %v341, %v510
      %513 = vst.msk [vmem:[#allocation2] sm:$0xff] %vm363, %v511
      %514 = vst.msk [vmem:[#allocation2 + $0x8] sm:$0xf] %vm367, %v512
      %p515 = scmp.eq.s32.totalorder %s22, 3
      // Predicated region
      $region49: #{tgn_forward.14} parent=43 // pred_check
        %p516 = pneg %p515
      $region50: #{tgn_forward.14} parent=43 // pred_check_branch
        %518 = sbr.rel (%p516) target = $region52
      $region51: #{tgn_forward.14} parent=43 // pred_region
        %v519 = vld [vmem:[#allocation2] sm:$0xff]
        %v520 = vld [vmem:[#allocation2 + $0x8] sm:$0xf]
        %v521 = vmul.f32 %v519, 0.25
        %v522 = vmul.f32 %v520, 0.25
        %v523 = vld [vmem:[%s5] sm:$0x1]
        %v525 = vlaneseq
        %v526 = vshrl.u32 %v525, 7
        %v527 = vsub.s32 0, %v526
        %v528 = vrot.slane %v523, %v527
        %v530 = vadd.f32 %v521, %v528
        %v531 = vadd.f32 %v522, %v528
        %v532 = vmax.f32 %v530, 0.0
        %v533 = vmax.f32 %v531, 0.0
        %534 = vst.msk [vmem:[%s329] sm:$0xff] %vm363, %v532
        %535 = vst.msk [vmem:[%s329 + $0x8] sm:$0xf] %vm367, %v533
      $region52: #{tgn_forward.14} parent=43 // pred_fallthru
        _
      %s536 = smul.u32 2, %s21
      %p537 = scmp.lt.s32.totalorder %s536, 1
      %s538 = scalar_select %p537, %s536, 1
      %s539 = smul.addr %s538, 8
      %s540 = scalar_lea.vmem %s6, %s539
      // Predicated region
      $region53: #{tgn_forward.14} parent=43 // pred_check
        %p541 = pneg %p195
      $region54: #{tgn_forward.14} parent=43 // pred_check_branch
        %543 = sbr.rel (%p541) target = $region56
      $region55: #{tgn_forward.14} parent=43 // pred_region
        %s544 = smul.u32 2, %s21
      $region56: #{tgn_forward.14} parent=43 // pred_fallthru
        _
      // Predicated region
      $region57: #{tgn_forward.14} parent=43 // pred_check
        %p545 = pneg %p195
      $region58: #{tgn_forward.14} parent=43 // pred_check_branch
        %547 = sbr.rel (%p545) target = $region60
      $region59: #{tgn_forward.14} parent=43 // pred_region
        %s548 = smul.u32 2, %s21
        %p549 = scmp.lt.s32.totalorder %s548, 1
        %s550 = scalar_select %p549, %s548, 1
        %s551 = smul.addr %s550, 8
        %s552 = scalar_lea.vmem %s6, %s551
      $region60: #{tgn_forward.14} parent=43 // pred_fallthru
        _
    $region44: #{tgn_forward.14} parent=5 // pred_fallthru
      _
    %p553 = scmp.le.s32.totalorder 2, %s12
    // Predicated region
    $region61: #{tgn_forward.14} parent=5 // pred_check
      %p554 = pneg %p553
    $region62: #{tgn_forward.14} parent=5 // pred_check_branch
      %556 = sbr.rel (%p554) target = $region64
    $region63: #{tgn_forward.14} parent=5 // pred_region
      %s557 = ssub.s32 %s12, 2
    $region64: #{tgn_forward.14} parent=5 // pred_fallthru
      _
  $region6: #{tgn_forward.14} parent=0 // loop_footer
    %s16 = sadd.s32 1, %s12
  $region7: #{tgn_forward.14} parent=0 // loop_footer_branch
    %11 = sbr.rel target = $region3
  $region8: #{tgn_forward.14} parent=0 // loop_exit
    _

// kernel: tgn_forward.15
$region0: #{tgn_forward.15}
  #allocation0 [shape = 'u32[]', space=smem, size = 0x4, offset = 0x4, fixed_abs, tag = 'smem constant byte address 0x4 - core index']
  #allocation1 [shape = 'u32[144,128]{1,0:T(1,128)}', space=vmem, size = 0x12000, scoped, tag = 'internal scratch']
  %s0 = inlined_call_operand.vmem [shape: bf16[12,12], index: 0, kind: input, shape index: {}]
  %s1 = inlined_call_operand.vmem [shape: f32[12,32], index: 1, kind: input, shape index: {}]
  %s2 = inlined_call_operand.vmem [shape: f32[12,16], index: 2, kind: input, shape index: {}]
  %s3 = inlined_call_operand.vmem [shape: f32[1,32], index: 3, kind: input, shape index: {}]
  %s4 = inlined_call_operand.vmem [shape: f32[16,32], index: 4, kind: input, shape index: {}]
  %s5 = inlined_call_operand.vmem [shape: f32[1,32], index: 5, kind: input, shape index: {}]
  %s6 = inlined_call_operand.vmem [shape: f32[32,32], index: 6, kind: input, shape index: {}]
  %s7 = inlined_call_operand.vmem [shape: f32[32,32], index: 7, kind: input, shape index: {}]
  %s8 = inlined_call_operand.vmem [shape: f32[1,32], index: 8, kind: input, shape index: {}]
  %s9 = inlined_call_operand.vmem [shape: f32[32,32], index: 9, kind: input, shape index: {}]
  %s10 = inlined_call_operand.vmem [shape: f32[1,32], index: 10, kind: input, shape index: {}]
  %s11 = inlined_call_operand.vmem [shape: f32[1,32], index: 11, kind: input, shape index: {}]
  %s12 = inlined_call_operand.vmem [shape: f32[1,32], index: 12, kind: input, shape index: {}]
  %s13 = inlined_call_operand.hbm [shape: f32[12,32], index: 13, kind: output, shape index: {}]
  %s14 = sld [smem:[#allocation0]]
  $region62: #{tgn_forward.15} parent=0
    _
  %s16 = ssub.s32 1, %s14
  %s17 = scalar_select 0, %s16, %s14
  $region1: #{tgn_forward.15} parent=0
    #allocation2 [shape = 'u8[8192]{0}', space=vmem, size = 0x2000, scoped, tag = 'output window, operand 0, single buffered']
    #allocation3 [shape = 's32[1]{0}', space=sflag, size = 0x4, scoped, tag = 'scoped memory for tgn_forward.15']
    %18 = vsyncpa [#allocation3], 0
    // Predicated region
    $region2: #{tgn_forward.15} parent=1 // pred_check
      _
    $region3: #{tgn_forward.15} parent=1 // pred_check_branch
      %20 = sbr.rel (0) target = $region5
    $region4: #{tgn_forward.15} parent=1 // pred_region
      _
    $region5: #{tgn_forward.15} parent=1 // pred_fallthru
      _
    // Predicated region
    $region6: #{tgn_forward.15} parent=1 // pred_check
      _
    $region7: #{tgn_forward.15} parent=1 // pred_check_branch
      %22 = sbr.rel (0) target = $region9
    $region8: #{tgn_forward.15} parent=1 // pred_region
      _
    $region9: #{tgn_forward.15} parent=1 // pred_fallthru
      _
    // Predicated region
    $region10: #{tgn_forward.15} parent=1 // pred_check
      _
    $region11: #{tgn_forward.15} parent=1 // pred_check_branch
      %24 = sbr.rel (0) target = $region13
    $region12: #{tgn_forward.15} parent=1 // pred_region
      _
    $region13: #{tgn_forward.15} parent=1 // pred_fallthru
      _
    // Predicated region
    $region14: #{tgn_forward.15} parent=1 // pred_check
      _
    $region15: #{tgn_forward.15} parent=1 // pred_check_branch
      %26 = sbr.rel (0) target = $region17
    $region16: #{tgn_forward.15} parent=1 // pred_region
      _
    $region17: #{tgn_forward.15} parent=1 // pred_fallthru
      _
    // Predicated region
    $region18: #{tgn_forward.15} parent=1 // pred_check
      _
    $region19: #{tgn_forward.15} parent=1 // pred_check_branch
      %28 = sbr.rel (0) target = $region21
    $region20: #{tgn_forward.15} parent=1 // pred_region
      _
    $region21: #{tgn_forward.15} parent=1 // pred_fallthru
      _
    // Predicated region
    $region22: #{tgn_forward.15} parent=1 // pred_check
      _
    $region23: #{tgn_forward.15} parent=1 // pred_check_branch
      %30 = sbr.rel (0) target = $region25
    $region24: #{tgn_forward.15} parent=1 // pred_region
      _
    $region25: #{tgn_forward.15} parent=1 // pred_fallthru
      _
    // Predicated region
    $region26: #{tgn_forward.15} parent=1 // pred_check
      _
    $region27: #{tgn_forward.15} parent=1 // pred_check_branch
      %32 = sbr.rel (0) target = $region29
    $region28: #{tgn_forward.15} parent=1 // pred_region
      _
    $region29: #{tgn_forward.15} parent=1 // pred_fallthru
      _
    // Predicated region
    $region30: #{tgn_forward.15} parent=1 // pred_check
      _
    $region31: #{tgn_forward.15} parent=1 // pred_check_branch
      %34 = sbr.rel (0) target = $region33
    $region32: #{tgn_forward.15} parent=1 // pred_region
      _
    $region33: #{tgn_forward.15} parent=1 // pred_fallthru
      _
    // Predicated region
    $region34: #{tgn_forward.15} parent=1 // pred_check
      _
    $region35: #{tgn_forward.15} parent=1 // pred_check_branch
      %36 = sbr.rel (0) target = $region37
    $region36: #{tgn_forward.15} parent=1 // pred_region
      _
    $region37: #{tgn_forward.15} parent=1 // pred_fallthru
      _
    // Predicated region
    $region38: #{tgn_forward.15} parent=1 // pred_check
      _
    $region39: #{tgn_forward.15} parent=1 // pred_check_branch
      %38 = sbr.rel (0) target = $region41
    $region40: #{tgn_forward.15} parent=1 // pred_region
      _
    $region41: #{tgn_forward.15} parent=1 // pred_fallthru
      _
    // Predicated region
    $region42: #{tgn_forward.15} parent=1 // pred_check
      _
    $region43: #{tgn_forward.15} parent=1 // pred_check_branch
      %40 = sbr.rel (0) target = $region45
    $region44: #{tgn_forward.15} parent=1 // pred_region
      _
    $region45: #{tgn_forward.15} parent=1 // pred_fallthru
      _
    // Predicated region
    $region46: #{tgn_forward.15} parent=1 // pred_check
      _
    $region47: #{tgn_forward.15} parent=1 // pred_check_branch
      %42 = sbr.rel (0) target = $region49
    $region48: #{tgn_forward.15} parent=1 // pred_region
      _
    $region49: #{tgn_forward.15} parent=1 // pred_fallthru
      _
    // Predicated region
    $region50: #{tgn_forward.15} parent=1 // pred_check
      _
    $region51: #{tgn_forward.15} parent=1 // pred_check_branch
      %44 = sbr.rel (0) target = $region53
    $region52: #{tgn_forward.15} parent=1 // pred_region
      _
    $region53: #{tgn_forward.15} parent=1 // pred_fallthru
      _
    %v46 = vld [vmem:[%s1] sm:$0xff]
    %v47 = vld [vmem:[%s1 + $0x8] sm:$0xf]
    %v48 = vpack.c.bf16 %v47, %v46
    %v49 = vld [vmem:[%s0] sm:$0xf]
    %v50 = vld [vmem:[%s0 + $0x4] sm:$0x3]
    %v53 = vunpack.c.l.b16 %v49
    %v54 = vunpack.c.l.b16 %v50
    %v55 = vpack.c.b16 %v54, %v53
    %vm56 = vcmask 97280
    %v58 = vsel %vm56, %v55, 0
    %vm60 = vcmask 1045504
    %v62 = vsel %vm60, %v48, 0
    %64 = vmatprep.subr.bf16.mxu0 0
    %65 = vmatpush1.bf16.msra.mxu0 %v62
    %66 = vmatprep.subr.bf16.mxu0 0
    %67 = vmatpush1.bf16.msra.mxu0 0
    %68 = vmatprep.subr.bf16.mxu0 0
    %69 = vmatpush1.bf16.msra.mxu0 0
    %70 = vmatprep.subr.bf16.mxu0 0
    %71 = vmatpush1.bf16.msra.mxu0 0
    %72 = vmatprep.subr.bf16.mxu0 0
    %73 = vmatpush1.bf16.msra.mxu0 0
    %74 = vmatprep.subr.bf16.mxu0 0
    %75 = vmatpush1.bf16.msra.mxu0 0
    %76 = vmatprep.subr.bf16.mxu0 0
    %77 = vmatpush1.bf16.msra.mxu0 0
    %78 = vmatprep.subr.bf16.mxu0 0
    %79 = vmatpush1.bf16.msra.mxu0 0
    %80 = vmatprep.subr.bf16.mxu0 0
    %81 = vmatpush1.bf16.msra.mxu0 0
    %82 = vmatprep.subr.bf16.mxu0 0
    %83 = vmatpush1.bf16.msra.mxu0 0
    %84 = vmatprep.subr.bf16.mxu0 0
    %85 = vmatpush1.bf16.msra.mxu0 0
    %86 = vmatprep.subr.bf16.mxu0 0
    %87 = vmatpush1.bf16.msra.mxu0 0
    %88 = vmatprep.subr.bf16.mxu0 0
    %89 = vmatpush1.bf16.msra.mxu0 0
    %90 = vmatprep.subr.bf16.mxu0 0
    %91 = vmatpush1.bf16.msra.mxu0 0
    %92 = vmatprep.subr.bf16.mxu0 0
    %93 = vmatpush1.bf16.msra.mxu0 0
    %94 = vmatprep.subr.bf16.mxu0 0
    %95 = vmatpush1.bf16.msra.mxu0 0
    %96 = vmatprep.mubr.bf16.mxu0 0
    %97 = vmatmul.mubr.bf16.gmra.mrb[0].mxu0 %v58
    %v98 = vpop.f32.mrb[0].mxu0
    %v99 = vadd.f32 0.0, %v98
    %v100 = vpop.f32.mrb[0].mxu0
    %v101 = vpop.f32.mrb[0].mxu0
    %v102 = vadd.f32 0.0, %v101
    %v103 = vpop.f32.mrb[0].mxu0
    %104 = vdwg.mxu0
    %v105 = vld [vmem:[%s2] sm:$0xff]
    %v106 = vld [vmem:[%s2 + $0x8] sm:$0xf]
    %v107 = vld [vmem:[%s4] sm:$0xff]
    %v108 = vld [vmem:[%s4 + $0x8] sm:$0xff]
    %v109 = vld [vmem:[%s5] sm:$0x1]
    %v111 = vlaneseq
    %v112 = vshrl.u32 %v111, 7
    %v113 = vsub.s32 0, %v112
    %v114 = vrot.slane %v109, %v113
    %vm116 = vcmask 130048
    %v118 = vsel %vm116, %v105, 0
    %v121 = vsel %vm116, %v106, 0
    %123 = vmatprep.subr.mxu0 0.0
    %124 = vmatpush1.msra.mxu0 %v107
    %125 = vmatprep.subr.mxu0 0.0
    %126 = vmatpush1.msra.mxu0 %v108
    %127 = vmatprep.subr.mxu0 0.0
    %128 = vmatpush1.msra.mxu0 0.0
    %129 = vmatprep.subr.mxu0 0.0
    %130 = vmatpush1.msra.mxu0 0.0
    %131 = vmatprep.subr.mxu0 0.0
    %132 = vmatpush1.msra.mxu0 0.0
    %133 = vmatprep.subr.mxu0 0.0
    %134 = vmatpush1.msra.mxu0 0.0
    %135 = vmatprep.subr.mxu0 0.0
    %136 = vmatpush1.msra.mxu0 0.0
    %137 = vmatprep.subr.mxu0 0.0
    %138 = vmatpush1.msra.mxu0 0.0
    %139 = vmatprep.subr.mxu0 0.0
    %140 = vmatpush1.msra.mxu0 0.0
    %141 = vmatprep.subr.mxu0 0.0
    %142 = vmatpush1.msra.mxu0 0.0
    %143 = vmatprep.subr.mxu0 0.0
    %144 = vmatpush1.msra.mxu0 0.0
    %145 = vmatprep.subr.mxu0 0.0
    %146 = vmatpush1.msra.mxu0 0.0
    %147 = vmatprep.subr.mxu0 0.0
    %148 = vmatpush1.msra.mxu0 0.0
    %149 = vmatprep.subr.mxu0 0.0
    %150 = vmatpush1.msra.mxu0 0.0
    %151 = vmatprep.subr.mxu0 0.0
    %152 = vmatpush1.msra.mxu0 0.0
    %153 = vmatprep.subr.mxu0 0.0
    %154 = vmatpush1.msra.mxu0 0.0
    %155 = vmatprep.subr.mxu0 0.0
    %156 = vmatpush1.msra.mxu0 0.0
    %157 = vmatprep.subr.mxu0 0.0
    %158 = vmatpush1.msra.mxu0 0.0
    %159 = vmatprep.subr.mxu0 0.0
    %160 = vmatpush1.msra.mxu0 0.0
    %161 = vmatprep.subr.mxu0 0.0
    %162 = vmatpush1.msra.mxu0 0.0
    %163 = vmatprep.subr.mxu0 0.0
    %164 = vmatpush1.msra.mxu0 0.0
    %165 = vmatprep.subr.mxu0 0.0
    %166 = vmatpush1.msra.mxu0 0.0
    %167 = vmatprep.subr.mxu0 0.0
    %168 = vmatpush1.msra.mxu0 0.0
    %169 = vmatprep.subr.mxu0 0.0
    %170 = vmatpush1.msra.mxu0 0.0
    %171 = vmatprep.subr.mxu0 0.0
    %172 = vmatpush1.msra.mxu0 0.0
    %173 = vmatprep.subr.mxu0 0.0
    %174 = vmatpush1.msra.mxu0 0.0
    %175 = vmatprep.subr.mxu0 0.0
    %176 = vmatpush1.msra.mxu0 0.0
    %177 = vmatprep.subr.mxu0 0.0
    %178 = vmatpush1.msra.mxu0 0.0
    %179 = vmatprep.subr.mxu0 0.0
    %180 = vmatpush1.msra.mxu0 0.0
    %181 = vmatprep.subr.mxu0 0.0
    %182 = vmatpush1.msra.mxu0 0.0
    %183 = vmatprep.subr.mxu0 0.0
    %184 = vmatpush1.msra.mxu0 0.0
    %185 = vmatprep.subr.mxu0 0.0
    %186 = vmatpush1.msra.mxu0 0.0
    %187 = vmatprep.mubr.f32.mxu0 0.0
    %188 = vmatmul.mubr.f32.gmra.mrb[0].mxu0 %v118
    %v189 = vpop.f32.mrb[0].mxu0
    %v190 = vadd.f32 %v114, %v189
    %v191 = vpop.f32.mrb[0].mxu0
    %192 = vmatprep.mubr.f32.mxu0 0.0
    %193 = vmatmul.mubr.f32.gmra.mrb[0].mxu0 %v121
    %v194 = vpop.f32.mrb[0].mxu0
    %v195 = vadd.f32 %v114, %v194
    %v196 = vpop.f32.mrb[0].mxu0
    %197 = vdwg.mxu0
    %v198 = vld [vmem:[%s3] sm:$0x1]
    %v199 = vld [vmem:[%s7] sm:$0xff]
    %v200 = vld [vmem:[%s7 + $0x8] sm:$0xff]
    %v201 = vld [vmem:[%s7 + $0x10] sm:$0xff]
    %v202 = vld [vmem:[%s7 + $0x18] sm:$0xff]
    %vm203 = vcmask 261120
    %v205 = vsel %vm203, %v198, 0
    %207 = vmatprep.subr.mxu0 0.0
    %208 = vmatpush1.msra.mxu0 %v199
    %209 = vmatprep.subr.mxu0 0.0
    %210 = vmatpush1.msra.mxu0 %v200
    %211 = vmatprep.subr.mxu0 0.0
    %212 = vmatpush1.msra.mxu0 %v201
    %213 = vmatprep.subr.mxu0 0.0
    %214 = vmatpush1.msra.mxu0 %v202
    %215 = vmatprep.subr.mxu0 0.0
    %216 = vmatpush1.msra.mxu0 0.0
    %217 = vmatprep.subr.mxu0 0.0
    %218 = vmatpush1.msra.mxu0 0.0
    %219 = vmatprep.subr.mxu0 0.0
    %220 = vmatpush1.msra.mxu0 0.0
    %221 = vmatprep.subr.mxu0 0.0
    %222 = vmatpush1.msra.mxu0 0.0
    %223 = vmatprep.subr.mxu0 0.0
    %224 = vmatpush1.msra.mxu0 0.0
    %225 = vmatprep.subr.mxu0 0.0
    %226 = vmatpush1.msra.mxu0 0.0
    %227 = vmatprep.subr.mxu0 0.0
    %228 = vmatpush1.msra.mxu0 0.0
    %229 = vmatprep.subr.mxu0 0.0
    %230 = vmatpush1.msra.mxu0 0.0
    %231 = vmatprep.subr.mxu0 0.0
    %232 = vmatpush1.msra.mxu0 0.0
    %233 = vmatprep.subr.mxu0 0.0
    %234 = vmatpush1.msra.mxu0 0.0
    %235 = vmatprep.subr.mxu0 0.0
    %236 = vmatpush1.msra.mxu0 0.0
    %237 = vmatprep.subr.mxu0 0.0
    %238 = vmatpush1.msra.mxu0 0.0
    %239 = vmatprep.subr.mxu0 0.0
    %240 = vmatpush1.msra.mxu0 0.0
    %241 = vmatprep.subr.mxu0 0.0
    %242 = vmatpush1.msra.mxu0 0.0
    %243 = vmatprep.subr.mxu0 0.0
    %244 = vmatpush1.msra.mxu0 0.0
    %245 = vmatprep.subr.mxu0 0.0
    %246 = vmatpush1.msra.mxu0 0.0
    %247 = vmatprep.subr.mxu0 0.0
    %248 = vmatpush1.msra.mxu0 0.0
    %249 = vmatprep.subr.mxu0 0.0
    %250 = vmatpush1.msra.mxu0 0.0
    %251 = vmatprep.subr.mxu0 0.0
    %252 = vmatpush1.msra.mxu0 0.0
    %253 = vmatprep.subr.mxu0 0.0
    %254 = vmatpush1.msra.mxu0 0.0
    %255 = vmatprep.subr.mxu0 0.0
    %256 = vmatpush1.msra.mxu0 0.0
    %257 = vmatprep.subr.mxu0 0.0
    %258 = vmatpush1.msra.mxu0 0.0
    %259 = vmatprep.subr.mxu0 0.0
    %260 = vmatpush1.msra.mxu0 0.0
    %261 = vmatprep.subr.mxu0 0.0
    %262 = vmatpush1.msra.mxu0 0.0
    %263 = vmatprep.subr.mxu0 0.0
    %264 = vmatpush1.msra.mxu0 0.0
    %265 = vmatprep.subr.mxu0 0.0
    %266 = vmatpush1.msra.mxu0 0.0
    %267 = vmatprep.subr.mxu0 0.0
    %268 = vmatpush1.msra.mxu0 0.0
    %269 = vmatprep.subr.mxu0 0.0
    %270 = vmatpush1.msra.mxu0 0.0
    %271 = vmatprep.mubr.f32.mxu0 0.0
    %272 = vmatmul.mubr.f32.gmra.mrb[0].mxu0 %v205
    %v273 = vpop.f32.mrb[0].mxu0
    %v274 = vadd.f32 0.0, %v273
    %v275 = vpop.f32.mrb[0].mxu0
    %276 = vdwg.mxu0
    %v277 = vld [vmem:[%s6] sm:$0xff]
    %v278 = vld [vmem:[%s6 + $0x8] sm:$0xff]
    %v279 = vld [vmem:[%s6 + $0x10] sm:$0xff]
    %v280 = vld [vmem:[%s6 + $0x18] sm:$0xff]
    %v281 = vlaneseq
    %v282 = vshrl.u32 %v281, 7
    %v283 = vsub.s32 0, %v282
    %v284 = vrot.slane %v274, %v283
    %v286 = vsel %vm203, %v99, 0
    %v289 = vsel %vm203, %v102, 0
    %291 = vmatprep.subr.mxu0 0.0
    %292 = vmatpush1.msra.mxu0 %v277
    %293 = vmatprep.subr.mxu0 0.0
    %294 = vmatpush1.msra.mxu0 %v278
    %295 = vmatprep.subr.mxu0 0.0
    %296 = vmatpush1.msra.mxu0 %v279
    %297 = vmatprep.subr.mxu0 0.0
    %298 = vmatpush1.msra.mxu0 %v280
    %299 = vmatprep.subr.mxu0 0.0
    %300 = vmatpush1.msra.mxu0 0.0
    %301 = vmatprep.subr.mxu0 0.0
    %302 = vmatpush1.msra.mxu0 0.0
    %303 = vmatprep.subr.mxu0 0.0
    %304 = vmatpush1.msra.mxu0 0.0
    %305 = vmatprep.subr.mxu0 0.0
    %306 = vmatpush1.msra.mxu0 0.0
    %307 = vmatprep.subr.mxu0 0.0
    %308 = vmatpush1.msra.mxu0 0.0
    %309 = vmatprep.subr.mxu0 0.0
    %310 = vmatpush1.msra.mxu0 0.0
    %311 = vmatprep.subr.mxu0 0.0
    %312 = vmatpush1.msra.mxu0 0.0
    %313 = vmatprep.subr.mxu0 0.0
    %314 = vmatpush1.msra.mxu0 0.0
    %315 = vmatprep.subr.mxu0 0.0
    %316 = vmatpush1.msra.mxu0 0.0
    %317 = vmatprep.subr.mxu0 0.0
    %318 = vmatpush1.msra.mxu0 0.0
    %319 = vmatprep.subr.mxu0 0.0
    %320 = vmatpush1.msra.mxu0 0.0
    %321 = vmatprep.subr.mxu0 0.0
    %322 = vmatpush1.msra.mxu0 0.0
    %323 = vmatprep.subr.mxu0 0.0
    %324 = vmatpush1.msra.mxu0 0.0
    %325 = vmatprep.subr.mxu0 0.0
    %326 = vmatpush1.msra.mxu0 0.0
    %327 = vmatprep.subr.mxu0 0.0
    %328 = vmatpush1.msra.mxu0 0.0
    %329 = vmatprep.subr.mxu0 0.0
    %330 = vmatpush1.msra.mxu0 0.0
    %331 = vmatprep.subr.mxu0 0.0
    %332 = vmatpush1.msra.mxu0 0.0
    %333 = vmatprep.subr.mxu0 0.0
    %334 = vmatpush1.msra.mxu0 0.0
    %335 = vmatprep.subr.mxu0 0.0
    %336 = vmatpush1.msra.mxu0 0.0
    %337 = vmatprep.subr.mxu0 0.0
    %338 = vmatpush1.msra.mxu0 0.0
    %339 = vmatprep.subr.mxu0 0.0
    %340 = vmatpush1.msra.mxu0 0.0
    %341 = vmatprep.subr.mxu0 0.0
    %342 = vmatpush1.msra.mxu0 0.0
    %343 = vmatprep.subr.mxu0 0.0
    %344 = vmatpush1.msra.mxu0 0.0
    %345 = vmatprep.subr.mxu0 0.0
    %346 = vmatpush1.msra.mxu0 0.0
    %347 = vmatprep.subr.mxu0 0.0
    %348 = vmatpush1.msra.mxu0 0.0
    %349 = vmatprep.subr.mxu0 0.0
    %350 = vmatpush1.msra.mxu0 0.0
    %351 = vmatprep.subr.mxu0 0.0
    %352 = vmatpush1.msra.mxu0 0.0
    %353 = vmatprep.subr.mxu0 0.0
    %354 = vmatpush1.msra.mxu0 0.0
    %355 = vmatprep.mubr.f32.mxu0 0.0
    %356 = vmatmul.mubr.f32.gmra.mrb[0].mxu0 %v286
    %v357 = vpop.f32.mrb[0].mxu0
    %v358 = vadd.f32 %v284, %v357
    %v359 = vpop.f32.mrb[0].mxu0
    %360 = vmatprep.mubr.f32.mxu0 0.0
    %361 = vmatmul.mubr.f32.gmra.mrb[0].mxu0 %v289
    %v362 = vpop.f32.mrb[0].mxu0
    %v363 = vadd.f32 %v284, %v362
    %v364 = vpop.f32.mrb[0].mxu0
    %365 = vdwg.mxu0
    %v366 = vld [vmem:[%s8] sm:$0x1]
    %v368 = vlaneseq
    %v369 = vshrl.u32 %v368, 7
    %v370 = vsub.s32 0, %v369
    %v371 = vrot.slane %v366, %v370
    %v373 = vadd.f32 %v358, %v371
    %v374 = vadd.f32 %v363, %v371
    %v375 = vmax.f32 %v373, 0.0
    %v376 = vmax.f32 %v374, 0.0
    %v377 = vld [vmem:[%s9] sm:$0xff]
    %v378 = vld [vmem:[%s9 + $0x8] sm:$0xff]
    %v379 = vld [vmem:[%s9 + $0x10] sm:$0xff]
    %v380 = vld [vmem:[%s9 + $0x18] sm:$0xff]
    %v381 = vld [vmem:[%s10] sm:$0x1]
    %v383 = vlaneseq
    %v384 = vshrl.u32 %v383, 7
    %v385 = vsub.s32 0, %v384
    %v386 = vrot.slane %v381, %v385
    %v389 = vsel %vm203, %v375, 0
    %v392 = vsel %vm203, %v376, 0
    %394 = vmatprep.subr.mxu0 0.0
    %395 = vmatpush1.msra.mxu0 %v377
    %396 = vmatprep.subr.mxu0 0.0
    %397 = vmatpush1.msra.mxu0 %v378
    %398 = vmatprep.subr.mxu0 0.0
    %399 = vmatpush1.msra.mxu0 %v379
    %400 = vmatprep.subr.mxu0 0.0
    %401 = vmatpush1.msra.mxu0 %v380
    %402 = vmatprep.subr.mxu0 0.0
    %403 = vmatpush1.msra.mxu0 0.0
    %404 = vmatprep.subr.mxu0 0.0
    %405 = vmatpush1.msra.mxu0 0.0
    %406 = vmatprep.subr.mxu0 0.0
    %407 = vmatpush1.msra.mxu0 0.0
    %408 = vmatprep.subr.mxu0 0.0
    %409 = vmatpush1.msra.mxu0 0.0
    %410 = vmatprep.subr.mxu0 0.0
    %411 = vmatpush1.msra.mxu0 0.0
    %412 = vmatprep.subr.mxu0 0.0
    %413 = vmatpush1.msra.mxu0 0.0
    %414 = vmatprep.subr.mxu0 0.0
    %415 = vmatpush1.msra.mxu0 0.0
    %416 = vmatprep.subr.mxu0 0.0
    %417 = vmatpush1.msra.mxu0 0.0
    %418 = vmatprep.subr.mxu0 0.0
    %419 = vmatpush1.msra.mxu0 0.0
    %420 = vmatprep.subr.mxu0 0.0
    %421 = vmatpush1.msra.mxu0 0.0
    %422 = vmatprep.subr.mxu0 0.0
    %423 = vmatpush1.msra.mxu0 0.0
    %424 = vmatprep.subr.mxu0 0.0
    %425 = vmatpush1.msra.mxu0 0.0
    %426 = vmatprep.subr.mxu0 0.0
    %427 = vmatpush1.msra.mxu0 0.0
    %428 = vmatprep.subr.mxu0 0.0
    %429 = vmatpush1.msra.mxu0 0.0
    %430 = vmatprep.subr.mxu0 0.0
    %431 = vmatpush1.msra.mxu0 0.0
    %432 = vmatprep.subr.mxu0 0.0
    %433 = vmatpush1.msra.mxu0 0.0
    %434 = vmatprep.subr.mxu0 0.0
    %435 = vmatpush1.msra.mxu0 0.0
    %436 = vmatprep.subr.mxu0 0.0
    %437 = vmatpush1.msra.mxu0 0.0
    %438 = vmatprep.subr.mxu0 0.0
    %439 = vmatpush1.msra.mxu0 0.0
    %440 = vmatprep.subr.mxu0 0.0
    %441 = vmatpush1.msra.mxu0 0.0
    %442 = vmatprep.subr.mxu0 0.0
    %443 = vmatpush1.msra.mxu0 0.0
    %444 = vmatprep.subr.mxu0 0.0
    %445 = vmatpush1.msra.mxu0 0.0
    %446 = vmatprep.subr.mxu0 0.0
    %447 = vmatpush1.msra.mxu0 0.0
    %448 = vmatprep.subr.mxu0 0.0
    %449 = vmatpush1.msra.mxu0 0.0
    %450 = vmatprep.subr.mxu0 0.0
    %451 = vmatpush1.msra.mxu0 0.0
    %452 = vmatprep.subr.mxu0 0.0
    %453 = vmatpush1.msra.mxu0 0.0
    %454 = vmatprep.subr.mxu0 0.0
    %455 = vmatpush1.msra.mxu0 0.0
    %456 = vmatprep.subr.mxu0 0.0
    %457 = vmatpush1.msra.mxu0 0.0
    %458 = vmatprep.mubr.f32.mxu0 0.0
    %459 = vmatmul.mubr.f32.gmra.mrb[0].mxu0 %v389
    %v460 = vpop.f32.mrb[0].mxu0
    %v461 = vadd.f32 %v386, %v460
    %v462 = vpop.f32.mrb[0].mxu0
    %463 = vmatprep.mubr.f32.mxu0 0.0
    %464 = vmatmul.mubr.f32.gmra.mrb[0].mxu0 %v392
    %v465 = vpop.f32.mrb[0].mxu0
    %v466 = vadd.f32 %v386, %v465
    %v467 = vpop.f32.mrb[0].mxu0
    %468 = vdwg.mxu0
    %v469 = vsel %vm203, %v461, 0.0
    %470 = vadd.xlane.f32.xlu0 %v469
    %v471 = vpop.xlane.xlu0 %470
    %vm472 = vcmask 257024
    %v473 = vsel %vm472, %v466, 0.0
    %474 = vadd.xlane.f32.xlu0 %v473
    %v475 = vpop.xlane.xlu0 %474
    %v476 = vrcp.pop 32.0
    %v477 = vmul.f32 %v471, %v476
    %v478 = vmul.f32 %v475, %v476
    %v479 = vsub.f32 %v461, %v477
    %v480 = vsub.f32 %v466, %v478
    %v481 = vmul.f32 %v479, %v479
    %v482 = vmul.f32 %v480, %v480
    %v483 = vsel %vm203, %v481, 0.0
    %484 = vadd.xlane.f32.xlu0 %v483
    %v485 = vpop.xlane.xlu0 %484
    %v486 = vsel %vm472, %v482, 0.0
    %487 = vadd.xlane.f32.xlu0 %v486
    %v488 = vpop.xlane.xlu0 %487
    %v489 = vmul.f32 %v485, %v476
    %v490 = vmul.f32 %v488, %v476
    %v491 = vadd.f32 %v489, 1e-05
    %v492 = vadd.f32 %v490, 1e-05
    %v493 = vrsqrt.pop %v491
    %v494 = vrsqrt.pop %v492
    %v495 = vmul.f32 %v479, %v493
    %v496 = vmul.f32 %v480, %v494
    %v497 = vld [vmem:[%s11] sm:$0x1]
    %v499 = vlaneseq
    %v500 = vshrl.u32 %v499, 7
    %v501 = vsub.s32 0, %v500
    %v502 = vrot.slane %v497, %v501
    %v504 = vmul.f32 %v495, %v502
    %v505 = vmul.f32 %v496, %v502
    %v506 = vld [vmem:[%s12] sm:$0x1]
    %v508 = vlaneseq
    %v509 = vshrl.u32 %v508, 7
    %v510 = vsub.s32 0, %v509
    %v511 = vrot.slane %v506, %v510
    %v513 = vadd.f32 %v504, %v511
    %v514 = vadd.f32 %v505, %v511
    %v515 = vadd.f32 %v513, %v190
    %v516 = vadd.f32 %v514, %v195
    %517 = vst.msk [vmem:[#allocation2] sm:$0xff] %vm203, %v515
    %518 = vst.msk [vmem:[#allocation2 + $0x8] sm:$0xf] %vm472, %v516
    // Predicated region
    $region54: #{tgn_forward.15} parent=1 // pred_check
      _
    $region55: #{tgn_forward.15} parent=1 // pred_check_branch
      %520 = sbr.rel (0) target = $region57
    $region56: #{tgn_forward.15} parent=1 // pred_region
      %s522 = ssub.s32 256, 256
      %523 = vsyncadd [#allocation3], %s522
      %s524 = sshll.u32 [#allocation2], 4
      %s525 = int_to_ptr.vmem [resolvable:$true] %s524
      %530 = dma.vmem_to_hbm [thread:$0]  %s525, 256, %s13, [#allocation3], 128, 128, 8
    $region57: #{tgn_forward.15} parent=1 // pred_fallthru
      _
    // Predicated region
    $region58: #{tgn_forward.15} parent=1 // pred_check
      _
    $region59: #{tgn_forward.15} parent=1 // pred_check_branch
      %532 = sbr.rel (0) target = $region61
    $region60: #{tgn_forward.15} parent=1 // pred_region
      %533 = dma.done [#allocation3], 256
    $region61: #{tgn_forward.15} parent=1 // pred_fallthru
      _
    %534 = vsyncpa [#allocation3], 1

</llo_original>
